<compile_context>
chip_gen: v5e
topology: v5e:2x2
jax: 0.10.0
libtpu: 0.0.40
codegen_flags: <defaults>
</compile_context>

<pallas_src>
import functools

import jax
import jax.numpy as jnp
import numpy as np
from jax import lax
from jax.experimental import pallas as pl
from jax.experimental.pallas import tpu as pltpu


def _round_up(x, m):
    return (x + m - 1) // m * m


def _device_kind():
    try:
        return jax.devices()[0].device_kind.lower()
    except Exception:
        return ""


def _num_batch_tiles(batch):
    # Only split the batch on v7x (2 TensorCores/chip). On v5e/v6e the grid is a
    # serial loop on one TC, so a split runs the whole time recurrence twice for
    # zero MXU benefit (the recurrent matmul uses a handful of MXU rows anyway).
    kind = _device_kind()
    if "v7" in kind and batch > 8:
        return 2
    return 1


def _vmem_budget_bytes():
    # Generation-aware streamed double-buffer budget:
    # v5e/v6e have 128 MiB physical VMEM; v7x only 64 MiB per TensorCore.
    kind = _device_kind()
    if "v7" in kind:
        return 24 << 20
    if "v5" in kind or "v6" in kind:
        return 48 << 20
    return 16 << 20          # unknown backend / interpret mode: stay conservative


def _pick_time_chunk(L, Bt, D, Hp, requested, vmem_budget_bytes):
    # Streamed, double-buffered per-chunk arrays: x (Bt,Lt,D) f32 and o (Bt,Lt,Hp) f32.
    per_step_bytes = 2 * Bt * (D + Hp) * 4
    lt = max(1, min(int(requested), vmem_budget_bytes // per_step_bytes, L))
    if lt >= L:
        return L                       # single chunk: block dim == full array dim
    lt = max(8, (lt // 8) * 8)         # keep the sublane dim of the block 8-aligned
    if lt >= L:
        return L
    return lt


def lstm_kernel(nvalid_ref, lens_ref, x_ref, wih_ref, whh_ref, b_ref,
                o_ref, hn_ref, h_sc, c_sc, *, lt, hp):
    """One (batch-tile, time-chunk) grid step of the masked LSTM.

    nvalid_ref: SMEM (n_b,) int32      #time-chunks containing >=1 valid step, per tile
    lens_ref:   VMEM (Bt, 1)  int32    valid lengths (resident across time chunks)
    x_ref:      VMEM (Bt, Lt, D) f32   input slab for this chunk (streamed)
    wih_ref:    VMEM (D, 4Hp) f32      input weights (resident)
    whh_ref:    VMEM (Hp, 4Hp) f32     recurrent weights (resident)
    b_ref:      VMEM (1, 4Hp) f32      bias (resident)
    o_ref:      VMEM (Bt, Lt, Hp) f32  per-step hidden outputs, batch-first (streamed)
    hn_ref:     VMEM (Bt, Hp) f32      final hidden state (resident per batch tile)
    h_sc, c_sc: VMEM (Bt, Hp) f32      recurrent state carried across time chunks
    """
    b = pl.program_id(0)       # batch tile  ("parallel")
    tc = pl.program_id(1)      # time chunk  ("arbitrary": serial recurrence)

    @pl.when(tc == 0)
    def _init():
        h_sc[...] = jnp.zeros_like(h_sc)
        c_sc[...] = jnp.zeros_like(c_sc)

    n_valid = nvalid_ref[b]

    @pl.when(tc >= n_valid)
    def _skip():
        # Every sequence in this batch tile has already ended: only zero-fill o
        # (pad_packed_sequence semantics); h/c stay frozen.
        o_ref[...] = jnp.zeros_like(o_ref)

    @pl.when(tc < n_valid)
    def _run():
        t0 = tc * lt
        bt = h_sc.shape[0]
        # Hoisted out of the unrolled loop (JAX does not CSE broadcast_in_dim).
        lens_b = jnp.broadcast_to(lens_ref[...], (bt, hp))        # (Bt, Hp) int32
        bias = jnp.broadcast_to(b_ref[...], (bt, 4 * hp))         # (Bt, 4Hp) f32

        def step(t, carry):
            x_t = x_ref[:, pl.ds(t, 1), :][:, 0, :]               # (Bt, D)
            # Input projection fused here (independent of h -> overlaps the MXU);
            # only the (Bt,Hp) x (Hp,4Hp) recurrent matmul is on the serial chain.
            gates = (jnp.dot(x_t, wih_ref[...],
                             preferred_element_type=jnp.float32)
                     + jnp.dot(h_sc[...], whh_ref[...],
                               preferred_element_type=jnp.float32)
                     + bias)                                       # (Bt, 4Hp) f32
            # PyTorch gate order i, f, g, o — lane-aligned slices (Hp % 128 == 0).
            i_g = jax.nn.sigmoid(gates[:, 0 * hp:1 * hp])
            f_g = jax.nn.sigmoid(gates[:, 1 * hp:2 * hp])
            g_g = jnp.tanh(gates[:, 2 * hp:3 * hp])
            o_g = jax.nn.sigmoid(gates[:, 3 * hp:4 * hp])

            c_new = f_g * c_sc[...] + i_g * g_g
            h_new = o_g * jnp.tanh(c_new)

            valid = lens_b > (t0 + t)                              # (Bt, Hp) mask
            h_sc[...] = jnp.where(valid, h_new, h_sc[...])
            c_sc[...] = jnp.where(valid, c_new, c_sc[...])
            o_ref[:, pl.ds(t, 1), :] = (
                jnp.where(valid, h_new, 0.0)[:, None, :].astype(o_ref.dtype))
            return carry

        # Bounded unroll: full unroll only for short chunks (review item).
        unroll = lt if lt <= 32 else 8
        lax.fori_loop(0, lt, step, 0, unroll=unroll)

    @pl.when(tc == pl.num_programs(1) - 1)
    def _finalize():
        hn_ref[...] = h_sc[...].astype(hn_ref.dtype)


def lstm_layer_forward(x, length_index, params, *, time_chunk=64):
    """x: (B, L, D) batch_first; length_index: (B, L) 0/1 mask."""
    B, L, D = x.shape
    H = params["w_hh_t"].shape[0]

    # ---- lane/sublane alignment ----
    Hp = _round_up(H, 128)
    n_b = _num_batch_tiles(B)
    Bp = _round_up(B, 8 * n_b)
    Bt = Bp // n_b

    budget = _vmem_budget_bytes()
    Lt = _pick_time_chunk(L, Bt, D, Hp, time_chunk, budget)
    Lp = _round_up(L, Lt)
    n_chunks = Lp // Lt

    lens = jnp.sum(length_index, axis=-1).astype(jnp.int32)                 # (B,)
    lens_flat = jnp.zeros((Bp,), jnp.int32).at[:B].set(lens)
    lens_p = lens_flat[:, None]                                             # (Bp, 1)
    # #time-chunks with at least one valid step, per batch tile (whole-chunk skip).
    nvalid = ((jnp.max(lens_flat.reshape(n_b, Bt), axis=1) + Lt - 1) // Lt
              ).astype(jnp.int32)                                           # (n_b,)

    # Per-gate padding of the packed (.., 4H) axis so each gate block is Hp wide.
    # Zero weights/bias on padded columns keep padded h/c exactly 0 through the
    # recurrence, so slicing [:H] at the end is exact.
    def pad_gates(w, lead, lead_pad):
        w4 = w.reshape(lead, 4, H).astype(jnp.float32)
        w4 = jnp.pad(w4, ((0, lead_pad - lead), (0, 0), (0, Hp - H)))
        return w4.reshape(lead_pad, 4 * Hp)

    w_ih_p = pad_gates(params["w_ih_t"], D, D)          # (D, 4Hp)
    w_hh_p = pad_gates(params["w_hh_t"], H, Hp)         # (Hp, 4Hp)
    b_p = pad_gates(params["b"], 1, 1)                  # (1, 4Hp)

    # Padded input stays batch-first: no wrapper transposes on either x or o.
    x_p = jnp.zeros((Bp, Lp, D), jnp.float32).at[:B, :L, :].set(
        x.astype(jnp.float32))

    kernel = functools.partial(lstm_kernel, lt=Lt, hp=Hp)

    grid_spec = pltpu.PrefetchScalarGridSpec(
        num_scalar_prefetch=1,
        grid=(n_b, n_chunks),
        in_specs=[
            pl.BlockSpec((Bt, 1), lambda b, t, nv: (b, 0)),             # lens (resident)
            pl.BlockSpec((Bt, Lt, D), lambda b, t, nv: (b, t, 0)),      # x (streamed)
            pl.BlockSpec((D, 4 * Hp), lambda b, t, nv: (0, 0)),         # W_ih (resident)
            pl.BlockSpec((Hp, 4 * Hp), lambda b, t, nv: (0, 0)),        # W_hh (resident)
            pl.BlockSpec((1, 4 * Hp), lambda b, t, nv: (0, 0)),         # bias (resident)
        ],
        out_specs=(
            pl.BlockSpec((Bt, Lt, Hp), lambda b, t, nv: (b, t, 0)),     # o (streamed)
            pl.BlockSpec((Bt, Hp), lambda b, t, nv: (b, 0)),            # h_n (resident)
        ),
        scratch_shapes=[
            pltpu.VMEM((Bt, Hp), jnp.float32),   # h state
            pltpu.VMEM((Bt, Hp), jnp.float32),   # c state
        ],
    )

    o_p, hn_p = pl.pallas_call(
        kernel,
        out_shape=(
            jax.ShapeDtypeStruct((Bp, Lp, Hp), jnp.float32),
            jax.ShapeDtypeStruct((Bp, Hp), jnp.float32),
        ),
        grid_spec=grid_spec,
        compiler_params=pltpu.CompilerParams(
            dimension_semantics=("parallel", "arbitrary"),
            vmem_limit_bytes=min(budget + (16 << 20), 96 << 20),
        ),
    )(nvalid, lens_p, x_p, w_ih_p, w_hh_p, b_p)

    # Output is already batch-first; only strip the alignment padding.
    return o_p[:B, :L, :H], hn_p[:B, :H]


def lstm_ref(x, length_index, params):
    """Pure-JAX f32 reference (lax.scan) for correctness check."""
    B, L, D = x.shape
    H = params["w_hh_t"].shape[0]
    lens = jnp.sum(length_index, axis=-1).astype(jnp.int32)

    def step(carry, inp):
        h, c = carry
        x_t, t = inp
        gates = x_t @ params["w_ih_t"] + h @ params["w_hh_t"] + params["b"]
        i_g = jax.nn.sigmoid(gates[:, 0:H])
        f_g = jax.nn.sigmoid(gates[:, H:2 * H])
        g_g = jnp.tanh(gates[:, 2 * H:3 * H])
        o_g = jax.nn.sigmoid(gates[:, 3 * H:4 * H])
        c_new = f_g * c + i_g * g_g
        h_new = o_g * jnp.tanh(c_new)
        valid = (lens > t)[:, None]
        h = jnp.where(valid, h_new, h)
        c = jnp.where(valid, c_new, c)
        out = jnp.where(valid, h_new, 0.0)
        return (h, c), out

    init = (jnp.zeros((B, H), jnp.float32), jnp.zeros((B, H), jnp.float32))
    (h, _), outs = lax.scan(step, init, (jnp.transpose(x, (1, 0, 2)), jnp.arange(L)))
    return jnp.transpose(outs, (1, 0, 2)), h


def init_params(key, in_dim, h_dim):
    # Deterministic synthetic init (PyTorch LSTM uses U(-1/sqrt(H), 1/sqrt(H))).
    k1, k2, k3, k4 = jax.random.split(key, 4)
    s = 1.0 / jnp.sqrt(h_dim)
    w_ih = jax.random.uniform(k1, (4 * h_dim, in_dim), jnp.float32, -s, s)
    w_hh = jax.random.uniform(k2, (4 * h_dim, h_dim), jnp.float32, -s, s)
    b_ih = jax.random.uniform(k3, (4 * h_dim,), jnp.float32, -s, s)
    b_hh = jax.random.uniform(k4, (4 * h_dim,), jnp.float32, -s, s)
    return {
        "w_ih_t": w_ih.T,                          # (D, 4H)
        "w_hh_t": w_hh.T,                          # (H, 4H)
        "b": (b_ih + b_hh).reshape(1, 4 * h_dim),  # (1, 4H)
    }


if __name__ == "__main__":
    B, L, D, H = 4, 16, 16, 32

    key = jax.random.PRNGKey(0)
    k_x, k_p = jax.random.split(key)

    x = jax.random.normal(k_x, (B, L, D), jnp.float32)
    params = init_params(k_p, D, H)

    # time_chunk=8 -> 2 time chunks: exercises chunk streaming and (2nd case) the
    # whole-chunk skip path for fully-padded chunks.
    fwd = jax.jit(functools.partial(lstm_layer_forward, time_chunk=8))

    for lengths in (jnp.array([16, 11, 5, 9], dtype=jnp.int32),   # spans both chunks
                    jnp.array([7, 3, 1, 8], dtype=jnp.int32)):    # 2nd chunk fully padded
        length_index = (jnp.arange(L)[None, :] < lengths[:, None]).astype(jnp.float32)

        o, h_n = fwd(x, length_index, params)
        jax.block_until_ready((o, h_n))

        o_ref, h_ref = lstm_ref(x, length_index, params)
        np.testing.assert_allclose(np.asarray(o), np.asarray(o_ref),
                                   atol=1e-2, rtol=1e-2)
        np.testing.assert_allclose(np.asarray(h_n), np.asarray(h_ref),
                                   atol=1e-2, rtol=1e-2)

    print("KERNEL_OK")
</pallas_src>

<mosaic_0001>
module attributes {stable_mosaic.version = 11 : i64} {
  func.func @lstm_kernel(%arg0: i32, %arg1: i32, %arg2: memref<1xi32, #tpu.memory_space<smem>>, %arg3: memref<8x1xi32, #tpu.memory_space<vmem>>, %arg4: memref<8x8x16xf32, #tpu.memory_space<vmem>>, %arg5: memref<16x512xf32, #tpu.memory_space<vmem>>, %arg6: memref<128x512xf32, #tpu.memory_space<vmem>>, %arg7: memref<1x512xf32, #tpu.memory_space<vmem>>, %arg8: memref<8x8x128xf32, #tpu.memory_space<vmem>>, %arg9: memref<8x128xf32, #tpu.memory_space<vmem>>, %arg10: memref<8x128xf32, #tpu.memory_space<vmem>>, %arg11: memref<8x128xf32, #tpu.memory_space<vmem>>) attributes {dimension_semantics = [#tpu.dimension_semantics<parallel>, #tpu.dimension_semantics<arbitrary>], iteration_bounds = array<i64: 1, 2>, scalar_prefetch = 1 : i64, scratch_operands = 2 : i64, tpu.core_type = #tpu.core_type<tc>, window_params = [{transform_indices = @transform_0, window_bounds = array<i64: 8, 1>}, {transform_indices = @transform_1, window_bounds = array<i64: 8, 8, 16>}, {pipeline_mode = #tpu.pipeline_mode<synchronous>, transform_indices = @transform_2, window_bounds = array<i64: 16, 512>}, {pipeline_mode = #tpu.pipeline_mode<synchronous>, transform_indices = @transform_3, window_bounds = array<i64: 128, 512>}, {pipeline_mode = #tpu.pipeline_mode<synchronous>, transform_indices = @transform_4, window_bounds = array<i64: 1, 512>}, {transform_indices = @transform_5, window_bounds = array<i64: 8, 8, 128>}, {transform_indices = @transform_6, window_bounds = array<i64: 8, 128>}]} {
    %c0_i32 = arith.constant 0 : i32
    %0 = arith.cmpi eq, %arg1, %c0_i32 : i32
    %1 = arith.extui %0 : i1 to i32
    %c0_i32_0 = arith.constant 0 : i32
    %2 = arith.cmpi ne, %1, %c0_i32_0 : i32
    scf.if %2 {
      %cst = arith.constant 0.000000e+00 : f32
      %14 = vector.broadcast %cst : f32 to vector<8x128xf32>
      %c0 = arith.constant 0 : index
      %c0_4 = arith.constant 0 : index
      %15 = vector.load %arg10[%c0, %c0_4] : memref<8x128xf32, #tpu.memory_space<vmem>>, vector<8x128xf32>
      tpu.vector_store %arg10[%c0, %c0_4], %14 {strides = array<i32>} : memref<8x128xf32, #tpu.memory_space<vmem>>, vector<8x128xf32>,
      %cst_5 = arith.constant 0.000000e+00 : f32
      %16 = vector.broadcast %cst_5 : f32 to vector<8x128xf32>
      %c0_6 = arith.constant 0 : index
      %c0_7 = arith.constant 0 : index
      %17 = vector.load %arg11[%c0_6, %c0_7] : memref<8x128xf32, #tpu.memory_space<vmem>>, vector<8x128xf32>
      tpu.vector_store %arg11[%c0_6, %c0_7], %16 {strides = array<i32>} : memref<8x128xf32, #tpu.memory_space<vmem>>, vector<8x128xf32>,
    } else {
    }
    %3 = arith.index_cast %arg0 : i32 to index
    %4 = memref.load %arg2[%3] : memref<1xi32, #tpu.memory_space<smem>>
    %5 = arith.cmpi sge, %arg1, %4 : i32
    %6 = arith.extui %5 : i1 to i32
    %c0_i32_1 = arith.constant 0 : i32
    %7 = arith.cmpi ne, %6, %c0_i32_1 : i32
    scf.if %7 {
      %cst = arith.constant 0.000000e+00 : f32
      %14 = vector.broadcast %cst : f32 to vector<8x8x128xf32>
      %c0 = arith.constant 0 : index
      %c0_4 = arith.constant 0 : index
      %c0_5 = arith.constant 0 : index
      %15 = vector.load %arg8[%c0, %c0_4, %c0_5] : memref<8x8x128xf32, #tpu.memory_space<vmem>>, vector<8x8x128xf32>
      tpu.vector_store %arg8[%c0, %c0_4, %c0_5], %14 {strides = array<i32>} : memref<8x8x128xf32, #tpu.memory_space<vmem>>, vector<8x8x128xf32>,
    } else {
    }
    %8 = arith.cmpi slt, %arg1, %4 : i32
    %9 = arith.extui %8 : i1 to i32
    %c0_i32_2 = arith.constant 0 : i32
    %10 = arith.cmpi ne, %9, %c0_i32_2 : i32
    scf.if %10 {
      %c8_i32 = arith.constant 8 : i32
      %14 = arith.muli %arg1, %c8_i32 : i32
      %c0 = arith.constant 0 : index
      %c0_4 = arith.constant 0 : index
      %15 = vector.load %arg3[%c0, %c0_4] : memref<8x1xi32, #tpu.memory_space<vmem>>, vector<8x1xi32>
      %16 = vector.shape_cast %15 : vector<8x1xi32> to vector<8x1xi32>
      %17 = vector.broadcast %16 : vector<8x1xi32> to vector<8x128xi32>
      %c0_5 = arith.constant 0 : index
      %c0_6 = arith.constant 0 : index
      %18 = vector.load %arg7[%c0_5, %c0_6] : memref<1x512xf32, #tpu.memory_space<vmem>>, vector<1x512xf32>
      %19 = vector.shape_cast %18 : vector<1x512xf32> to vector<1x512xf32>
      %20 = vector.broadcast %19 : vector<1x512xf32> to vector<8x512xf32>
      %c0_i32_7 = arith.constant 0 : i32
      %c0_8 = arith.constant 0 : index
      %21 = arith.index_cast %c0_i32_7 : i32 to index
      %c0_9 = arith.constant 0 : index
      %22 = vector.load %arg4[%c0_8, %21, %c0_9] : memref<8x8x16xf32, #tpu.memory_space<vmem>>, vector<8x1x16xf32>
      %23 = vector.shape_cast %22 : vector<8x1x16xf32> to vector<8x16xf32>
      %c0_10 = arith.constant 0 : index
      %c0_11 = arith.constant 0 : index
      %24 = vector.load %arg5[%c0_10, %c0_11] : memref<16x512xf32, #tpu.memory_space<vmem>>, vector<16x512xf32>
      %cst = arith.constant dense<0.000000e+00> : vector<8x512xf32>
      %25 = tpu.matmul %23, %24, %cst {dimension_numbers = #tpu.dot_dimension_numbers<[1], [0], [0], [1], [0, 0, 1, 1], [], []>} : vector<8x16xf32>, vector<16x512xf32>, vector<8x512xf32> -> vector<8x512xf32>
      %c0_12 = arith.constant 0 : index
      %c0_13 = arith.constant 0 : index
      %26 = vector.load %arg10[%c0_12, %c0_13] : memref<8x128xf32, #tpu.memory_space<vmem>>, vector<8x128xf32>
      %c0_14 = arith.constant 0 : index
      %c0_15 = arith.constant 0 : index
      %27 = vector.load %arg6[%c0_14, %c0_15] : memref<128x512xf32, #tpu.memory_space<vmem>>, vector<128x512xf32>
      %cst_16 = arith.constant dense<0.000000e+00> : vector<8x512xf32>
      %28 = tpu.matmul %26, %27, %cst_16 {dimension_numbers = #tpu.dot_dimension_numbers<[1], [0], [0], [1], [0, 0, 1, 1], [], []>} : vector<8x128xf32>, vector<128x512xf32>, vector<8x512xf32> -> vector<8x512xf32>
      %29 = arith.addf %25, %28 : vector<8x512xf32>
      %30 = arith.addf %29, %20 : vector<8x512xf32>
      %31 = vector.extract_strided_slice %30 {offsets = [0, 0], sizes = [8, 128], strides = [1, 1]} : vector<8x512xf32> to vector<8x128xf32>
      %32 = arith.negf %31 : vector<8x128xf32>
      %33 = math.exp %32 : vector<8x128xf32>
      %cst_17 = arith.constant 1.000000e+00 : f32
      %34 = vector.broadcast %cst_17 : f32 to vector<8x128xf32>
      %35 = arith.addf %34, %33 : vector<8x128xf32>
      %36 = arith.divf %34, %35 : vector<8x128xf32>
      %37 = vector.extract_strided_slice %30 {offsets = [0, 128], sizes = [8, 128], strides = [1, 1]} : vector<8x512xf32> to vector<8x128xf32>
      %38 = arith.negf %37 : vector<8x128xf32>
      %39 = math.exp %38 : vector<8x128xf32>
      %cst_18 = arith.constant 1.000000e+00 : f32
      %40 = vector.broadcast %cst_18 : f32 to vector<8x128xf32>
      %41 = arith.addf %40, %39 : vector<8x128xf32>
      %42 = arith.divf %40, %41 : vector<8x128xf32>
      %43 = vector.extract_strided_slice %30 {offsets = [0, 256], sizes = [8, 128], strides = [1, 1]} : vector<8x512xf32> to vector<8x128xf32>
      %44 = math.tanh %43 : vector<8x128xf32>
      %45 = vector.extract_strided_slice %30 {offsets = [0, 384], sizes = [8, 128], strides = [1, 1]} : vector<8x512xf32> to vector<8x128xf32>
      %46 = arith.negf %45 : vector<8x128xf32>
      %47 = math.exp %46 : vector<8x128xf32>
      %cst_19 = arith.constant 1.000000e+00 : f32
      %48 = vector.broadcast %cst_19 : f32 to vector<8x128xf32>
      %49 = arith.addf %48, %47 : vector<8x128xf32>
      %50 = arith.divf %48, %49 : vector<8x128xf32>
      %c0_20 = arith.constant 0 : index
      %c0_21 = arith.constant 0 : index
      %51 = vector.load %arg11[%c0_20, %c0_21] : memref<8x128xf32, #tpu.memory_space<vmem>>, vector<8x128xf32>
      %52 = arith.mulf %42, %51 : vector<8x128xf32>
      %53 = arith.mulf %36, %44 : vector<8x128xf32>
      %54 = arith.addf %52, %53 : vector<8x128xf32>
      %55 = math.tanh %54 : vector<8x128xf32>
      %56 = arith.mulf %50, %55 : vector<8x128xf32>
      %57 = arith.addi %14, %c0_i32_7 : i32
      %58 = vector.broadcast %57 : i32 to vector<8x128xi32>
      %59 = arith.cmpi sgt, %17, %58 : vector<8x128xi32>
      %c0_22 = arith.constant 0 : index
      %c0_23 = arith.constant 0 : index
      %60 = vector.load %arg10[%c0_22, %c0_23] : memref<8x128xf32, #tpu.memory_space<vmem>>, vector<8x128xf32>
      %61 = arith.select %59, %56, %60 : vector<8x128xi1>, vector<8x128xf32>
      %c0_24 = arith.constant 0 : index
      %c0_25 = arith.constant 0 : index
      %62 = vector.load %arg10[%c0_24, %c0_25] : memref<8x128xf32, #tpu.memory_space<vmem>>, vector<8x128xf32>
      tpu.vector_store %arg10[%c0_24, %c0_25], %61 {strides = array<i32>} : memref<8x128xf32, #tpu.memory_space<vmem>>, vector<8x128xf32>,
      %c0_26 = arith.constant 0 : index
      %c0_27 = arith.constant 0 : index
      %63 = vector.load %arg11[%c0_26, %c0_27] : memref<8x128xf32, #tpu.memory_space<vmem>>, vector<8x128xf32>
      %64 = arith.select %59, %54, %63 : vector<8x128xi1>, vector<8x128xf32>
      %c0_28 = arith.constant 0 : index
      %c0_29 = arith.constant 0 : index
      %65 = vector.load %arg11[%c0_28, %c0_29] : memref<8x128xf32, #tpu.memory_space<vmem>>, vector<8x128xf32>
      tpu.vector_store %arg11[%c0_28, %c0_29], %64 {strides = array<i32>} : memref<8x128xf32, #tpu.memory_space<vmem>>, vector<8x128xf32>,
      %cst_30 = arith.constant 0.000000e+00 : f32
      %66 = vector.broadcast %cst_30 : f32 to vector<8x128xf32>
      %67 = arith.select %59, %56, %66 : vector<8x128xi1>, vector<8x128xf32>
      %68 = vector.shape_cast %67 : vector<8x128xf32> to vector<8x1x128xf32>
      %c0_31 = arith.constant 0 : index
      %69 = arith.index_cast %c0_i32_7 : i32 to index
      %c0_32 = arith.constant 0 : index
      %70 = vector.load %arg8[%c0_31, %69, %c0_32] : memref<8x8x128xf32, #tpu.memory_space<vmem>>, vector<8x1x128xf32>
      tpu.vector_store %arg8[%c0_31, %69, %c0_32], %68 {strides = array<i32>} : memref<8x8x128xf32, #tpu.memory_space<vmem>>, vector<8x1x128xf32>,
      %c1_i32_33 = arith.constant 1 : i32
      %c0_34 = arith.constant 0 : index
      %71 = arith.index_cast %c1_i32_33 : i32 to index
      %c0_35 = arith.constant 0 : index
      %72 = vector.load %arg4[%c0_34, %71, %c0_35] : memref<8x8x16xf32, #tpu.memory_space<vmem>>, vector<8x1x16xf32>
      %73 = vector.shape_cast %72 : vector<8x1x16xf32> to vector<8x16xf32>
      %c0_36 = arith.constant 0 : index
      %c0_37 = arith.constant 0 : index
      %74 = vector.load %arg5[%c0_36, %c0_37] : memref<16x512xf32, #tpu.memory_space<vmem>>, vector<16x512xf32>
      %cst_38 = arith.constant dense<0.000000e+00> : vector<8x512xf32>
      %75 = tpu.matmul %73, %74, %cst_38 {dimension_numbers = #tpu.dot_dimension_numbers<[1], [0], [0], [1], [0, 0, 1, 1], [], []>} : vector<8x16xf32>, vector<16x512xf32>, vector<8x512xf32> -> vector<8x512xf32>
      %c0_39 = arith.constant 0 : index
      %c0_40 = arith.constant 0 : index
      %76 = vector.load %arg10[%c0_39, %c0_40] : memref<8x128xf32, #tpu.memory_space<vmem>>, vector<8x128xf32>
      %c0_41 = arith.constant 0 : index
      %c0_42 = arith.constant 0 : index
      %77 = vector.load %arg6[%c0_41, %c0_42] : memref<128x512xf32, #tpu.memory_space<vmem>>, vector<128x512xf32>
      %cst_43 = arith.constant dense<0.000000e+00> : vector<8x512xf32>
      %78 = tpu.matmul %76, %77, %cst_43 {dimension_numbers = #tpu.dot_dimension_numbers<[1], [0], [0], [1], [0, 0, 1, 1], [], []>} : vector<8x128xf32>, vector<128x512xf32>, vector<8x512xf32> -> vector<8x512xf32>
      %79 = arith.addf %75, %78 : vector<8x512xf32>
      %80 = arith.addf %79, %20 : vector<8x512xf32>
      %81 = vector.extract_strided_slice %80 {offsets = [0, 0], sizes = [8, 128], strides = [1, 1]} : vector<8x512xf32> to vector<8x128xf32>
      %82 = arith.negf %81 : vector<8x128xf32>
      %83 = math.exp %82 : vector<8x128xf32>
      %cst_44 = arith.constant 1.000000e+00 : f32
      %84 = vector.broadcast %cst_44 : f32 to vector<8x128xf32>
      %85 = arith.addf %84, %83 : vector<8x128xf32>
      %86 = arith.divf %84, %85 : vector<8x128xf32>
      %87 = vector.extract_strided_slice %80 {offsets = [0, 128], sizes = [8, 128], strides = [1, 1]} : vector<8x512xf32> to vector<8x128xf32>
      %88 = arith.negf %87 : vector<8x128xf32>
      %89 = math.exp %88 : vector<8x128xf32>
      %cst_45 = arith.constant 1.000000e+00 : f32
      %90 = vector.broadcast %cst_45 : f32 to vector<8x128xf32>
      %91 = arith.addf %90, %89 : vector<8x128xf32>
      %92 = arith.divf %90, %91 : vector<8x128xf32>
      %93 = vector.extract_strided_slice %80 {offsets = [0, 256], sizes = [8, 128], strides = [1, 1]} : vector<8x512xf32> to vector<8x128xf32>
      %94 = math.tanh %93 : vector<8x128xf32>
      %95 = vector.extract_strided_slice %80 {offsets = [0, 384], sizes = [8, 128], strides = [1, 1]} : vector<8x512xf32> to vector<8x128xf32>
      %96 = arith.negf %95 : vector<8x128xf32>
      %97 = math.exp %96 : vector<8x128xf32>
      %cst_46 = arith.constant 1.000000e+00 : f32
      %98 = vector.broadcast %cst_46 : f32 to vector<8x128xf32>
      %99 = arith.addf %98, %97 : vector<8x128xf32>
      %100 = arith.divf %98, %99 : vector<8x128xf32>
      %c0_47 = arith.constant 0 : index
      %c0_48 = arith.constant 0 : index
      %101 = vector.load %arg11[%c0_47, %c0_48] : memref<8x128xf32, #tpu.memory_space<vmem>>, vector<8x128xf32>
      %102 = arith.mulf %92, %101 : vector<8x128xf32>
      %103 = arith.mulf %86, %94 : vector<8x128xf32>
      %104 = arith.addf %102, %103 : vector<8x128xf32>
      %105 = math.tanh %104 : vector<8x128xf32>
      %106 = arith.mulf %100, %105 : vector<8x128xf32>
      %107 = arith.addi %14, %c1_i32_33 : i32
      %108 = vector.broadcast %107 : i32 to vector<8x128xi32>
      %109 = arith.cmpi sgt, %17, %108 : vector<8x128xi32>
      %c0_49 = arith.constant 0 : index
      %c0_50 = arith.constant 0 : index
      %110 = vector.load %arg10[%c0_49, %c0_50] : memref<8x128xf32, #tpu.memory_space<vmem>>, vector<8x128xf32>
      %111 = arith.select %109, %106, %110 : vector<8x128xi1>, vector<8x128xf32>
      %c0_51 = arith.constant 0 : index
      %c0_52 = arith.constant 0 : index
      %112 = vector.load %arg10[%c0_51, %c0_52] : memref<8x128xf32, #tpu.memory_space<vmem>>, vector<8x128xf32>
      tpu.vector_store %arg10[%c0_51, %c0_52], %111 {strides = array<i32>} : memref<8x128xf32, #tpu.memory_space<vmem>>, vector<8x128xf32>,
      %c0_53 = arith.constant 0 : index
      %c0_54 = arith.constant 0 : index
      %113 = vector.load %arg11[%c0_53, %c0_54] : memref<8x128xf32, #tpu.memory_space<vmem>>, vector<8x128xf32>
      %114 = arith.select %109, %104, %113 : vector<8x128xi1>, vector<8x128xf32>
      %c0_55 = arith.constant 0 : index
      %c0_56 = arith.constant 0 : index
      %115 = vector.load %arg11[%c0_55, %c0_56] : memref<8x128xf32, #tpu.memory_space<vmem>>, vector<8x128xf32>
      tpu.vector_store %arg11[%c0_55, %c0_56], %114 {strides = array<i32>} : memref<8x128xf32, #tpu.memory_space<vmem>>, vector<8x128xf32>,
      %cst_57 = arith.constant 0.000000e+00 : f32
      %116 = vector.broadcast %cst_57 : f32 to vector<8x128xf32>
      %117 = arith.select %109, %106, %116 : vector<8x128xi1>, vector<8x128xf32>
      %118 = vector.shape_cast %117 : vector<8x128xf32> to vector<8x1x128xf32>
      %c0_58 = arith.constant 0 : index
      %119 = arith.index_cast %c1_i32_33 : i32 to index
      %c0_59 = arith.constant 0 : index
      %120 = vector.load %arg8[%c0_58, %119, %c0_59] : memref<8x8x128xf32, #tpu.memory_space<vmem>>, vector<8x1x128xf32>
      tpu.vector_store %arg8[%c0_58, %119, %c0_59], %118 {strides = array<i32>} : memref<8x8x128xf32, #tpu.memory_space<vmem>>, vector<8x1x128xf32>,
      %c2_i32 = arith.constant 2 : i32
      %c0_60 = arith.constant 0 : index
      %121 = arith.index_cast %c2_i32 : i32 to index
      %c0_61 = arith.constant 0 : index
      %122 = vector.load %arg4[%c0_60, %121, %c0_61] : memref<8x8x16xf32, #tpu.memory_space<vmem>>, vector<8x1x16xf32>
      %123 = vector.shape_cast %122 : vector<8x1x16xf32> to vector<8x16xf32>
      %c0_62 = arith.constant 0 : index
      %c0_63 = arith.constant 0 : index
      %124 = vector.load %arg5[%c0_62, %c0_63] : memref<16x512xf32, #tpu.memory_space<vmem>>, vector<16x512xf32>
      %cst_64 = arith.constant dense<0.000000e+00> : vector<8x512xf32>
      %125 = tpu.matmul %123, %124, %cst_64 {dimension_numbers = #tpu.dot_dimension_numbers<[1], [0], [0], [1], [0, 0, 1, 1], [], []>} : vector<8x16xf32>, vector<16x512xf32>, vector<8x512xf32> -> vector<8x512xf32>
      %c0_65 = arith.constant 0 : index
      %c0_66 = arith.constant 0 : index
      %126 = vector.load %arg10[%c0_65, %c0_66] : memref<8x128xf32, #tpu.memory_space<vmem>>, vector<8x128xf32>
      %c0_67 = arith.constant 0 : index
      %c0_68 = arith.constant 0 : index
      %127 = vector.load %arg6[%c0_67, %c0_68] : memref<128x512xf32, #tpu.memory_space<vmem>>, vector<128x512xf32>
      %cst_69 = arith.constant dense<0.000000e+00> : vector<8x512xf32>
      %128 = tpu.matmul %126, %127, %cst_69 {dimension_numbers = #tpu.dot_dimension_numbers<[1], [0], [0], [1], [0, 0, 1, 1], [], []>} : vector<8x128xf32>, vector<128x512xf32>, vector<8x512xf32> -> vector<8x512xf32>
      %129 = arith.addf %125, %128 : vector<8x512xf32>
      %130 = arith.addf %129, %20 : vector<8x512xf32>
      %131 = vector.extract_strided_slice %130 {offsets = [0, 0], sizes = [8, 128], strides = [1, 1]} : vector<8x512xf32> to vector<8x128xf32>
      %132 = arith.negf %131 : vector<8x128xf32>
      %133 = math.exp %132 : vector<8x128xf32>
      %cst_70 = arith.constant 1.000000e+00 : f32
      %134 = vector.broadcast %cst_70 : f32 to vector<8x128xf32>
      %135 = arith.addf %134, %133 : vector<8x128xf32>
      %136 = arith.divf %134, %135 : vector<8x128xf32>
      %137 = vector.extract_strided_slice %130 {offsets = [0, 128], sizes = [8, 128], strides = [1, 1]} : vector<8x512xf32> to vector<8x128xf32>
      %138 = arith.negf %137 : vector<8x128xf32>
      %139 = math.exp %138 : vector<8x128xf32>
      %cst_71 = arith.constant 1.000000e+00 : f32
      %140 = vector.broadcast %cst_71 : f32 to vector<8x128xf32>
      %141 = arith.addf %140, %139 : vector<8x128xf32>
      %142 = arith.divf %140, %141 : vector<8x128xf32>
      %143 = vector.extract_strided_slice %130 {offsets = [0, 256], sizes = [8, 128], strides = [1, 1]} : vector<8x512xf32> to vector<8x128xf32>
      %144 = math.tanh %143 : vector<8x128xf32>
      %145 = vector.extract_strided_slice %130 {offsets = [0, 384], sizes = [8, 128], strides = [1, 1]} : vector<8x512xf32> to vector<8x128xf32>
      %146 = arith.negf %145 : vector<8x128xf32>
      %147 = math.exp %146 : vector<8x128xf32>
      %cst_72 = arith.constant 1.000000e+00 : f32
      %148 = vector.broadcast %cst_72 : f32 to vector<8x128xf32>
      %149 = arith.addf %148, %147 : vector<8x128xf32>
      %150 = arith.divf %148, %149 : vector<8x128xf32>
      %c0_73 = arith.constant 0 : index
      %c0_74 = arith.constant 0 : index
      %151 = vector.load %arg11[%c0_73, %c0_74] : memref<8x128xf32, #tpu.memory_space<vmem>>, vector<8x128xf32>
      %152 = arith.mulf %142, %151 : vector<8x128xf32>
      %153 = arith.mulf %136, %144 : vector<8x128xf32>
      %154 = arith.addf %152, %153 : vector<8x128xf32>
      %155 = math.tanh %154 : vector<8x128xf32>
      %156 = arith.mulf %150, %155 : vector<8x128xf32>
      %157 = arith.addi %14, %c2_i32 : i32
      %158 = vector.broadcast %157 : i32 to vector<8x128xi32>
      %159 = arith.cmpi sgt, %17, %158 : vector<8x128xi32>
      %c0_75 = arith.constant 0 : index
      %c0_76 = arith.constant 0 : index
      %160 = vector.load %arg10[%c0_75, %c0_76] : memref<8x128xf32, #tpu.memory_space<vmem>>, vector<8x128xf32>
      %161 = arith.select %159, %156, %160 : vector<8x128xi1>, vector<8x128xf32>
      %c0_77 = arith.constant 0 : index
      %c0_78 = arith.constant 0 : index
      %162 = vector.load %arg10[%c0_77, %c0_78] : memref<8x128xf32, #tpu.memory_space<vmem>>, vector<8x128xf32>
      tpu.vector_store %arg10[%c0_77, %c0_78], %161 {strides = array<i32>} : memref<8x128xf32, #tpu.memory_space<vmem>>, vector<8x128xf32>,
      %c0_79 = arith.constant 0 : index
      %c0_80 = arith.constant 0 : index
      %163 = vector.load %arg11[%c0_79, %c0_80] : memref<8x128xf32, #tpu.memory_space<vmem>>, vector<8x128xf32>
      %164 = arith.select %159, %154, %163 : vector<8x128xi1>, vector<8x128xf32>
      %c0_81 = arith.constant 0 : index
      %c0_82 = arith.constant 0 : index
      %165 = vector.load %arg11[%c0_81, %c0_82] : memref<8x128xf32, #tpu.memory_space<vmem>>, vector<8x128xf32>
      tpu.vector_store %arg11[%c0_81, %c0_82], %164 {strides = array<i32>} : memref<8x128xf32, #tpu.memory_space<vmem>>, vector<8x128xf32>,
      %cst_83 = arith.constant 0.000000e+00 : f32
      %166 = vector.broadcast %cst_83 : f32 to vector<8x128xf32>
      %167 = arith.select %159, %156, %166 : vector<8x128xi1>, vector<8x128xf32>
      %168 = vector.shape_cast %167 : vector<8x128xf32> to vector<8x1x128xf32>
      %c0_84 = arith.constant 0 : index
      %169 = arith.index_cast %c2_i32 : i32 to index
      %c0_85 = arith.constant 0 : index
      %170 = vector.load %arg8[%c0_84, %169, %c0_85] : memref<8x8x128xf32, #tpu.memory_space<vmem>>, vector<8x1x128xf32>
      tpu.vector_store %arg8[%c0_84, %169, %c0_85], %168 {strides = array<i32>} : memref<8x8x128xf32, #tpu.memory_space<vmem>>, vector<8x1x128xf32>,
      %c3_i32 = arith.constant 3 : i32
      %c0_86 = arith.constant 0 : index
      %171 = arith.index_cast %c3_i32 : i32 to index
      %c0_87 = arith.constant 0 : index
      %172 = vector.load %arg4[%c0_86, %171, %c0_87] : memref<8x8x16xf32, #tpu.memory_space<vmem>>, vector<8x1x16xf32>
      %173 = vector.shape_cast %172 : vector<8x1x16xf32> to vector<8x16xf32>
      %c0_88 = arith.constant 0 : index
      %c0_89 = arith.constant 0 : index
      %174 = vector.load %arg5[%c0_88, %c0_89] : memref<16x512xf32, #tpu.memory_space<vmem>>, vector<16x512xf32>
      %cst_90 = arith.constant dense<0.000000e+00> : vector<8x512xf32>
      %175 = tpu.matmul %173, %174, %cst_90 {dimension_numbers = #tpu.dot_dimension_numbers<[1], [0], [0], [1], [0, 0, 1, 1], [], []>} : vector<8x16xf32>, vector<16x512xf32>, vector<8x512xf32> -> vector<8x512xf32>
      %c0_91 = arith.constant 0 : index
      %c0_92 = arith.constant 0 : index
      %176 = vector.load %arg10[%c0_91, %c0_92] : memref<8x128xf32, #tpu.memory_space<vmem>>, vector<8x128xf32>
      %c0_93 = arith.constant 0 : index
      %c0_94 = arith.constant 0 : index
      %177 = vector.load %arg6[%c0_93, %c0_94] : memref<128x512xf32, #tpu.memory_space<vmem>>, vector<128x512xf32>
      %cst_95 = arith.constant dense<0.000000e+00> : vector<8x512xf32>
      %178 = tpu.matmul %176, %177, %cst_95 {dimension_numbers = #tpu.dot_dimension_numbers<[1], [0], [0], [1], [0, 0, 1, 1], [], []>} : vector<8x128xf32>, vector<128x512xf32>, vector<8x512xf32> -> vector<8x512xf32>
      %179 = arith.addf %175, %178 : vector<8x512xf32>
      %180 = arith.addf %179, %20 : vector<8x512xf32>
      %181 = vector.extract_strided_slice %180 {offsets = [0, 0], sizes = [8, 128], strides = [1, 1]} : vector<8x512xf32> to vector<8x128xf32>
      %182 = arith.negf %181 : vector<8x128xf32>
      %183 = math.exp %182 : vector<8x128xf32>
      %cst_96 = arith.constant 1.000000e+00 : f32
      %184 = vector.broadcast %cst_96 : f32 to vector<8x128xf32>
      %185 = arith.addf %184, %183 : vector<8x128xf32>
      %186 = arith.divf %184, %185 : vector<8x128xf32>
      %187 = vector.extract_strided_slice %180 {offsets = [0, 128], sizes = [8, 128], strides = [1, 1]} : vector<8x512xf32> to vector<8x128xf32>
      %188 = arith.negf %187 : vector<8x128xf32>
      %189 = math.exp %188 : vector<8x128xf32>
      %cst_97 = arith.constant 1.000000e+00 : f32
      %190 = vector.broadcast %cst_97 : f32 to vector<8x128xf32>
      %191 = arith.addf %190, %189 : vector<8x128xf32>
      %192 = arith.divf %190, %191 : vector<8x128xf32>
      %193 = vector.extract_strided_slice %180 {offsets = [0, 256], sizes = [8, 128], strides = [1, 1]} : vector<8x512xf32> to vector<8x128xf32>
      %194 = math.tanh %193 : vector<8x128xf32>
      %195 = vector.extract_strided_slice %180 {offsets = [0, 384], sizes = [8, 128], strides = [1, 1]} : vector<8x512xf32> to vector<8x128xf32>
      %196 = arith.negf %195 : vector<8x128xf32>
      %197 = math.exp %196 : vector<8x128xf32>
      %cst_98 = arith.constant 1.000000e+00 : f32
      %198 = vector.broadcast %cst_98 : f32 to vector<8x128xf32>
      %199 = arith.addf %198, %197 : vector<8x128xf32>
      %200 = arith.divf %198, %199 : vector<8x128xf32>
      %c0_99 = arith.constant 0 : index
      %c0_100 = arith.constant 0 : index
      %201 = vector.load %arg11[%c0_99, %c0_100] : memref<8x128xf32, #tpu.memory_space<vmem>>, vector<8x128xf32>
      %202 = arith.mulf %192, %201 : vector<8x128xf32>
      %203 = arith.mulf %186, %194 : vector<8x128xf32>
      %204 = arith.addf %202, %203 : vector<8x128xf32>
      %205 = math.tanh %204 : vector<8x128xf32>
      %206 = arith.mulf %200, %205 : vector<8x128xf32>
      %207 = arith.addi %14, %c3_i32 : i32
      %208 = vector.broadcast %207 : i32 to vector<8x128xi32>
      %209 = arith.cmpi sgt, %17, %208 : vector<8x128xi32>
      %c0_101 = arith.constant 0 : index
      %c0_102 = arith.constant 0 : index
      %210 = vector.load %arg10[%c0_101, %c0_102] : memref<8x128xf32, #tpu.memory_space<vmem>>, vector<8x128xf32>
      %211 = arith.select %209, %206, %210 : vector<8x128xi1>, vector<8x128xf32>
      %c0_103 = arith.constant 0 : index
      %c0_104 = arith.constant 0 : index
      %212 = vector.load %arg10[%c0_103, %c0_104] : memref<8x128xf32, #tpu.memory_space<vmem>>, vector<8x128xf32>
      tpu.vector_store %arg10[%c0_103, %c0_104], %211 {strides = array<i32>} : memref<8x128xf32, #tpu.memory_space<vmem>>, vector<8x128xf32>,
      %c0_105 = arith.constant 0 : index
      %c0_106 = arith.constant 0 : index
      %213 = vector.load %arg11[%c0_105, %c0_106] : memref<8x128xf32, #tpu.memory_space<vmem>>, vector<8x128xf32>
      %214 = arith.select %209, %204, %213 : vector<8x128xi1>, vector<8x128xf32>
      %c0_107 = arith.constant 0 : index
      %c0_108 = arith.constant 0 : index
      %215 = vector.load %arg11[%c0_107, %c0_108] : memref<8x128xf32, #tpu.memory_space<vmem>>, vector<8x128xf32>
      tpu.vector_store %arg11[%c0_107, %c0_108], %214 {strides = array<i32>} : memref<8x128xf32, #tpu.memory_space<vmem>>, vector<8x128xf32>,
      %cst_109 = arith.constant 0.000000e+00 : f32
      %216 = vector.broadcast %cst_109 : f32 to vector<8x128xf32>
      %217 = arith.select %209, %206, %216 : vector<8x128xi1>, vector<8x128xf32>
      %218 = vector.shape_cast %217 : vector<8x128xf32> to vector<8x1x128xf32>
      %c0_110 = arith.constant 0 : index
      %219 = arith.index_cast %c3_i32 : i32 to index
      %c0_111 = arith.constant 0 : index
      %220 = vector.load %arg8[%c0_110, %219, %c0_111] : memref<8x8x128xf32, #tpu.memory_space<vmem>>, vector<8x1x128xf32>
      tpu.vector_store %arg8[%c0_110, %219, %c0_111], %218 {strides = array<i32>} : memref<8x8x128xf32, #tpu.memory_space<vmem>>, vector<8x1x128xf32>,
      %c4_i32 = arith.constant 4 : i32
      %c0_112 = arith.constant 0 : index
      %221 = arith.index_cast %c4_i32 : i32 to index
      %c0_113 = arith.constant 0 : index
      %222 = vector.load %arg4[%c0_112, %221, %c0_113] : memref<8x8x16xf32, #tpu.memory_space<vmem>>, vector<8x1x16xf32>
      %223 = vector.shape_cast %222 : vector<8x1x16xf32> to vector<8x16xf32>
      %c0_114 = arith.constant 0 : index
      %c0_115 = arith.constant 0 : index
      %224 = vector.load %arg5[%c0_114, %c0_115] : memref<16x512xf32, #tpu.memory_space<vmem>>, vector<16x512xf32>
      %cst_116 = arith.constant dense<0.000000e+00> : vector<8x512xf32>
      %225 = tpu.matmul %223, %224, %cst_116 {dimension_numbers = #tpu.dot_dimension_numbers<[1], [0], [0], [1], [0, 0, 1, 1], [], []>} : vector<8x16xf32>, vector<16x512xf32>, vector<8x512xf32> -> vector<8x512xf32>
      %c0_117 = arith.constant 0 : index
      %c0_118 = arith.constant 0 : index
      %226 = vector.load %arg10[%c0_117, %c0_118] : memref<8x128xf32, #tpu.memory_space<vmem>>, vector<8x128xf32>
      %c0_119 = arith.constant 0 : index
      %c0_120 = arith.constant 0 : index
      %227 = vector.load %arg6[%c0_119, %c0_120] : memref<128x512xf32, #tpu.memory_space<vmem>>, vector<128x512xf32>
      %cst_121 = arith.constant dense<0.000000e+00> : vector<8x512xf32>
      %228 = tpu.matmul %226, %227, %cst_121 {dimension_numbers = #tpu.dot_dimension_numbers<[1], [0], [0], [1], [0, 0, 1, 1], [], []>} : vector<8x128xf32>, vector<128x512xf32>, vector<8x512xf32> -> vector<8x512xf32>
      %229 = arith.addf %225, %228 : vector<8x512xf32>
      %230 = arith.addf %229, %20 : vector<8x512xf32>
      %231 = vector.extract_strided_slice %230 {offsets = [0, 0], sizes = [8, 128], strides = [1, 1]} : vector<8x512xf32> to vector<8x128xf32>
      %232 = arith.negf %231 : vector<8x128xf32>
      %233 = math.exp %232 : vector<8x128xf32>
      %cst_122 = arith.constant 1.000000e+00 : f32
      %234 = vector.broadcast %cst_122 : f32 to vector<8x128xf32>
      %235 = arith.addf %234, %233 : vector<8x128xf32>
      %236 = arith.divf %234, %235 : vector<8x128xf32>
      %237 = vector.extract_strided_slice %230 {offsets = [0, 128], sizes = [8, 128], strides = [1, 1]} : vector<8x512xf32> to vector<8x128xf32>
      %238 = arith.negf %237 : vector<8x128xf32>
      %239 = math.exp %238 : vector<8x128xf32>
      %cst_123 = arith.constant 1.000000e+00 : f32
      %240 = vector.broadcast %cst_123 : f32 to vector<8x128xf32>
      %241 = arith.addf %240, %239 : vector<8x128xf32>
      %242 = arith.divf %240, %241 : vector<8x128xf32>
      %243 = vector.extract_strided_slice %230 {offsets = [0, 256], sizes = [8, 128], strides = [1, 1]} : vector<8x512xf32> to vector<8x128xf32>
      %244 = math.tanh %243 : vector<8x128xf32>
      %245 = vector.extract_strided_slice %230 {offsets = [0, 384], sizes = [8, 128], strides = [1, 1]} : vector<8x512xf32> to vector<8x128xf32>
      %246 = arith.negf %245 : vector<8x128xf32>
      %247 = math.exp %246 : vector<8x128xf32>
      %cst_124 = arith.constant 1.000000e+00 : f32
      %248 = vector.broadcast %cst_124 : f32 to vector<8x128xf32>
      %249 = arith.addf %248, %247 : vector<8x128xf32>
      %250 = arith.divf %248, %249 : vector<8x128xf32>
      %c0_125 = arith.constant 0 : index
      %c0_126 = arith.constant 0 : index
      %251 = vector.load %arg11[%c0_125, %c0_126] : memref<8x128xf32, #tpu.memory_space<vmem>>, vector<8x128xf32>
      %252 = arith.mulf %242, %251 : vector<8x128xf32>
      %253 = arith.mulf %236, %244 : vector<8x128xf32>
      %254 = arith.addf %252, %253 : vector<8x128xf32>
      %255 = math.tanh %254 : vector<8x128xf32>
      %256 = arith.mulf %250, %255 : vector<8x128xf32>
      %257 = arith.addi %14, %c4_i32 : i32
      %258 = vector.broadcast %257 : i32 to vector<8x128xi32>
      %259 = arith.cmpi sgt, %17, %258 : vector<8x128xi32>
      %c0_127 = arith.constant 0 : index
      %c0_128 = arith.constant 0 : index
      %260 = vector.load %arg10[%c0_127, %c0_128] : memref<8x128xf32, #tpu.memory_space<vmem>>, vector<8x128xf32>
      %261 = arith.select %259, %256, %260 : vector<8x128xi1>, vector<8x128xf32>
      %c0_129 = arith.constant 0 : index
      %c0_130 = arith.constant 0 : index
      %262 = vector.load %arg10[%c0_129, %c0_130] : memref<8x128xf32, #tpu.memory_space<vmem>>, vector<8x128xf32>
      tpu.vector_store %arg10[%c0_129, %c0_130], %261 {strides = array<i32>} : memref<8x128xf32, #tpu.memory_space<vmem>>, vector<8x128xf32>,
      %c0_131 = arith.constant 0 : index
      %c0_132 = arith.constant 0 : index
      %263 = vector.load %arg11[%c0_131, %c0_132] : memref<8x128xf32, #tpu.memory_space<vmem>>, vector<8x128xf32>
      %264 = arith.select %259, %254, %263 : vector<8x128xi1>, vector<8x128xf32>
      %c0_133 = arith.constant 0 : index
      %c0_134 = arith.constant 0 : index
      %265 = vector.load %arg11[%c0_133, %c0_134] : memref<8x128xf32, #tpu.memory_space<vmem>>, vector<8x128xf32>
      tpu.vector_store %arg11[%c0_133, %c0_134], %264 {strides = array<i32>} : memref<8x128xf32, #tpu.memory_space<vmem>>, vector<8x128xf32>,
      %cst_135 = arith.constant 0.000000e+00 : f32
      %266 = vector.broadcast %cst_135 : f32 to vector<8x128xf32>
      %267 = arith.select %259, %256, %266 : vector<8x128xi1>, vector<8x128xf32>
      %268 = vector.shape_cast %267 : vector<8x128xf32> to vector<8x1x128xf32>
      %c0_136 = arith.constant 0 : index
      %269 = arith.index_cast %c4_i32 : i32 to index
      %c0_137 = arith.constant 0 : index
      %270 = vector.load %arg8[%c0_136, %269, %c0_137] : memref<8x8x128xf32, #tpu.memory_space<vmem>>, vector<8x1x128xf32>
      tpu.vector_store %arg8[%c0_136, %269, %c0_137], %268 {strides = array<i32>} : memref<8x8x128xf32, #tpu.memory_space<vmem>>, vector<8x1x128xf32>,
      %c5_i32 = arith.constant 5 : i32
      %c0_138 = arith.constant 0 : index
      %271 = arith.index_cast %c5_i32 : i32 to index
      %c0_139 = arith.constant 0 : index
      %272 = vector.load %arg4[%c0_138, %271, %c0_139] : memref<8x8x16xf32, #tpu.memory_space<vmem>>, vector<8x1x16xf32>
      %273 = vector.shape_cast %272 : vector<8x1x16xf32> to vector<8x16xf32>
      %c0_140 = arith.constant 0 : index
      %c0_141 = arith.constant 0 : index
      %274 = vector.load %arg5[%c0_140, %c0_141] : memref<16x512xf32, #tpu.memory_space<vmem>>, vector<16x512xf32>
      %cst_142 = arith.constant dense<0.000000e+00> : vector<8x512xf32>
      %275 = tpu.matmul %273, %274, %cst_142 {dimension_numbers = #tpu.dot_dimension_numbers<[1], [0], [0], [1], [0, 0, 1, 1], [], []>} : vector<8x16xf32>, vector<16x512xf32>, vector<8x512xf32> -> vector<8x512xf32>
      %c0_143 = arith.constant 0 : index
      %c0_144 = arith.constant 0 : index
      %276 = vector.load %arg10[%c0_143, %c0_144] : memref<8x128xf32, #tpu.memory_space<vmem>>, vector<8x128xf32>
      %c0_145 = arith.constant 0 : index
      %c0_146 = arith.constant 0 : index
      %277 = vector.load %arg6[%c0_145, %c0_146] : memref<128x512xf32, #tpu.memory_space<vmem>>, vector<128x512xf32>
      %cst_147 = arith.constant dense<0.000000e+00> : vector<8x512xf32>
      %278 = tpu.matmul %276, %277, %cst_147 {dimension_numbers = #tpu.dot_dimension_numbers<[1], [0], [0], [1], [0, 0, 1, 1], [], []>} : vector<8x128xf32>, vector<128x512xf32>, vector<8x512xf32> -> vector<8x512xf32>
      %279 = arith.addf %275, %278 : vector<8x512xf32>
      %280 = arith.addf %279, %20 : vector<8x512xf32>
      %281 = vector.extract_strided_slice %280 {offsets = [0, 0], sizes = [8, 128], strides = [1, 1]} : vector<8x512xf32> to vector<8x128xf32>
      %282 = arith.negf %281 : vector<8x128xf32>
      %283 = math.exp %282 : vector<8x128xf32>
      %cst_148 = arith.constant 1.000000e+00 : f32
      %284 = vector.broadcast %cst_148 : f32 to vector<8x128xf32>
      %285 = arith.addf %284, %283 : vector<8x128xf32>
      %286 = arith.divf %284, %285 : vector<8x128xf32>
      %287 = vector.extract_strided_slice %280 {offsets = [0, 128], sizes = [8, 128], strides = [1, 1]} : vector<8x512xf32> to vector<8x128xf32>
      %288 = arith.negf %287 : vector<8x128xf32>
      %289 = math.exp %288 : vector<8x128xf32>
      %cst_149 = arith.constant 1.000000e+00 : f32
      %290 = vector.broadcast %cst_149 : f32 to vector<8x128xf32>
      %291 = arith.addf %290, %289 : vector<8x128xf32>
      %292 = arith.divf %290, %291 : vector<8x128xf32>
      %293 = vector.extract_strided_slice %280 {offsets = [0, 256], sizes = [8, 128], strides = [1, 1]} : vector<8x512xf32> to vector<8x128xf32>
      %294 = math.tanh %293 : vector<8x128xf32>
      %295 = vector.extract_strided_slice %280 {offsets = [0, 384], sizes = [8, 128], strides = [1, 1]} : vector<8x512xf32> to vector<8x128xf32>
      %296 = arith.negf %295 : vector<8x128xf32>
      %297 = math.exp %296 : vector<8x128xf32>
      %cst_150 = arith.constant 1.000000e+00 : f32
      %298 = vector.broadcast %cst_150 : f32 to vector<8x128xf32>
      %299 = arith.addf %298, %297 : vector<8x128xf32>
      %300 = arith.divf %298, %299 : vector<8x128xf32>
      %c0_151 = arith.constant 0 : index
      %c0_152 = arith.constant 0 : index
      %301 = vector.load %arg11[%c0_151, %c0_152] : memref<8x128xf32, #tpu.memory_space<vmem>>, vector<8x128xf32>
      %302 = arith.mulf %292, %301 : vector<8x128xf32>
      %303 = arith.mulf %286, %294 : vector<8x128xf32>
      %304 = arith.addf %302, %303 : vector<8x128xf32>
      %305 = math.tanh %304 : vector<8x128xf32>
      %306 = arith.mulf %300, %305 : vector<8x128xf32>
      %307 = arith.addi %14, %c5_i32 : i32
      %308 = vector.broadcast %307 : i32 to vector<8x128xi32>
      %309 = arith.cmpi sgt, %17, %308 : vector<8x128xi32>
      %c0_153 = arith.constant 0 : index
      %c0_154 = arith.constant 0 : index
      %310 = vector.load %arg10[%c0_153, %c0_154] : memref<8x128xf32, #tpu.memory_space<vmem>>, vector<8x128xf32>
      %311 = arith.select %309, %306, %310 : vector<8x128xi1>, vector<8x128xf32>
      %c0_155 = arith.constant 0 : index
      %c0_156 = arith.constant 0 : index
      %312 = vector.load %arg10[%c0_155, %c0_156] : memref<8x128xf32, #tpu.memory_space<vmem>>, vector<8x128xf32>
      tpu.vector_store %arg10[%c0_155, %c0_156], %311 {strides = array<i32>} : memref<8x128xf32, #tpu.memory_space<vmem>>, vector<8x128xf32>,
      %c0_157 = arith.constant 0 : index
      %c0_158 = arith.constant 0 : index
      %313 = vector.load %arg11[%c0_157, %c0_158] : memref<8x128xf32, #tpu.memory_space<vmem>>, vector<8x128xf32>
      %314 = arith.select %309, %304, %313 : vector<8x128xi1>, vector<8x128xf32>
      %c0_159 = arith.constant 0 : index
      %c0_160 = arith.constant 0 : index
      %315 = vector.load %arg11[%c0_159, %c0_160] : memref<8x128xf32, #tpu.memory_space<vmem>>, vector<8x128xf32>
      tpu.vector_store %arg11[%c0_159, %c0_160], %314 {strides = array<i32>} : memref<8x128xf32, #tpu.memory_space<vmem>>, vector<8x128xf32>,
      %cst_161 = arith.constant 0.000000e+00 : f32
      %316 = vector.broadcast %cst_161 : f32 to vector<8x128xf32>
      %317 = arith.select %309, %306, %316 : vector<8x128xi1>, vector<8x128xf32>
      %318 = vector.shape_cast %317 : vector<8x128xf32> to vector<8x1x128xf32>
      %c0_162 = arith.constant 0 : index
      %319 = arith.index_cast %c5_i32 : i32 to index
      %c0_163 = arith.constant 0 : index
      %320 = vector.load %arg8[%c0_162, %319, %c0_163] : memref<8x8x128xf32, #tpu.memory_space<vmem>>, vector<8x1x128xf32>
      tpu.vector_store %arg8[%c0_162, %319, %c0_163], %318 {strides = array<i32>} : memref<8x8x128xf32, #tpu.memory_space<vmem>>, vector<8x1x128xf32>,
      %c6_i32 = arith.constant 6 : i32
      %c0_164 = arith.constant 0 : index
      %321 = arith.index_cast %c6_i32 : i32 to index
      %c0_165 = arith.constant 0 : index
      %322 = vector.load %arg4[%c0_164, %321, %c0_165] : memref<8x8x16xf32, #tpu.memory_space<vmem>>, vector<8x1x16xf32>
      %323 = vector.shape_cast %322 : vector<8x1x16xf32> to vector<8x16xf32>
      %c0_166 = arith.constant 0 : index
      %c0_167 = arith.constant 0 : index
      %324 = vector.load %arg5[%c0_166, %c0_167] : memref<16x512xf32, #tpu.memory_space<vmem>>, vector<16x512xf32>
      %cst_168 = arith.constant dense<0.000000e+00> : vector<8x512xf32>
      %325 = tpu.matmul %323, %324, %cst_168 {dimension_numbers = #tpu.dot_dimension_numbers<[1], [0], [0], [1], [0, 0, 1, 1], [], []>} : vector<8x16xf32>, vector<16x512xf32>, vector<8x512xf32> -> vector<8x512xf32>
      %c0_169 = arith.constant 0 : index
      %c0_170 = arith.constant 0 : index
      %326 = vector.load %arg10[%c0_169, %c0_170] : memref<8x128xf32, #tpu.memory_space<vmem>>, vector<8x128xf32>
      %c0_171 = arith.constant 0 : index
      %c0_172 = arith.constant 0 : index
      %327 = vector.load %arg6[%c0_171, %c0_172] : memref<128x512xf32, #tpu.memory_space<vmem>>, vector<128x512xf32>
      %cst_173 = arith.constant dense<0.000000e+00> : vector<8x512xf32>
      %328 = tpu.matmul %326, %327, %cst_173 {dimension_numbers = #tpu.dot_dimension_numbers<[1], [0], [0], [1], [0, 0, 1, 1], [], []>} : vector<8x128xf32>, vector<128x512xf32>, vector<8x512xf32> -> vector<8x512xf32>
      %329 = arith.addf %325, %328 : vector<8x512xf32>
      %330 = arith.addf %329, %20 : vector<8x512xf32>
      %331 = vector.extract_strided_slice %330 {offsets = [0, 0], sizes = [8, 128], strides = [1, 1]} : vector<8x512xf32> to vector<8x128xf32>
      %332 = arith.negf %331 : vector<8x128xf32>
      %333 = math.exp %332 : vector<8x128xf32>
      %cst_174 = arith.constant 1.000000e+00 : f32
      %334 = vector.broadcast %cst_174 : f32 to vector<8x128xf32>
      %335 = arith.addf %334, %333 : vector<8x128xf32>
      %336 = arith.divf %334, %335 : vector<8x128xf32>
      %337 = vector.extract_strided_slice %330 {offsets = [0, 128], sizes = [8, 128], strides = [1, 1]} : vector<8x512xf32> to vector<8x128xf32>
      %338 = arith.negf %337 : vector<8x128xf32>
      %339 = math.exp %338 : vector<8x128xf32>
      %cst_175 = arith.constant 1.000000e+00 : f32
      %340 = vector.broadcast %cst_175 : f32 to vector<8x128xf32>
      %341 = arith.addf %340, %339 : vector<8x128xf32>
      %342 = arith.divf %340, %341 : vector<8x128xf32>
      %343 = vector.extract_strided_slice %330 {offsets = [0, 256], sizes = [8, 128], strides = [1, 1]} : vector<8x512xf32> to vector<8x128xf32>
      %344 = math.tanh %343 : vector<8x128xf32>
      %345 = vector.extract_strided_slice %330 {offsets = [0, 384], sizes = [8, 128], strides = [1, 1]} : vector<8x512xf32> to vector<8x128xf32>
      %346 = arith.negf %345 : vector<8x128xf32>
      %347 = math.exp %346 : vector<8x128xf32>
      %cst_176 = arith.constant 1.000000e+00 : f32
      %348 = vector.broadcast %cst_176 : f32 to vector<8x128xf32>
      %349 = arith.addf %348, %347 : vector<8x128xf32>
      %350 = arith.divf %348, %349 : vector<8x128xf32>
      %c0_177 = arith.constant 0 : index
      %c0_178 = arith.constant 0 : index
      %351 = vector.load %arg11[%c0_177, %c0_178] : memref<8x128xf32, #tpu.memory_space<vmem>>, vector<8x128xf32>
      %352 = arith.mulf %342, %351 : vector<8x128xf32>
      %353 = arith.mulf %336, %344 : vector<8x128xf32>
      %354 = arith.addf %352, %353 : vector<8x128xf32>
      %355 = math.tanh %354 : vector<8x128xf32>
      %356 = arith.mulf %350, %355 : vector<8x128xf32>
      %357 = arith.addi %14, %c6_i32 : i32
      %358 = vector.broadcast %357 : i32 to vector<8x128xi32>
      %359 = arith.cmpi sgt, %17, %358 : vector<8x128xi32>
      %c0_179 = arith.constant 0 : index
      %c0_180 = arith.constant 0 : index
      %360 = vector.load %arg10[%c0_179, %c0_180] : memref<8x128xf32, #tpu.memory_space<vmem>>, vector<8x128xf32>
      %361 = arith.select %359, %356, %360 : vector<8x128xi1>, vector<8x128xf32>
      %c0_181 = arith.constant 0 : index
      %c0_182 = arith.constant 0 : index
      %362 = vector.load %arg10[%c0_181, %c0_182] : memref<8x128xf32, #tpu.memory_space<vmem>>, vector<8x128xf32>
      tpu.vector_store %arg10[%c0_181, %c0_182], %361 {strides = array<i32>} : memref<8x128xf32, #tpu.memory_space<vmem>>, vector<8x128xf32>,
      %c0_183 = arith.constant 0 : index
      %c0_184 = arith.constant 0 : index
      %363 = vector.load %arg11[%c0_183, %c0_184] : memref<8x128xf32, #tpu.memory_space<vmem>>, vector<8x128xf32>
      %364 = arith.select %359, %354, %363 : vector<8x128xi1>, vector<8x128xf32>
      %c0_185 = arith.constant 0 : index
      %c0_186 = arith.constant 0 : index
      %365 = vector.load %arg11[%c0_185, %c0_186] : memref<8x128xf32, #tpu.memory_space<vmem>>, vector<8x128xf32>
      tpu.vector_store %arg11[%c0_185, %c0_186], %364 {strides = array<i32>} : memref<8x128xf32, #tpu.memory_space<vmem>>, vector<8x128xf32>,
      %cst_187 = arith.constant 0.000000e+00 : f32
      %366 = vector.broadcast %cst_187 : f32 to vector<8x128xf32>
      %367 = arith.select %359, %356, %366 : vector<8x128xi1>, vector<8x128xf32>
      %368 = vector.shape_cast %367 : vector<8x128xf32> to vector<8x1x128xf32>
      %c0_188 = arith.constant 0 : index
      %369 = arith.index_cast %c6_i32 : i32 to index
      %c0_189 = arith.constant 0 : index
      %370 = vector.load %arg8[%c0_188, %369, %c0_189] : memref<8x8x128xf32, #tpu.memory_space<vmem>>, vector<8x1x128xf32>
      tpu.vector_store %arg8[%c0_188, %369, %c0_189], %368 {strides = array<i32>} : memref<8x8x128xf32, #tpu.memory_space<vmem>>, vector<8x1x128xf32>,
      %c7_i32 = arith.constant 7 : i32
      %c0_190 = arith.constant 0 : index
      %371 = arith.index_cast %c7_i32 : i32 to index
      %c0_191 = arith.constant 0 : index
      %372 = vector.load %arg4[%c0_190, %371, %c0_191] : memref<8x8x16xf32, #tpu.memory_space<vmem>>, vector<8x1x16xf32>
      %373 = vector.shape_cast %372 : vector<8x1x16xf32> to vector<8x16xf32>
      %c0_192 = arith.constant 0 : index
      %c0_193 = arith.constant 0 : index
      %374 = vector.load %arg5[%c0_192, %c0_193] : memref<16x512xf32, #tpu.memory_space<vmem>>, vector<16x512xf32>
      %cst_194 = arith.constant dense<0.000000e+00> : vector<8x512xf32>
      %375 = tpu.matmul %373, %374, %cst_194 {dimension_numbers = #tpu.dot_dimension_numbers<[1], [0], [0], [1], [0, 0, 1, 1], [], []>} : vector<8x16xf32>, vector<16x512xf32>, vector<8x512xf32> -> vector<8x512xf32>
      %c0_195 = arith.constant 0 : index
      %c0_196 = arith.constant 0 : index
      %376 = vector.load %arg10[%c0_195, %c0_196] : memref<8x128xf32, #tpu.memory_space<vmem>>, vector<8x128xf32>
      %c0_197 = arith.constant 0 : index
      %c0_198 = arith.constant 0 : index
      %377 = vector.load %arg6[%c0_197, %c0_198] : memref<128x512xf32, #tpu.memory_space<vmem>>, vector<128x512xf32>
      %cst_199 = arith.constant dense<0.000000e+00> : vector<8x512xf32>
      %378 = tpu.matmul %376, %377, %cst_199 {dimension_numbers = #tpu.dot_dimension_numbers<[1], [0], [0], [1], [0, 0, 1, 1], [], []>} : vector<8x128xf32>, vector<128x512xf32>, vector<8x512xf32> -> vector<8x512xf32>
      %379 = arith.addf %375, %378 : vector<8x512xf32>
      %380 = arith.addf %379, %20 : vector<8x512xf32>
      %381 = vector.extract_strided_slice %380 {offsets = [0, 0], sizes = [8, 128], strides = [1, 1]} : vector<8x512xf32> to vector<8x128xf32>
      %382 = arith.negf %381 : vector<8x128xf32>
      %383 = math.exp %382 : vector<8x128xf32>
      %cst_200 = arith.constant 1.000000e+00 : f32
      %384 = vector.broadcast %cst_200 : f32 to vector<8x128xf32>
      %385 = arith.addf %384, %383 : vector<8x128xf32>
      %386 = arith.divf %384, %385 : vector<8x128xf32>
      %387 = vector.extract_strided_slice %380 {offsets = [0, 128], sizes = [8, 128], strides = [1, 1]} : vector<8x512xf32> to vector<8x128xf32>
      %388 = arith.negf %387 : vector<8x128xf32>
      %389 = math.exp %388 : vector<8x128xf32>
      %cst_201 = arith.constant 1.000000e+00 : f32
      %390 = vector.broadcast %cst_201 : f32 to vector<8x128xf32>
      %391 = arith.addf %390, %389 : vector<8x128xf32>
      %392 = arith.divf %390, %391 : vector<8x128xf32>
      %393 = vector.extract_strided_slice %380 {offsets = [0, 256], sizes = [8, 128], strides = [1, 1]} : vector<8x512xf32> to vector<8x128xf32>
      %394 = math.tanh %393 : vector<8x128xf32>
      %395 = vector.extract_strided_slice %380 {offsets = [0, 384], sizes = [8, 128], strides = [1, 1]} : vector<8x512xf32> to vector<8x128xf32>
      %396 = arith.negf %395 : vector<8x128xf32>
      %397 = math.exp %396 : vector<8x128xf32>
      %cst_202 = arith.constant 1.000000e+00 : f32
      %398 = vector.broadcast %cst_202 : f32 to vector<8x128xf32>
      %399 = arith.addf %398, %397 : vector<8x128xf32>
      %400 = arith.divf %398, %399 : vector<8x128xf32>
      %c0_203 = arith.constant 0 : index
      %c0_204 = arith.constant 0 : index
      %401 = vector.load %arg11[%c0_203, %c0_204] : memref<8x128xf32, #tpu.memory_space<vmem>>, vector<8x128xf32>
      %402 = arith.mulf %392, %401 : vector<8x128xf32>
      %403 = arith.mulf %386, %394 : vector<8x128xf32>
      %404 = arith.addf %402, %403 : vector<8x128xf32>
      %405 = math.tanh %404 : vector<8x128xf32>
      %406 = arith.mulf %400, %405 : vector<8x128xf32>
      %407 = arith.addi %14, %c7_i32 : i32
      %408 = vector.broadcast %407 : i32 to vector<8x128xi32>
      %409 = arith.cmpi sgt, %17, %408 : vector<8x128xi32>
      %c0_205 = arith.constant 0 : index
      %c0_206 = arith.constant 0 : index
      %410 = vector.load %arg10[%c0_205, %c0_206] : memref<8x128xf32, #tpu.memory_space<vmem>>, vector<8x128xf32>
      %411 = arith.select %409, %406, %410 : vector<8x128xi1>, vector<8x128xf32>
      %c0_207 = arith.constant 0 : index
      %c0_208 = arith.constant 0 : index
      %412 = vector.load %arg10[%c0_207, %c0_208] : memref<8x128xf32, #tpu.memory_space<vmem>>, vector<8x128xf32>
      tpu.vector_store %arg10[%c0_207, %c0_208], %411 {strides = array<i32>} : memref<8x128xf32, #tpu.memory_space<vmem>>, vector<8x128xf32>,
      %c0_209 = arith.constant 0 : index
      %c0_210 = arith.constant 0 : index
      %413 = vector.load %arg11[%c0_209, %c0_210] : memref<8x128xf32, #tpu.memory_space<vmem>>, vector<8x128xf32>
      %414 = arith.select %409, %404, %413 : vector<8x128xi1>, vector<8x128xf32>
      %c0_211 = arith.constant 0 : index
      %c0_212 = arith.constant 0 : index
      %415 = vector.load %arg11[%c0_211, %c0_212] : memref<8x128xf32, #tpu.memory_space<vmem>>, vector<8x128xf32>
      tpu.vector_store %arg11[%c0_211, %c0_212], %414 {strides = array<i32>} : memref<8x128xf32, #tpu.memory_space<vmem>>, vector<8x128xf32>,
      %cst_213 = arith.constant 0.000000e+00 : f32
      %416 = vector.broadcast %cst_213 : f32 to vector<8x128xf32>
      %417 = arith.select %409, %406, %416 : vector<8x128xi1>, vector<8x128xf32>
      %418 = vector.shape_cast %417 : vector<8x128xf32> to vector<8x1x128xf32>
      %c0_214 = arith.constant 0 : index
      %419 = arith.index_cast %c7_i32 : i32 to index
      %c0_215 = arith.constant 0 : index
      %420 = vector.load %arg8[%c0_214, %419, %c0_215] : memref<8x8x128xf32, #tpu.memory_space<vmem>>, vector<8x1x128xf32>
      tpu.vector_store %arg8[%c0_214, %419, %c0_215], %418 {strides = array<i32>} : memref<8x8x128xf32, #tpu.memory_space<vmem>>, vector<8x1x128xf32>,
      %c8_i32_216 = arith.constant 8 : i32
    } else {
    }
    %c1_i32 = arith.constant 1 : i32
    %11 = arith.cmpi eq, %arg1, %c1_i32 : i32
    %12 = arith.extui %11 : i1 to i32
    %c0_i32_3 = arith.constant 0 : i32
    %13 = arith.cmpi ne, %12, %c0_i32_3 : i32
    scf.if %13 {
      %c0 = arith.constant 0 : index
      %c0_4 = arith.constant 0 : index
      %14 = vector.load %arg10[%c0, %c0_4] : memref<8x128xf32, #tpu.memory_space<vmem>>, vector<8x128xf32>
      %c0_5 = arith.constant 0 : index
      %c0_6 = arith.constant 0 : index
      %15 = vector.load %arg9[%c0_5, %c0_6] : memref<8x128xf32, #tpu.memory_space<vmem>>, vector<8x128xf32>
      tpu.vector_store %arg9[%c0_5, %c0_6], %14 {strides = array<i32>} : memref<8x128xf32, #tpu.memory_space<vmem>>, vector<8x128xf32>,
    } else {
    }
    return
  }
  func.func @transform_0(%arg0: i32, %arg1: i32, %arg2: memref<1xi32, #tpu.memory_space<smem>>) -> (i32, i32) {
    %c0_i32 = arith.constant 0 : i32
    %c0_i32_0 = arith.constant 0 : i32
    return %arg0, %c0_i32 : i32, i32
  }
  func.func @transform_1(%arg0: i32, %arg1: i32, %arg2: memref<1xi32, #tpu.memory_space<smem>>) -> (i32, i32, i32) {
    %c0_i32 = arith.constant 0 : i32
    %c0_i32_0 = arith.constant 0 : i32
    return %arg0, %arg1, %c0_i32 : i32, i32, i32
  }
  func.func @transform_2(%arg0: i32, %arg1: i32, %arg2: memref<1xi32, #tpu.memory_space<smem>>) -> (i32, i32) {
    %c0_i32 = arith.constant 0 : i32
    %c0_i32_0 = arith.constant 0 : i32
    %c0_i32_1 = arith.constant 0 : i32
    return %c0_i32, %c0_i32_0 : i32, i32
  }
  func.func @transform_3(%arg0: i32, %arg1: i32, %arg2: memref<1xi32, #tpu.memory_space<smem>>) -> (i32, i32) {
    %c0_i32 = arith.constant 0 : i32
    %c0_i32_0 = arith.constant 0 : i32
    %c0_i32_1 = arith.constant 0 : i32
    return %c0_i32, %c0_i32_0 : i32, i32
  }
  func.func @transform_4(%arg0: i32, %arg1: i32, %arg2: memref<1xi32, #tpu.memory_space<smem>>) -> (i32, i32) {
    %c0_i32 = arith.constant 0 : i32
    %c0_i32_0 = arith.constant 0 : i32
    %c0_i32_1 = arith.constant 0 : i32
    return %c0_i32, %c0_i32_0 : i32, i32
  }
  func.func @transform_5(%arg0: i32, %arg1: i32, %arg2: memref<1xi32, #tpu.memory_space<smem>>) -> (i32, i32, i32) {
    %c0_i32 = arith.constant 0 : i32
    %c0_i32_0 = arith.constant 0 : i32
    return %arg0, %arg1, %c0_i32 : i32, i32, i32
  }
  func.func @transform_6(%arg0: i32, %arg1: i32, %arg2: memref<1xi32, #tpu.memory_space<smem>>) -> (i32, i32) {
    %c0_i32 = arith.constant 0 : i32
    %c0_i32_0 = arith.constant 0 : i32
    return %arg0, %c0_i32 : i32, i32
  }
}

</mosaic_0001>

<llo_original>
// kernel: lstm_layer_forward.1
$region0: #{lstm_layer_forward.1}
  #allocation0 [shape = 'u32[]', space=smem, size = 0x4, offset = 0x4, fixed_abs, tag = 'smem constant byte address 0x4 - core index']
  #allocation1 [shape = 'u32[72,128]{1,0:T(1,128)}', space=vmem, size = 0x9000, scoped, tag = 'internal scratch']
  #allocation2 [shape = 'f32[8,128]{1,0:T(8,128)}', space=vmem, size = 0x1000, scoped, tag = 'scratch operand']
  #allocation3 [shape = 'f32[8,128]{1,0:T(8,128)}', space=vmem, size = 0x1000, scoped, tag = 'scratch operand']
  #allocation4 [shape = 's32[1]{0}', space=sflag, size = 0x4, scoped, tag = 'scoped memory for lstm_layer_forward.1']
  #allocation5 [shape = 's32[1]{0:T(128)S(6)}', space=smem, size = 0x200, scoped, tag = 'prefetched SMEM operand 0']
  %s0 = inlined_call_operand.<no memory space> [shape: s32[1], index: 0, kind: input, shape index: {}]
  %s1 = inlined_call_operand.vmem [shape: s32[8,1], index: 1, kind: input, shape index: {}]
  %s2 = inlined_call_operand.vmem [shape: f32[8,16,16], index: 2, kind: input, shape index: {}]
  %s3 = inlined_call_operand.vmem [shape: f32[16,512], index: 3, kind: input, shape index: {}]
  %s4 = inlined_call_operand.vmem [shape: f32[128,512], index: 4, kind: input, shape index: {}]
  %s5 = inlined_call_operand.vmem [shape: f32[1,512], index: 5, kind: input, shape index: {}]
  %s6 = inlined_call_operand.vmem [shape: f32[8,16,128], index: 6, kind: output, shape index: {0}]
  %s7 = inlined_call_operand.vmem [shape: f32[8,128], index: 7, kind: output, shape index: {1}]
  %8 = xla_tuple %s6, %s7
  %s9 = sld [smem:[#allocation0]]
  $region149: #{lstm_layer_forward.1} parent=0
    _
  %s11 = ssub.s32 1, %s9
  %s12 = scalar_select 0, %s11, %s9
  %13 = sst [smem:[#allocation5]] %s0
  $region1: #{lstm_layer_forward.1} parent=0
    #allocation6 [shape = 'u8[65536]{0}', space=vmem, size = 0x10000, scoped, tag = 'input window, operand 2']
    #allocation7 [shape = 'u8[65536]{0}', space=vmem, size = 0x10000, scoped, tag = 'output window, operand 0']
    loop: start=0, step=1, limit=4
    $region2: #{lstm_layer_forward.1} parent=1 // loop_pre_header
      _
    $region3: #{lstm_layer_forward.1} parent=1 // loop_header
      %s15 = sphi 0, %s19
      %p16 = scmp.ge.s32.totalorder %s15, 4
      %s22 = sphi 0, %s34
      %s23 = sphi 0, %s30
      %s24 = sphi 0, %s22
      %s25 = sphi 0, %s23
      %s26 = sphi 0, %s24
      %s27 = sphi 0, %s25
      %s37 = sphi 0, %s39
      %s40 = sphi 0, %s37
      %s41 = sphi 0, %s40
      %s57 = sphi 0, %s41
      %s65 = sphi 0, %s67
      %s68 = sphi 0, %s65
      %s69 = sphi 0, %s68
      %s85 = sphi 0, %s69
      %s89 = sphi 0, %s89
      %s91 = sphi 0, %s89
      %s92 = sphi 0, %s91
      %s106 = sphi 0, %s92
      %s110 = sphi 0, %s110
      %s112 = sphi 0, %s110
      %s113 = sphi 0, %s112
      %s127 = sphi 0, %s113
      %s131 = sphi 0, %s131
      %s133 = sphi 0, %s131
      %s134 = sphi 0, %s133
      %s148 = sphi 0, %s134
      %s156 = sphi 0, %s158
      %s159 = sphi 0, %s156
      %s160 = sphi 0, %s159
      %s176 = sphi 0, %s160
      %s182 = sphi 0, %s184
      %s185 = sphi 0, %s182
      %s186 = sphi 0, %s185
      %s202 = sphi 0, %s186
    $region4: #{lstm_layer_forward.1} parent=1 // loop_header_branch
      %18 = sbr.rel (%p16) target = $region8
    $region5: #{lstm_layer_forward.1} parent=1 // loop_body
      %s20 = ssub.s32 %s15, 1
      %s21 = ssub.s32 %s15, 2
      %s28 = sadd.s32 1, %s23
      %p29 = scmp.ge.s32.totalorder %s28, 2
      %s30 = scalar_select %p29, 0, %s28
      %s31 = sadd.s32 1, %s22
      %s32 = scalar_select %p29, %s31, %s22
      %p33 = scmp.ge.s32.totalorder %s32, 1
      %s34 = scalar_select %p33, 0, %s32
      %s35 = ssub.s32 %s22, %s34
      %p36 = scmp.eq.s32.totalorder %s35, 0
      %s38 = sadd.s32 %s37, 1
      %s39 = scalar_select %p36, %s37, %s38
      %p42 = pneg %p36
      %p43 = scmp.eq.s32.totalorder %s15, 1
      %p44 = por %p42, %p43
      %p45 = scmp.ne.s32.totalorder %s37, %s40
      %p46 = scmp.eq.s32.totalorder %s15, 0
      %p47 = por %p45, %p46
      %p48 = scmp.ne.s32.totalorder %s37, %s40
      %p49 = scmp.eq.s32.totalorder %s20, 1
      %p50 = por %p48, %p49
      %p51 = scmp.ne.s32.totalorder %s40, %s41
      %p52 = scmp.eq.s32.totalorder %s20, 0
      %p53 = por %p51, %p52
      %p54 = scmp.ne.s32.totalorder %s40, %s41
      %p55 = scmp.eq.s32.totalorder %s21, 1
      %p56 = por %p54, %p55
      %p58 = scmp.ne.s32.totalorder %s41, %s57
      %p59 = scmp.eq.s32.totalorder %s21, 0
      %p60 = por %p58, %p59
      %s61 = ssub.s32 %s22, %s34
      %s62 = ssub.s32 %s23, %s30
      %s63 = sor.u32 %s61, %s62
      %p64 = scmp.eq.s32.totalorder %s63, 0
      %s66 = sadd.s32 %s65, 1
      %s67 = scalar_select %p64, %s65, %s66
      %p70 = pneg %p64
      %p71 = scmp.eq.s32.totalorder %s15, 1
      %p72 = por %p70, %p71
      %p73 = scmp.ne.s32.totalorder %s65, %s68
      %p74 = scmp.eq.s32.totalorder %s15, 0
      %p75 = por %p73, %p74
      %p76 = scmp.ne.s32.totalorder %s65, %s68
      %p77 = scmp.eq.s32.totalorder %s20, 1
      %p78 = por %p76, %p77
      %p79 = scmp.ne.s32.totalorder %s68, %s69
      %p80 = scmp.eq.s32.totalorder %s20, 0
      %p81 = por %p79, %p80
      %p82 = scmp.ne.s32.totalorder %s68, %s69
      %p83 = scmp.eq.s32.totalorder %s21, 1
      %p84 = por %p82, %p83
      %p86 = scmp.ne.s32.totalorder %s69, %s85
      %p87 = scmp.eq.s32.totalorder %s21, 0
      %p88 = por %p86, %p87
      %s90 = sadd.s32 %s89, 1
      %p93 = scmp.eq.s32.totalorder %s15, 1
      %p94 = scmp.ne.s32.totalorder %s89, %s91
      %p95 = scmp.eq.s32.totalorder %s15, 0
      %p96 = por %p94, %p95
      %p97 = scmp.ne.s32.totalorder %s89, %s91
      %p98 = scmp.eq.s32.totalorder %s20, 1
      %p99 = por %p97, %p98
      %p100 = scmp.ne.s32.totalorder %s91, %s92
      %p101 = scmp.eq.s32.totalorder %s20, 0
      %p102 = por %p100, %p101
      %p103 = scmp.ne.s32.totalorder %s91, %s92
      %p104 = scmp.eq.s32.totalorder %s21, 1
      %p105 = por %p103, %p104
      %p107 = scmp.ne.s32.totalorder %s92, %s106
      %p108 = scmp.eq.s32.totalorder %s21, 0
      %p109 = por %p107, %p108
      %s111 = sadd.s32 %s110, 1
      %p114 = scmp.eq.s32.totalorder %s15, 1
      %p115 = scmp.ne.s32.totalorder %s110, %s112
      %p116 = scmp.eq.s32.totalorder %s15, 0
      %p117 = por %p115, %p116
      %p118 = scmp.ne.s32.totalorder %s110, %s112
      %p119 = scmp.eq.s32.totalorder %s20, 1
      %p120 = por %p118, %p119
      %p121 = scmp.ne.s32.totalorder %s112, %s113
      %p122 = scmp.eq.s32.totalorder %s20, 0
      %p123 = por %p121, %p122
      %p124 = scmp.ne.s32.totalorder %s112, %s113
      %p125 = scmp.eq.s32.totalorder %s21, 1
      %p126 = por %p124, %p125
      %p128 = scmp.ne.s32.totalorder %s113, %s127
      %p129 = scmp.eq.s32.totalorder %s21, 0
      %p130 = por %p128, %p129
      %s132 = sadd.s32 %s131, 1
      %p135 = scmp.eq.s32.totalorder %s15, 1
      %p136 = scmp.ne.s32.totalorder %s131, %s133
      %p137 = scmp.eq.s32.totalorder %s15, 0
      %p138 = por %p136, %p137
      %p139 = scmp.ne.s32.totalorder %s131, %s133
      %p140 = scmp.eq.s32.totalorder %s20, 1
      %p141 = por %p139, %p140
      %p142 = scmp.ne.s32.totalorder %s133, %s134
      %p143 = scmp.eq.s32.totalorder %s20, 0
      %p144 = por %p142, %p143
      %p145 = scmp.ne.s32.totalorder %s133, %s134
      %p146 = scmp.eq.s32.totalorder %s21, 1
      %p147 = por %p145, %p146
      %p149 = scmp.ne.s32.totalorder %s134, %s148
      %p150 = scmp.eq.s32.totalorder %s21, 0
      %p151 = por %p149, %p150
      %s152 = ssub.s32 %s22, %s34
      %s153 = ssub.s32 %s23, %s30
      %s154 = sor.u32 %s152, %s153
      %p155 = scmp.eq.s32.totalorder %s154, 0
      %s157 = sadd.s32 %s156, 1
      %s158 = scalar_select %p155, %s156, %s157
      %p161 = pneg %p155
      %p162 = scmp.eq.s32.totalorder %s15, 1
      %p163 = por %p161, %p162
      %p164 = scmp.ne.s32.totalorder %s156, %s159
      %p165 = scmp.eq.s32.totalorder %s15, 0
      %p166 = por %p164, %p165
      %p167 = scmp.ne.s32.totalorder %s156, %s159
      %p168 = scmp.eq.s32.totalorder %s20, 1
      %p169 = por %p167, %p168
      %p170 = scmp.ne.s32.totalorder %s159, %s160
      %p171 = scmp.eq.s32.totalorder %s20, 0
      %p172 = por %p170, %p171
      %p173 = scmp.ne.s32.totalorder %s159, %s160
      %p174 = scmp.eq.s32.totalorder %s21, 1
      %p175 = por %p173, %p174
      %p177 = scmp.ne.s32.totalorder %s160, %s176
      %p178 = scmp.eq.s32.totalorder %s21, 0
      %p179 = por %p177, %p178
      %s180 = ssub.s32 %s22, %s34
      %p181 = scmp.eq.s32.totalorder %s180, 0
      %s183 = sadd.s32 %s182, 1
      %s184 = scalar_select %p181, %s182, %s183
      %p187 = pneg %p181
      %p188 = scmp.eq.s32.totalorder %s15, 1
      %p189 = por %p187, %p188
      %p190 = scmp.ne.s32.totalorder %s182, %s185
      %p191 = scmp.eq.s32.totalorder %s15, 0
      %p192 = por %p190, %p191
      %p193 = scmp.ne.s32.totalorder %s182, %s185
      %p194 = scmp.eq.s32.totalorder %s20, 1
      %p195 = por %p193, %p194
      %p196 = scmp.ne.s32.totalorder %s185, %s186
      %p197 = scmp.eq.s32.totalorder %s20, 0
      %p198 = por %p196, %p197
      %p199 = scmp.ne.s32.totalorder %s185, %s186
      %p200 = scmp.eq.s32.totalorder %s21, 1
      %p201 = por %p199, %p200
      %p203 = scmp.ne.s32.totalorder %s186, %s202
      %p204 = scmp.eq.s32.totalorder %s21, 0
      %p205 = por %p203, %p204
      %p206 = scmp.le.s32.totalorder 1, %s15
      %p207 = scmp.lt.s32.totalorder %s15, 3
      %p208 = pnand %p206, %p207
      %p209 = pneg %p208
      // Predicated region
      $region9: #{lstm_layer_forward.1} parent=5 // pred_check
        _
      $region10: #{lstm_layer_forward.1} parent=5 // pred_check_branch
        %211 = sbr.rel (%p208) target = $region12
      $region11: #{lstm_layer_forward.1} parent=5 // pred_region
        %s212 = ssub.s32 %s15, 1
        // Predicated region
        $region13: #{lstm_layer_forward.1} parent=11 // pred_check
          %p213 = pneg %p53
        $region14: #{lstm_layer_forward.1} parent=11 // pred_check_branch
          %215 = sbr.rel (%p213) target = $region16
        $region15: #{lstm_layer_forward.1} parent=11 // pred_region
          %p216 = scmp.lt.s32.totalorder %s24, 0
          %s217 = scalar_select %p216, %s24, 0
          %s218 = smul.addr %s217, 8
          %s219 = scalar_lea.vmem %s1, %s218
        $region16: #{lstm_layer_forward.1} parent=11 // pred_fallthru
          _
        // Predicated region
        $region17: #{lstm_layer_forward.1} parent=11 // pred_check
          %p220 = pneg %p102
        $region18: #{lstm_layer_forward.1} parent=11 // pred_check_branch
          %222 = sbr.rel (%p220) target = $region20
        $region19: #{lstm_layer_forward.1} parent=11 // pred_region
          _
        $region20: #{lstm_layer_forward.1} parent=11 // pred_fallthru
          _
        // Predicated region
        $region21: #{lstm_layer_forward.1} parent=11 // pred_check
          %p223 = pneg %p123
        $region22: #{lstm_layer_forward.1} parent=11 // pred_check_branch
          %225 = sbr.rel (%p223) target = $region24
        $region23: #{lstm_layer_forward.1} parent=11 // pred_region
          _
        $region24: #{lstm_layer_forward.1} parent=11 // pred_fallthru
          _
        // Predicated region
        $region25: #{lstm_layer_forward.1} parent=11 // pred_check
          %p226 = pneg %p144
        $region26: #{lstm_layer_forward.1} parent=11 // pred_check_branch
          %228 = sbr.rel (%p226) target = $region28
        $region27: #{lstm_layer_forward.1} parent=11 // pred_region
          _
        $region28: #{lstm_layer_forward.1} parent=11 // pred_fallthru
          _
      $region12: #{lstm_layer_forward.1} parent=5 // pred_fallthru
        _
      %p229 = scmp.lt.s32.totalorder %s15, 2
      // Predicated region
      $region29: #{lstm_layer_forward.1} parent=5 // pred_check
        %p230 = pneg %p229
      $region30: #{lstm_layer_forward.1} parent=5 // pred_check_branch
        %232 = sbr.rel (%p230) target = $region32
      $region31: #{lstm_layer_forward.1} parent=5 // pred_region
        // Predicated region
        $region33: #{lstm_layer_forward.1} parent=31 // pred_check
          %p233 = pneg %p75
        $region34: #{lstm_layer_forward.1} parent=31 // pred_check_branch
          %235 = sbr.rel (%p233) target = $region36
        $region35: #{lstm_layer_forward.1} parent=31 // pred_region
          %s236 = sand.u32 %s65, 1
          %s237 = sand.u32 %s65, 1
          %s238 = smul.addr %s237, 64
          %s239 = scalar_lea.vmem [#allocation6], %s238
          %s240 = smul.u32 8, %s22
          %s241 = smul.addr %s240, 2
          %s242 = sadd.s32 %s23, %s241
          %s243 = smul.addr %s242, 8
          %s244 = scalar_lea.vmem %s2, %s243
          // Predicated region
          $region37: #{lstm_layer_forward.1} parent=35 // pred_check
            _
          $region38: #{lstm_layer_forward.1} parent=35 // pred_check_branch
            %246 = sbr.rel (0) target = $region40
          $region39: #{lstm_layer_forward.1} parent=35 // pred_region
            // Predicated region
            $region41: #{lstm_layer_forward.1} parent=39 // pred_check
              _
            $region42: #{lstm_layer_forward.1} parent=39 // pred_check_branch
              %248 = sbr.rel (0) target = $region44
            $region43: #{lstm_layer_forward.1} parent=39 // pred_region
              // Predicated region
              $region56: #{lstm_layer_forward.1} parent=43 // pred_check
                _
              $region57: #{lstm_layer_forward.1} parent=43 // pred_check_branch
                %278 = sbr.rel (0) target = $region59
              $region58: #{lstm_layer_forward.1} parent=43 // pred_region
                loop: start=0, step=1, limit=1
                $region60: #{lstm_layer_forward.1} parent=58 // loop_pre_header
                  _
                $region61: #{lstm_layer_forward.1} parent=58 // loop_header
                  %s280 = sphi 0, %s284
                  %p281 = scmp.ge.s32.totalorder %s280, 1
                  %s285 = sphi %s244, %s244
                  %s286 = sphi %s239, %s239
                $region62: #{lstm_layer_forward.1} parent=58 // loop_header_branch
                  %283 = sbr.rel (%p281) target = $region66
                $region63: #{lstm_layer_forward.1} parent=58 // loop_body
                  %v287 = vld [vmem:[%s285] sm:$0xff]
                  %288 = vst [vmem:[%s286] sm:$0xff] %v287
                  %v289 = vld [vmem:[%s285 + $0x10] sm:$0xff]
                  %290 = vst [vmem:[%s286 + $0x8] sm:$0xff] %v289
                  %v291 = vld [vmem:[%s285 + $0x20] sm:$0xff]
                  %292 = vst [vmem:[%s286 + $0x10] sm:$0xff] %v291
                  %v293 = vld [vmem:[%s285 + $0x30] sm:$0xff]
                  %294 = vst [vmem:[%s286 + $0x18] sm:$0xff] %v293
                  %v295 = vld [vmem:[%s285 + $0x40] sm:$0xff]
                  %296 = vst [vmem:[%s286 + $0x20] sm:$0xff] %v295
                  %v297 = vld [vmem:[%s285 + $0x50] sm:$0xff]
                  %298 = vst [vmem:[%s286 + $0x28] sm:$0xff] %v297
                  %v299 = vld [vmem:[%s285 + $0x60] sm:$0xff]
                  %300 = vst [vmem:[%s286 + $0x30] sm:$0xff] %v299
                  %v301 = vld [vmem:[%s285 + $0x70] sm:$0xff]
                  %302 = vst [vmem:[%s286 + $0x38] sm:$0xff] %v301
                $region64: #{lstm_layer_forward.1} parent=58 // loop_footer
                  %s284 = sadd.s32 1, %s280
                $region65: #{lstm_layer_forward.1} parent=58 // loop_footer_branch
                  %279 = sbr.rel target = $region61
                $region66: #{lstm_layer_forward.1} parent=58 // loop_exit
                  _
              $region59: #{lstm_layer_forward.1} parent=43 // pred_fallthru
                _
              // Predicated region
              $region67: #{lstm_layer_forward.1} parent=43 // pred_check
                _
              $region68: #{lstm_layer_forward.1} parent=43 // pred_check_branch
                %304 = sbr.rel target = $region70
              $region69: #{lstm_layer_forward.1} parent=43 // pred_region
                _
              $region70: #{lstm_layer_forward.1} parent=43 // pred_fallthru
                _
            $region44: #{lstm_layer_forward.1} parent=39 // pred_fallthru
              _
            // Predicated region
            $region45: #{lstm_layer_forward.1} parent=39 // pred_check
              _
            $region46: #{lstm_layer_forward.1} parent=39 // pred_check_branch
              %250 = sbr.rel target = $region48
            $region47: #{lstm_layer_forward.1} parent=39 // pred_region
              %s252 = ssub.s32 256, 1
              loop: start=0, step=1, limit=1
              $region49: #{lstm_layer_forward.1} parent=47 // loop_pre_header
                _
              $region50: #{lstm_layer_forward.1} parent=47 // loop_header
                %s254 = sphi 0, %s258
                %p255 = scmp.ge.s32.totalorder %s254, 1
                %s259 = sphi %s244, %s244
                %s260 = sphi %s239, %s239
              $region51: #{lstm_layer_forward.1} parent=47 // loop_header_branch
                %257 = sbr.rel (%p255) target = $region55
              $region52: #{lstm_layer_forward.1} parent=47 // loop_body
                %v261 = vld [vmem:[%s259] sm:%s252]
                %262 = vst [vmem:[%s260] sm:%s252] %v261
                %v263 = vld [vmem:[%s259 + $0x10] sm:%s252]
                %264 = vst [vmem:[%s260 + $0x8] sm:%s252] %v263
                %v265 = vld [vmem:[%s259 + $0x20] sm:%s252]
                %266 = vst [vmem:[%s260 + $0x10] sm:%s252] %v265
                %v267 = vld [vmem:[%s259 + $0x30] sm:%s252]
                %268 = vst [vmem:[%s260 + $0x18] sm:%s252] %v267
                %v269 = vld [vmem:[%s259 + $0x40] sm:%s252]
                %270 = vst [vmem:[%s260 + $0x20] sm:%s252] %v269
                %v271 = vld [vmem:[%s259 + $0x50] sm:%s252]
                %272 = vst [vmem:[%s260 + $0x28] sm:%s252] %v271
                %v273 = vld [vmem:[%s259 + $0x60] sm:%s252]
                %274 = vst [vmem:[%s260 + $0x30] sm:%s252] %v273
                %v275 = vld [vmem:[%s259 + $0x70] sm:%s252]
                %276 = vst [vmem:[%s260 + $0x38] sm:%s252] %v275
              $region53: #{lstm_layer_forward.1} parent=47 // loop_footer
                %s258 = sadd.s32 1, %s254
              $region54: #{lstm_layer_forward.1} parent=47 // loop_footer_branch
                %253 = sbr.rel target = $region50
              $region55: #{lstm_layer_forward.1} parent=47 // loop_exit
                _
            $region48: #{lstm_layer_forward.1} parent=39 // pred_fallthru
              _
          $region40: #{lstm_layer_forward.1} parent=35 // pred_fallthru
            _
          %305 = vnop
        $region36: #{lstm_layer_forward.1} parent=31 // pred_fallthru
          _
      $region32: #{lstm_layer_forward.1} parent=5 // pred_fallthru
        _
      %p306 = scmp.le.s32.totalorder 1, %s15
      %p307 = scmp.lt.s32.totalorder %s15, 3
      %p308 = pnand %p306, %p307
      %p309 = pneg %p308
      // Predicated region
      $region71: #{lstm_layer_forward.1} parent=5 // pred_check
        _
      $region72: #{lstm_layer_forward.1} parent=5 // pred_check_branch
        %311 = sbr.rel (%p308) target = $region74
      $region73: #{lstm_layer_forward.1} parent=5 // pred_region
        %s312 = ssub.s32 %s15, 1
        %s313 = sand.u32 %s68, 1
        %s314 = sand.u32 %s68, 1
        %s315 = smul.addr %s314, 64
        %s316 = scalar_lea.vmem [#allocation6], %s315
        // Predicated region
        $region75: #{lstm_layer_forward.1} parent=73 // pred_check
          %p317 = pneg %p81
        $region76: #{lstm_layer_forward.1} parent=73 // pred_check_branch
          %319 = sbr.rel (%p317) target = $region78
        $region77: #{lstm_layer_forward.1} parent=73 // pred_region
          _
        $region78: #{lstm_layer_forward.1} parent=73 // pred_fallthru
          _
        %p320 = scmp.lt.s32.totalorder %s24, 0
        %s321 = scalar_select %p320, %s24, 0
        %s322 = smul.addr %s321, 8
        %s323 = scalar_lea.vmem %s1, %s322
        %p324 = pneg %p53
        %p325 = pneg %p50
        %s326 = sand.u32 %s68, 1
        %s327 = sand.u32 %s68, 1
        %s328 = smul.addr %s327, 64
        %s329 = scalar_lea.vmem [#allocation6], %s328
        %p330 = pneg %p81
        %p331 = pneg %p78
        %p332 = pneg %p102
        %p333 = pneg %p99
        %p334 = pneg %p123
        %p335 = pneg %p120
        %p336 = pneg %p144
        %p337 = pneg %p141
        %p338 = pneg %p172
        %p339 = pneg %p169
        %s340 = sand.u32 %s159, 1
        %s341 = sand.u32 %s159, 1
        %s342 = smul.addr %s341, 64
        %s343 = scalar_lea.vmem [#allocation7], %s342
        %p344 = pneg %p198
        %p345 = pneg %p195
        %p346 = scmp.lt.s32.totalorder %s24, 0
        %s347 = scalar_select %p346, %s24, 0
        %s348 = smul.addr %s347, 8
        %s349 = scalar_lea.vmem %s7, %s348
        %p350 = scmp.lt.s32.totalorder %s24, 0
        %s351 = scalar_select %p350, %s24, 0
        %s352 = smul.addr %s351, 8
        %s353 = scalar_lea.vmem %s1, %s352
        %s354 = smul.u32 8, %s24
        %s355 = smul.u32 8, %s24
        %p356 = scmp.lt.s32.totalorder %s24, 0
        %s357 = scalar_select %p356, %s24, 0
        %s358 = smul.addr %s357, 8
        %s359 = scalar_lea.vmem %s7, %s358
        %p360 = scmp.eq.s32.totalorder %s25, 0
        // Predicated region
        $region79: #{lstm_layer_forward.1} parent=73 // pred_check
          %p361 = pneg %p360
        $region80: #{lstm_layer_forward.1} parent=73 // pred_check_branch
          %363 = sbr.rel (%p361) target = $region82
        $region81: #{lstm_layer_forward.1} parent=73 // pred_region
          %364 = vst [vmem:[#allocation2] sm:$0xff] 0.0
          %365 = vst [vmem:[#allocation3] sm:$0xff] 0.0
        $region82: #{lstm_layer_forward.1} parent=73 // pred_fallthru
          _
        %s366 = sld [smem:[#allocation5 + %s24]]
        %p367 = scmp.ge.s32.totalorder %s25, %s366
        // Predicated region
        $region83: #{lstm_layer_forward.1} parent=73 // pred_check
          %p368 = pneg %p367
        $region84: #{lstm_layer_forward.1} parent=73 // pred_check_branch
          %370 = sbr.rel (%p368) target = $region86
        $region85: #{lstm_layer_forward.1} parent=73 // pred_region
          %371 = vst [vmem:[%s343] sm:$0xff] 0.0
          %372 = vst [vmem:[%s343 + $0x8] sm:$0xff] 0.0
          %373 = vst [vmem:[%s343 + $0x10] sm:$0xff] 0.0
          %374 = vst [vmem:[%s343 + $0x18] sm:$0xff] 0.0
          %375 = vst [vmem:[%s343 + $0x20] sm:$0xff] 0.0
          %376 = vst [vmem:[%s343 + $0x28] sm:$0xff] 0.0
          %377 = vst [vmem:[%s343 + $0x30] sm:$0xff] 0.0
          %378 = vst [vmem:[%s343 + $0x38] sm:$0xff] 0.0
        $region86: #{lstm_layer_forward.1} parent=73 // pred_fallthru
          _
        %p379 = scmp.lt.s32.totalorder %s25, %s366
        // Predicated region
        $region87: #{lstm_layer_forward.1} parent=73 // pred_check
          %p380 = pneg %p379
        $region88: #{lstm_layer_forward.1} parent=73 // pred_check_branch
          %382 = sbr.rel (%p380) target = $region90
        $region89: #{lstm_layer_forward.1} parent=73 // pred_region
          %s383 = smul.u32 %s25, 8
          %v384 = vld [vmem:[%s353] sm:$0xff]
          %385 = vset.pattern.permute.xlu0 0
          %386 = vperm.xlu0 %385, %v384
          %v387 = vpop.permute.xlu0 %386
          %v388 = vld [vmem:[%s5] sm:$0xf]
          %v390 = vperm.slane %v388, 0
          %v391 = vperm.slane %v388, 1
          %v392 = vperm.slane %v388, 2
          %v393 = vperm.slane %v388, 3
          %v398 = vld [vmem:[%s316] sm:$0x1]
          %v399 = vld [vmem:[%s316 + $0x8] sm:$0x1]
          %v400 = vld [vmem:[%s316 + $0x10] sm:$0x1]
          %v401 = vld [vmem:[%s316 + $0x18] sm:$0x1]
          %v402 = vld [vmem:[%s316 + $0x20] sm:$0x1]
          %v403 = vld [vmem:[%s316 + $0x28] sm:$0x1]
          %v404 = vld [vmem:[%s316 + $0x30] sm:$0x1]
          %v405 = vld [vmem:[%s316 + $0x38] sm:$0x1]
          %v406 = vld [vmem:[%s3] sm:$0xff]
          %v407 = vld [vmem:[%s3 + $0x8] sm:$0xff]
          %v408 = vld [vmem:[%s3 + $0x10] sm:$0xff]
          %v409 = vld [vmem:[%s3 + $0x18] sm:$0xff]
          %v410 = vld [vmem:[%s3 + $0x20] sm:$0xff]
          %v411 = vld [vmem:[%s3 + $0x28] sm:$0xff]
          %v412 = vld [vmem:[%s3 + $0x30] sm:$0xff]
          %v413 = vld [vmem:[%s3 + $0x38] sm:$0xff]
          %v414 = vld [vmem:[#allocation2] sm:$0xff]
          %v415 = vld [vmem:[%s4] sm:$0xff]
          %v416 = vld [vmem:[%s4 + $0x8] sm:$0xff]
          %v417 = vld [vmem:[%s4 + $0x10] sm:$0xff]
          %v418 = vld [vmem:[%s4 + $0x18] sm:$0xff]
          %v419 = vld [vmem:[%s4 + $0x20] sm:$0xff]
          %v420 = vld [vmem:[%s4 + $0x28] sm:$0xff]
          %v421 = vld [vmem:[%s4 + $0x30] sm:$0xff]
          %v422 = vld [vmem:[%s4 + $0x38] sm:$0xff]
          %v423 = vld [vmem:[%s4 + $0x40] sm:$0xff]
          %v424 = vld [vmem:[%s4 + $0x48] sm:$0xff]
          %v425 = vld [vmem:[%s4 + $0x50] sm:$0xff]
          %v426 = vld [vmem:[%s4 + $0x58] sm:$0xff]
          %v427 = vld [vmem:[%s4 + $0x60] sm:$0xff]
          %v428 = vld [vmem:[%s4 + $0x68] sm:$0xff]
          %v429 = vld [vmem:[%s4 + $0x70] sm:$0xff]
          %v430 = vld [vmem:[%s4 + $0x78] sm:$0xff]
          %v431 = vld [vmem:[%s4 + $0x80] sm:$0xff]
          %v432 = vld [vmem:[%s4 + $0x88] sm:$0xff]
          %v433 = vld [vmem:[%s4 + $0x90] sm:$0xff]
          %v434 = vld [vmem:[%s4 + $0x98] sm:$0xff]
          %v435 = vld [vmem:[%s4 + $0xa0] sm:$0xff]
          %v436 = vld [vmem:[%s4 + $0xa8] sm:$0xff]
          %v437 = vld [vmem:[%s4 + $0xb0] sm:$0xff]
          %v438 = vld [vmem:[%s4 + $0xb8] sm:$0xff]
          %v439 = vld [vmem:[%s4 + $0xc0] sm:$0xff]
          %v440 = vld [vmem:[%s4 + $0xc8] sm:$0xff]
          %v441 = vld [vmem:[%s4 + $0xd0] sm:$0xff]
          %v442 = vld [vmem:[%s4 + $0xd8] sm:$0xff]
          %v443 = vld [vmem:[%s4 + $0xe0] sm:$0xff]
          %v444 = vld [vmem:[%s4 + $0xe8] sm:$0xff]
          %v445 = vld [vmem:[%s4 + $0xf0] sm:$0xff]
          %v446 = vld [vmem:[%s4 + $0xf8] sm:$0xff]
          %v447 = vld [vmem:[%s4 + $0x100] sm:$0xff]
          %v448 = vld [vmem:[%s4 + $0x108] sm:$0xff]
          %v449 = vld [vmem:[%s4 + $0x110] sm:$0xff]
          %v450 = vld [vmem:[%s4 + $0x118] sm:$0xff]
          %v451 = vld [vmem:[%s4 + $0x120] sm:$0xff]
          %v452 = vld [vmem:[%s4 + $0x128] sm:$0xff]
          %v453 = vld [vmem:[%s4 + $0x130] sm:$0xff]
          %v454 = vld [vmem:[%s4 + $0x138] sm:$0xff]
          %v455 = vld [vmem:[%s4 + $0x140] sm:$0xff]
          %v456 = vld [vmem:[%s4 + $0x148] sm:$0xff]
          %v457 = vld [vmem:[%s4 + $0x150] sm:$0xff]
          %v458 = vld [vmem:[%s4 + $0x158] sm:$0xff]
          %v459 = vld [vmem:[%s4 + $0x160] sm:$0xff]
          %v460 = vld [vmem:[%s4 + $0x168] sm:$0xff]
          %v461 = vld [vmem:[%s4 + $0x170] sm:$0xff]
          %v462 = vld [vmem:[%s4 + $0x178] sm:$0xff]
          %v463 = vld [vmem:[%s4 + $0x180] sm:$0xff]
          %v464 = vld [vmem:[%s4 + $0x188] sm:$0xff]
          %v465 = vld [vmem:[%s4 + $0x190] sm:$0xff]
          %v466 = vld [vmem:[%s4 + $0x198] sm:$0xff]
          %v467 = vld [vmem:[%s4 + $0x1a0] sm:$0xff]
          %v468 = vld [vmem:[%s4 + $0x1a8] sm:$0xff]
          %v469 = vld [vmem:[%s4 + $0x1b0] sm:$0xff]
          %v470 = vld [vmem:[%s4 + $0x1b8] sm:$0xff]
          %v471 = vld [vmem:[%s4 + $0x1c0] sm:$0xff]
          %v472 = vld [vmem:[%s4 + $0x1c8] sm:$0xff]
          %v473 = vld [vmem:[%s4 + $0x1d0] sm:$0xff]
          %v474 = vld [vmem:[%s4 + $0x1d8] sm:$0xff]
          %v475 = vld [vmem:[%s4 + $0x1e0] sm:$0xff]
          %v476 = vld [vmem:[%s4 + $0x1e8] sm:$0xff]
          %v477 = vld [vmem:[%s4 + $0x1f0] sm:$0xff]
          %v478 = vld [vmem:[%s4 + $0x1f8] sm:$0xff]
          %479 = vmatpush.msra.mxu0 %v475
          %480 = vmatpush.msra.mxu0 %v471
          %481 = vmatpush.msra.mxu0 %v467
          %482 = vmatpush.msra.mxu0 %v463
          %483 = vmatpush.msra.mxu0 %v459
          %484 = vmatpush.msra.mxu0 %v455
          %485 = vmatpush.msra.mxu0 %v451
          %486 = vmatpush.msra.mxu0 %v447
          %487 = vmatpush.msra.mxu0 %v443
          %488 = vmatpush.msra.mxu0 %v439
          %489 = vmatpush.msra.mxu0 %v435
          %490 = vmatpush.msra.mxu0 %v431
          %491 = vmatpush.msra.mxu0 %v427
          %492 = vmatpush.msra.mxu0 %v423
          %493 = vmatpush.msra.mxu0 %v419
          %494 = vmatpush.msra.mxu0 %v415
          %495 = vmatmul.f32.gmra.mxu0 %v414
          %v496 = vpop.f32.mrf.mxu0
          %v497 = vadd.f32 0.0, %v496
          %498 = vdwg.mxu0
          %499 = vmatpush.msra.mxu0 %v476
          %500 = vmatpush.msra.mxu0 %v472
          %501 = vmatpush.msra.mxu0 %v468
          %502 = vmatpush.msra.mxu0 %v464
          %503 = vmatpush.msra.mxu0 %v460
          %504 = vmatpush.msra.mxu0 %v456
          %505 = vmatpush.msra.mxu0 %v452
          %506 = vmatpush.msra.mxu0 %v448
          %507 = vmatpush.msra.mxu0 %v444
          %508 = vmatpush.msra.mxu0 %v440
          %509 = vmatpush.msra.mxu0 %v436
          %510 = vmatpush.msra.mxu0 %v432
          %511 = vmatpush.msra.mxu0 %v428
          %512 = vmatpush.msra.mxu0 %v424
          %513 = vmatpush.msra.mxu0 %v420
          %514 = vmatpush.msra.mxu0 %v416
          %515 = vmatmul.f32.gmra.mxu0 %v414
          %v516 = vpop.f32.mrf.mxu0
          %v517 = vadd.f32 0.0, %v516
          %518 = vdwg.mxu0
          %519 = vmatpush.msra.mxu0 %v477
          %520 = vmatpush.msra.mxu0 %v473
          %521 = vmatpush.msra.mxu0 %v469
          %522 = vmatpush.msra.mxu0 %v465
          %523 = vmatpush.msra.mxu0 %v461
          %524 = vmatpush.msra.mxu0 %v457
          %525 = vmatpush.msra.mxu0 %v453
          %526 = vmatpush.msra.mxu0 %v449
          %527 = vmatpush.msra.mxu0 %v445
          %528 = vmatpush.msra.mxu0 %v441
          %529 = vmatpush.msra.mxu0 %v437
          %530 = vmatpush.msra.mxu0 %v433
          %531 = vmatpush.msra.mxu0 %v429
          %532 = vmatpush.msra.mxu0 %v425
          %533 = vmatpush.msra.mxu0 %v421
          %534 = vmatpush.msra.mxu0 %v417
          %535 = vmatmul.f32.gmra.mxu0 %v414
          %v536 = vpop.f32.mrf.mxu0
          %v537 = vadd.f32 0.0, %v536
          %538 = vdwg.mxu0
          %539 = vmatpush.msra.mxu0 %v478
          %540 = vmatpush.msra.mxu0 %v474
          %541 = vmatpush.msra.mxu0 %v470
          %542 = vmatpush.msra.mxu0 %v466
          %543 = vmatpush.msra.mxu0 %v462
          %544 = vmatpush.msra.mxu0 %v458
          %545 = vmatpush.msra.mxu0 %v454
          %546 = vmatpush.msra.mxu0 %v450
          %547 = vmatpush.msra.mxu0 %v446
          %548 = vmatpush.msra.mxu0 %v442
          %549 = vmatpush.msra.mxu0 %v438
          %550 = vmatpush.msra.mxu0 %v434
          %551 = vmatpush.msra.mxu0 %v430
          %552 = vmatpush.msra.mxu0 %v426
          %553 = vmatpush.msra.mxu0 %v422
          %554 = vmatpush.msra.mxu0 %v418
          %555 = vmatmul.f32.gmra.mxu0 %v414
          %v556 = vpop.f32.mrf.mxu0
          %v557 = vadd.f32 0.0, %v556
          %558 = vdwg.mxu0
          %v567 = vrot.slane %v399, 7
          %vm568 = vcmask 1041409
          %v569 = vsel %vm568, %v567, %v398
          %v570 = vrot.slane %v400, 6
          %vm571 = vcmask 1042434
          %v572 = vsel %vm571, %v570, %v569
          %v573 = vrot.slane %v401, 5
          %vm574 = vcmask 1043459
          %v575 = vsel %vm574, %v573, %v572
          %v576 = vrot.slane %v402, 4
          %vm577 = vcmask 1044484
          %v578 = vsel %vm577, %v576, %v575
          %v579 = vrot.slane %v403, 3
          %vm580 = vcmask 1045509
          %v581 = vsel %vm580, %v579, %v578
          %v582 = vrot.slane %v404, 2
          %vm583 = vcmask 1046534
          %v584 = vsel %vm583, %v582, %v581
          %v585 = vrot.slane %v405, 1
          %vm586 = vcmask 1047559
          %v587 = vsel %vm586, %v585, %v584
          %vm588 = vcmask 130048
          %v589 = vsel %vm588, %v587, 0
          %591 = vmatpush.msra.mxu0 0.0
          %592 = vmatpush.msra.mxu0 0.0
          %593 = vmatpush.msra.mxu0 0.0
          %594 = vmatpush.msra.mxu0 0.0
          %595 = vmatpush.msra.mxu0 0.0
          %596 = vmatpush.msra.mxu0 0.0
          %597 = vmatpush.msra.mxu0 0.0
          %598 = vmatpush.msra.mxu0 0.0
          %599 = vmatpush.msra.mxu0 0.0
          %600 = vmatpush.msra.mxu0 0.0
          %601 = vmatpush.msra.mxu0 0.0
          %602 = vmatpush.msra.mxu0 0.0
          %603 = vmatpush.msra.mxu0 0.0
          %604 = vmatpush.msra.mxu0 0.0
          %605 = vmatpush.msra.mxu0 %v410
          %606 = vmatpush.msra.mxu0 %v406
          %607 = vmatmul.f32.gmra.mxu0 %v589
          %v608 = vpop.f32.mrf.mxu0
          %v609 = vadd.f32 %v497, %v608
          %610 = vdwg.mxu0
          %611 = vmatpush.msra.mxu0 0.0
          %612 = vmatpush.msra.mxu0 0.0
          %613 = vmatpush.msra.mxu0 0.0
          %614 = vmatpush.msra.mxu0 0.0
          %615 = vmatpush.msra.mxu0 0.0
          %616 = vmatpush.msra.mxu0 0.0
          %617 = vmatpush.msra.mxu0 0.0
          %618 = vmatpush.msra.mxu0 0.0
          %619 = vmatpush.msra.mxu0 0.0
          %620 = vmatpush.msra.mxu0 0.0
          %621 = vmatpush.msra.mxu0 0.0
          %622 = vmatpush.msra.mxu0 0.0
          %623 = vmatpush.msra.mxu0 0.0
          %624 = vmatpush.msra.mxu0 0.0
          %625 = vmatpush.msra.mxu0 %v411
          %626 = vmatpush.msra.mxu0 %v407
          %627 = vmatmul.f32.gmra.mxu0 %v589
          %v628 = vpop.f32.mrf.mxu0
          %v629 = vadd.f32 %v517, %v628
          %630 = vdwg.mxu0
          %631 = vmatpush.msra.mxu0 0.0
          %632 = vmatpush.msra.mxu0 0.0
          %633 = vmatpush.msra.mxu0 0.0
          %634 = vmatpush.msra.mxu0 0.0
          %635 = vmatpush.msra.mxu0 0.0
          %636 = vmatpush.msra.mxu0 0.0
          %637 = vmatpush.msra.mxu0 0.0
          %638 = vmatpush.msra.mxu0 0.0
          %639 = vmatpush.msra.mxu0 0.0
          %640 = vmatpush.msra.mxu0 0.0
          %641 = vmatpush.msra.mxu0 0.0
          %642 = vmatpush.msra.mxu0 0.0
          %643 = vmatpush.msra.mxu0 0.0
          %644 = vmatpush.msra.mxu0 0.0
          %645 = vmatpush.msra.mxu0 %v412
          %646 = vmatpush.msra.mxu0 %v408
          %647 = vmatmul.f32.gmra.mxu0 %v589
          %v648 = vpop.f32.mrf.mxu0
          %v649 = vadd.f32 %v537, %v648
          %650 = vdwg.mxu0
          %651 = vmatpush.msra.mxu0 0.0
          %652 = vmatpush.msra.mxu0 0.0
          %653 = vmatpush.msra.mxu0 0.0
          %654 = vmatpush.msra.mxu0 0.0
          %655 = vmatpush.msra.mxu0 0.0
          %656 = vmatpush.msra.mxu0 0.0
          %657 = vmatpush.msra.mxu0 0.0
          %658 = vmatpush.msra.mxu0 0.0
          %659 = vmatpush.msra.mxu0 0.0
          %660 = vmatpush.msra.mxu0 0.0
          %661 = vmatpush.msra.mxu0 0.0
          %662 = vmatpush.msra.mxu0 0.0
          %663 = vmatpush.msra.mxu0 0.0
          %664 = vmatpush.msra.mxu0 0.0
          %665 = vmatpush.msra.mxu0 %v413
          %666 = vmatpush.msra.mxu0 %v409
          %667 = vmatmul.f32.gmra.mxu0 %v589
          %v668 = vpop.f32.mrf.mxu0
          %v669 = vadd.f32 %v557, %v668
          %670 = vdwg.mxu0
          %v671 = vadd.f32 %v609, %v390
          %v672 = vadd.f32 %v629, %v391
          %v673 = vadd.f32 %v649, %v392
          %v674 = vadd.f32 %v669, %v393
          %v675 = vxor.u32 %v671, 2147483648
          %v676 = vmul.f32 %v675, 1.442695
          %v677 = vpow.pop %v676
          %v678 = vadd.f32 %v677, 1.0
          %v679 = vrcp.pop %v678
          %v680 = vmul.f32 %v678, %v679
          %v681 = vsub.f32 1.0, %v680
          %v682 = vmul.f32 %v679, %v681
          %v683 = vadd.f32 %v679, %v682
          %vm684 = vweird.f32 %v678
          %vm685 = vweird.f32 %v679
          %vm686 = vmor %vm684, %vm685
          %v687 = vsel %vm686, %v679, %v683
          %v688 = vand.u32 2147483647, %v678
          %vm689 = vcmp.eq.f32.partialorder %v688, 8.507059e+37
          %v690 = vand.u32 %v678, 2147483648
          %v691 = vor.u32 1.1754944e-38, %v690
          %v692 = vsel %vm689, %v691, %v687
          %v693 = vmul.f32 1.0, %v692
          %v694 = vxor.u32 %v672, 2147483648
          %v695 = vmul.f32 %v694, 1.442695
          %v696 = vpow.pop %v695
          %v697 = vadd.f32 %v696, 1.0
          %v698 = vrcp.pop %v697
          %v699 = vmul.f32 %v697, %v698
          %v700 = vsub.f32 1.0, %v699
          %v701 = vmul.f32 %v698, %v700
          %v702 = vadd.f32 %v698, %v701
          %vm703 = vweird.f32 %v697
          %vm704 = vweird.f32 %v698
          %vm705 = vmor %vm703, %vm704
          %v706 = vsel %vm705, %v698, %v702
          %v707 = vand.u32 2147483647, %v697
          %vm708 = vcmp.eq.f32.partialorder %v707, 8.507059e+37
          %v709 = vand.u32 %v697, 2147483648
          %v710 = vor.u32 1.1754944e-38, %v709
          %v711 = vsel %vm708, %v710, %v706
          %v712 = vmul.f32 1.0, %v711
          %v713 = vtanh.pop %v673
          %v714 = vxor.u32 %v674, 2147483648
          %v715 = vmul.f32 %v714, 1.442695
          %v716 = vpow.pop %v715
          %v717 = vadd.f32 %v716, 1.0
          %v718 = vrcp.pop %v717
          %v719 = vmul.f32 %v717, %v718
          %v720 = vsub.f32 1.0, %v719
          %v721 = vmul.f32 %v718, %v720
          %v722 = vadd.f32 %v718, %v721
          %vm723 = vweird.f32 %v717
          %vm724 = vweird.f32 %v718
          %vm725 = vmor %vm723, %vm724
          %v726 = vsel %vm725, %v718, %v722
          %v727 = vand.u32 2147483647, %v717
          %vm728 = vcmp.eq.f32.partialorder %v727, 8.507059e+37
          %v729 = vand.u32 %v717, 2147483648
          %v730 = vor.u32 1.1754944e-38, %v729
          %v731 = vsel %vm728, %v730, %v726
          %v732 = vmul.f32 1.0, %v731
          %v733 = vld [vmem:[#allocation3] sm:$0xff]
          %v734 = vmul.f32 %v712, %v733
          %v735 = vmul.f32 %v693, %v713
          %v736 = vadd.f32 %v734, %v735
          %v737 = vtanh.pop %v736
          %v738 = vmul.f32 %v732, %v737
          %v739 = vstv %s383
          %vm740 = vcmp.gt.s32.totalorder %v387, %v739
          %v741 = vsel %vm740, %v738, %v414
          %742 = vst [vmem:[#allocation2] sm:$0xff] %v741
          %v743 = vld [vmem:[#allocation3] sm:$0xff]
          %v744 = vsel %vm740, %v736, %v743
          %745 = vst [vmem:[#allocation3] sm:$0xff] %v744
          %v746 = vsel %vm740, %v738, 0.0
          %v748 = vrot.slane %v746, 1
          %v749 = vrot.slane %v746, 2
          %v750 = vrot.slane %v746, 3
          %v751 = vrot.slane %v746, 4
          %v752 = vrot.slane %v746, 5
          %v753 = vrot.slane %v746, 6
          %v754 = vrot.slane %v746, 7
          %762 = vst [vmem:[%s343] sm:$0x1] %v746
          %763 = vst [vmem:[%s343 + $0x8] sm:$0x1] %v748
          %764 = vst [vmem:[%s343 + $0x10] sm:$0x1] %v749
          %765 = vst [vmem:[%s343 + $0x18] sm:$0x1] %v750
          %766 = vst [vmem:[%s343 + $0x20] sm:$0x1] %v751
          %767 = vst [vmem:[%s343 + $0x28] sm:$0x1] %v752
          %768 = vst [vmem:[%s343 + $0x30] sm:$0x1] %v753
          %769 = vst [vmem:[%s343 + $0x38] sm:$0x1] %v754
          %v770 = vld [vmem:[%s316 + $0x1] sm:$0x1]
          %v771 = vld [vmem:[%s316 + $0x9] sm:$0x1]
          %v772 = vld [vmem:[%s316 + $0x11] sm:$0x1]
          %v773 = vld [vmem:[%s316 + $0x19] sm:$0x1]
          %v774 = vld [vmem:[%s316 + $0x21] sm:$0x1]
          %v775 = vld [vmem:[%s316 + $0x29] sm:$0x1]
          %v776 = vld [vmem:[%s316 + $0x31] sm:$0x1]
          %v777 = vld [vmem:[%s316 + $0x39] sm:$0x1]
          %v778 = vld [vmem:[%s3] sm:$0xff]
          %v779 = vld [vmem:[%s3 + $0x8] sm:$0xff]
          %v780 = vld [vmem:[%s3 + $0x10] sm:$0xff]
          %v781 = vld [vmem:[%s3 + $0x18] sm:$0xff]
          %v782 = vld [vmem:[%s3 + $0x20] sm:$0xff]
          %v783 = vld [vmem:[%s3 + $0x28] sm:$0xff]
          %v784 = vld [vmem:[%s3 + $0x30] sm:$0xff]
          %v785 = vld [vmem:[%s3 + $0x38] sm:$0xff]
          %v786 = vld [vmem:[#allocation2] sm:$0xff]
          %v787 = vld [vmem:[%s4] sm:$0xff]
          %v788 = vld [vmem:[%s4 + $0x8] sm:$0xff]
          %v789 = vld [vmem:[%s4 + $0x10] sm:$0xff]
          %v790 = vld [vmem:[%s4 + $0x18] sm:$0xff]
          %v791 = vld [vmem:[%s4 + $0x20] sm:$0xff]
          %v792 = vld [vmem:[%s4 + $0x28] sm:$0xff]
          %v793 = vld [vmem:[%s4 + $0x30] sm:$0xff]
          %v794 = vld [vmem:[%s4 + $0x38] sm:$0xff]
          %v795 = vld [vmem:[%s4 + $0x40] sm:$0xff]
          %v796 = vld [vmem:[%s4 + $0x48] sm:$0xff]
          %v797 = vld [vmem:[%s4 + $0x50] sm:$0xff]
          %v798 = vld [vmem:[%s4 + $0x58] sm:$0xff]
          %v799 = vld [vmem:[%s4 + $0x60] sm:$0xff]
          %v800 = vld [vmem:[%s4 + $0x68] sm:$0xff]
          %v801 = vld [vmem:[%s4 + $0x70] sm:$0xff]
          %v802 = vld [vmem:[%s4 + $0x78] sm:$0xff]
          %v803 = vld [vmem:[%s4 + $0x80] sm:$0xff]
          %v804 = vld [vmem:[%s4 + $0x88] sm:$0xff]
          %v805 = vld [vmem:[%s4 + $0x90] sm:$0xff]
          %v806 = vld [vmem:[%s4 + $0x98] sm:$0xff]
          %v807 = vld [vmem:[%s4 + $0xa0] sm:$0xff]
          %v808 = vld [vmem:[%s4 + $0xa8] sm:$0xff]
          %v809 = vld [vmem:[%s4 + $0xb0] sm:$0xff]
          %v810 = vld [vmem:[%s4 + $0xb8] sm:$0xff]
          %v811 = vld [vmem:[%s4 + $0xc0] sm:$0xff]
          %v812 = vld [vmem:[%s4 + $0xc8] sm:$0xff]
          %v813 = vld [vmem:[%s4 + $0xd0] sm:$0xff]
          %v814 = vld [vmem:[%s4 + $0xd8] sm:$0xff]
          %v815 = vld [vmem:[%s4 + $0xe0] sm:$0xff]
          %v816 = vld [vmem:[%s4 + $0xe8] sm:$0xff]
          %v817 = vld [vmem:[%s4 + $0xf0] sm:$0xff]
          %v818 = vld [vmem:[%s4 + $0xf8] sm:$0xff]
          %v819 = vld [vmem:[%s4 + $0x100] sm:$0xff]
          %v820 = vld [vmem:[%s4 + $0x108] sm:$0xff]
          %v821 = vld [vmem:[%s4 + $0x110] sm:$0xff]
          %v822 = vld [vmem:[%s4 + $0x118] sm:$0xff]
          %v823 = vld [vmem:[%s4 + $0x120] sm:$0xff]
          %v824 = vld [vmem:[%s4 + $0x128] sm:$0xff]
          %v825 = vld [vmem:[%s4 + $0x130] sm:$0xff]
          %v826 = vld [vmem:[%s4 + $0x138] sm:$0xff]
          %v827 = vld [vmem:[%s4 + $0x140] sm:$0xff]
          %v828 = vld [vmem:[%s4 + $0x148] sm:$0xff]
          %v829 = vld [vmem:[%s4 + $0x150] sm:$0xff]
          %v830 = vld [vmem:[%s4 + $0x158] sm:$0xff]
          %v831 = vld [vmem:[%s4 + $0x160] sm:$0xff]
          %v832 = vld [vmem:[%s4 + $0x168] sm:$0xff]
          %v833 = vld [vmem:[%s4 + $0x170] sm:$0xff]
          %v834 = vld [vmem:[%s4 + $0x178] sm:$0xff]
          %v835 = vld [vmem:[%s4 + $0x180] sm:$0xff]
          %v836 = vld [vmem:[%s4 + $0x188] sm:$0xff]
          %v837 = vld [vmem:[%s4 + $0x190] sm:$0xff]
          %v838 = vld [vmem:[%s4 + $0x198] sm:$0xff]
          %v839 = vld [vmem:[%s4 + $0x1a0] sm:$0xff]
          %v840 = vld [vmem:[%s4 + $0x1a8] sm:$0xff]
          %v841 = vld [vmem:[%s4 + $0x1b0] sm:$0xff]
          %v842 = vld [vmem:[%s4 + $0x1b8] sm:$0xff]
          %v843 = vld [vmem:[%s4 + $0x1c0] sm:$0xff]
          %v844 = vld [vmem:[%s4 + $0x1c8] sm:$0xff]
          %v845 = vld [vmem:[%s4 + $0x1d0] sm:$0xff]
          %v846 = vld [vmem:[%s4 + $0x1d8] sm:$0xff]
          %v847 = vld [vmem:[%s4 + $0x1e0] sm:$0xff]
          %v848 = vld [vmem:[%s4 + $0x1e8] sm:$0xff]
          %v849 = vld [vmem:[%s4 + $0x1f0] sm:$0xff]
          %v850 = vld [vmem:[%s4 + $0x1f8] sm:$0xff]
          %851 = vmatpush.msra.mxu0 %v847
          %852 = vmatpush.msra.mxu0 %v843
          %853 = vmatpush.msra.mxu0 %v839
          %854 = vmatpush.msra.mxu0 %v835
          %855 = vmatpush.msra.mxu0 %v831
          %856 = vmatpush.msra.mxu0 %v827
          %857 = vmatpush.msra.mxu0 %v823
          %858 = vmatpush.msra.mxu0 %v819
          %859 = vmatpush.msra.mxu0 %v815
          %860 = vmatpush.msra.mxu0 %v811
          %861 = vmatpush.msra.mxu0 %v807
          %862 = vmatpush.msra.mxu0 %v803
          %863 = vmatpush.msra.mxu0 %v799
          %864 = vmatpush.msra.mxu0 %v795
          %865 = vmatpush.msra.mxu0 %v791
          %866 = vmatpush.msra.mxu0 %v787
          %867 = vmatmul.f32.gmra.mxu0 %v786
          %v868 = vpop.f32.mrf.mxu0
          %v869 = vadd.f32 0.0, %v868
          %870 = vdwg.mxu0
          %871 = vmatpush.msra.mxu0 %v848
          %872 = vmatpush.msra.mxu0 %v844
          %873 = vmatpush.msra.mxu0 %v840
          %874 = vmatpush.msra.mxu0 %v836
          %875 = vmatpush.msra.mxu0 %v832
          %876 = vmatpush.msra.mxu0 %v828
          %877 = vmatpush.msra.mxu0 %v824
          %878 = vmatpush.msra.mxu0 %v820
          %879 = vmatpush.msra.mxu0 %v816
          %880 = vmatpush.msra.mxu0 %v812
          %881 = vmatpush.msra.mxu0 %v808
          %882 = vmatpush.msra.mxu0 %v804
          %883 = vmatpush.msra.mxu0 %v800
          %884 = vmatpush.msra.mxu0 %v796
          %885 = vmatpush.msra.mxu0 %v792
          %886 = vmatpush.msra.mxu0 %v788
          %887 = vmatmul.f32.gmra.mxu0 %v786
          %v888 = vpop.f32.mrf.mxu0
          %v889 = vadd.f32 0.0, %v888
          %890 = vdwg.mxu0
          %891 = vmatpush.msra.mxu0 %v849
          %892 = vmatpush.msra.mxu0 %v845
          %893 = vmatpush.msra.mxu0 %v841
          %894 = vmatpush.msra.mxu0 %v837
          %895 = vmatpush.msra.mxu0 %v833
          %896 = vmatpush.msra.mxu0 %v829
          %897 = vmatpush.msra.mxu0 %v825
          %898 = vmatpush.msra.mxu0 %v821
          %899 = vmatpush.msra.mxu0 %v817
          %900 = vmatpush.msra.mxu0 %v813
          %901 = vmatpush.msra.mxu0 %v809
          %902 = vmatpush.msra.mxu0 %v805
          %903 = vmatpush.msra.mxu0 %v801
          %904 = vmatpush.msra.mxu0 %v797
          %905 = vmatpush.msra.mxu0 %v793
          %906 = vmatpush.msra.mxu0 %v789
          %907 = vmatmul.f32.gmra.mxu0 %v786
          %v908 = vpop.f32.mrf.mxu0
          %v909 = vadd.f32 0.0, %v908
          %910 = vdwg.mxu0
          %911 = vmatpush.msra.mxu0 %v850
          %912 = vmatpush.msra.mxu0 %v846
          %913 = vmatpush.msra.mxu0 %v842
          %914 = vmatpush.msra.mxu0 %v838
          %915 = vmatpush.msra.mxu0 %v834
          %916 = vmatpush.msra.mxu0 %v830
          %917 = vmatpush.msra.mxu0 %v826
          %918 = vmatpush.msra.mxu0 %v822
          %919 = vmatpush.msra.mxu0 %v818
          %920 = vmatpush.msra.mxu0 %v814
          %921 = vmatpush.msra.mxu0 %v810
          %922 = vmatpush.msra.mxu0 %v806
          %923 = vmatpush.msra.mxu0 %v802
          %924 = vmatpush.msra.mxu0 %v798
          %925 = vmatpush.msra.mxu0 %v794
          %926 = vmatpush.msra.mxu0 %v790
          %927 = vmatmul.f32.gmra.mxu0 %v786
          %v928 = vpop.f32.mrf.mxu0
          %v929 = vadd.f32 0.0, %v928
          %930 = vdwg.mxu0
          %v939 = vrot.slane %v771, 7
          %v940 = vsel %vm568, %v939, %v770
          %v941 = vrot.slane %v772, 6
          %v942 = vsel %vm571, %v941, %v940
          %v943 = vrot.slane %v773, 5
          %v944 = vsel %vm574, %v943, %v942
          %v945 = vrot.slane %v774, 4
          %v946 = vsel %vm577, %v945, %v944
          %v947 = vrot.slane %v775, 3
          %v948 = vsel %vm580, %v947, %v946
          %v949 = vrot.slane %v776, 2
          %v950 = vsel %vm583, %v949, %v948
          %v951 = vrot.slane %v777, 1
          %v952 = vsel %vm586, %v951, %v950
          %v953 = vsel %vm588, %v952, 0
          %955 = vmatpush.msra.mxu0 0.0
          %956 = vmatpush.msra.mxu0 0.0
          %957 = vmatpush.msra.mxu0 0.0
          %958 = vmatpush.msra.mxu0 0.0
          %959 = vmatpush.msra.mxu0 0.0
          %960 = vmatpush.msra.mxu0 0.0
          %961 = vmatpush.msra.mxu0 0.0
          %962 = vmatpush.msra.mxu0 0.0
          %963 = vmatpush.msra.mxu0 0.0
          %964 = vmatpush.msra.mxu0 0.0
          %965 = vmatpush.msra.mxu0 0.0
          %966 = vmatpush.msra.mxu0 0.0
          %967 = vmatpush.msra.mxu0 0.0
          %968 = vmatpush.msra.mxu0 0.0
          %969 = vmatpush.msra.mxu0 %v782
          %970 = vmatpush.msra.mxu0 %v778
          %971 = vmatmul.f32.gmra.mxu0 %v953
          %v972 = vpop.f32.mrf.mxu0
          %v973 = vadd.f32 %v869, %v972
          %974 = vdwg.mxu0
          %975 = vmatpush.msra.mxu0 0.0
          %976 = vmatpush.msra.mxu0 0.0
          %977 = vmatpush.msra.mxu0 0.0
          %978 = vmatpush.msra.mxu0 0.0
          %979 = vmatpush.msra.mxu0 0.0
          %980 = vmatpush.msra.mxu0 0.0
          %981 = vmatpush.msra.mxu0 0.0
          %982 = vmatpush.msra.mxu0 0.0
          %983 = vmatpush.msra.mxu0 0.0
          %984 = vmatpush.msra.mxu0 0.0
          %985 = vmatpush.msra.mxu0 0.0
          %986 = vmatpush.msra.mxu0 0.0
          %987 = vmatpush.msra.mxu0 0.0
          %988 = vmatpush.msra.mxu0 0.0
          %989 = vmatpush.msra.mxu0 %v783
          %990 = vmatpush.msra.mxu0 %v779
          %991 = vmatmul.f32.gmra.mxu0 %v953
          %v992 = vpop.f32.mrf.mxu0
          %v993 = vadd.f32 %v889, %v992
          %994 = vdwg.mxu0
          %995 = vmatpush.msra.mxu0 0.0
          %996 = vmatpush.msra.mxu0 0.0
          %997 = vmatpush.msra.mxu0 0.0
          %998 = vmatpush.msra.mxu0 0.0
          %999 = vmatpush.msra.mxu0 0.0
          %1000 = vmatpush.msra.mxu0 0.0
          %1001 = vmatpush.msra.mxu0 0.0
          %1002 = vmatpush.msra.mxu0 0.0
          %1003 = vmatpush.msra.mxu0 0.0
          %1004 = vmatpush.msra.mxu0 0.0
          %1005 = vmatpush.msra.mxu0 0.0
          %1006 = vmatpush.msra.mxu0 0.0
          %1007 = vmatpush.msra.mxu0 0.0
          %1008 = vmatpush.msra.mxu0 0.0
          %1009 = vmatpush.msra.mxu0 %v784
          %1010 = vmatpush.msra.mxu0 %v780
          %1011 = vmatmul.f32.gmra.mxu0 %v953
          %v1012 = vpop.f32.mrf.mxu0
          %v1013 = vadd.f32 %v909, %v1012
          %1014 = vdwg.mxu0
          %1015 = vmatpush.msra.mxu0 0.0
          %1016 = vmatpush.msra.mxu0 0.0
          %1017 = vmatpush.msra.mxu0 0.0
          %1018 = vmatpush.msra.mxu0 0.0
          %1019 = vmatpush.msra.mxu0 0.0
          %1020 = vmatpush.msra.mxu0 0.0
          %1021 = vmatpush.msra.mxu0 0.0
          %1022 = vmatpush.msra.mxu0 0.0
          %1023 = vmatpush.msra.mxu0 0.0
          %1024 = vmatpush.msra.mxu0 0.0
          %1025 = vmatpush.msra.mxu0 0.0
          %1026 = vmatpush.msra.mxu0 0.0
          %1027 = vmatpush.msra.mxu0 0.0
          %1028 = vmatpush.msra.mxu0 0.0
          %1029 = vmatpush.msra.mxu0 %v785
          %1030 = vmatpush.msra.mxu0 %v781
          %1031 = vmatmul.f32.gmra.mxu0 %v953
          %v1032 = vpop.f32.mrf.mxu0
          %v1033 = vadd.f32 %v929, %v1032
          %1034 = vdwg.mxu0
          %v1035 = vadd.f32 %v973, %v390
          %v1036 = vadd.f32 %v993, %v391
          %v1037 = vadd.f32 %v1013, %v392
          %v1038 = vadd.f32 %v1033, %v393
          %v1039 = vxor.u32 %v1035, 2147483648
          %v1040 = vmul.f32 %v1039, 1.442695
          %v1041 = vpow.pop %v1040
          %v1042 = vadd.f32 %v1041, 1.0
          %v1043 = vrcp.pop %v1042
          %v1044 = vmul.f32 %v1042, %v1043
          %v1045 = vsub.f32 1.0, %v1044
          %v1046 = vmul.f32 %v1043, %v1045
          %v1047 = vadd.f32 %v1043, %v1046
          %vm1048 = vweird.f32 %v1042
          %vm1049 = vweird.f32 %v1043
          %vm1050 = vmor %vm1048, %vm1049
          %v1051 = vsel %vm1050, %v1043, %v1047
          %v1052 = vand.u32 2147483647, %v1042
          %vm1053 = vcmp.eq.f32.partialorder %v1052, 8.507059e+37
          %v1054 = vand.u32 %v1042, 2147483648
          %v1055 = vor.u32 1.1754944e-38, %v1054
          %v1056 = vsel %vm1053, %v1055, %v1051
          %v1057 = vmul.f32 1.0, %v1056
          %v1058 = vxor.u32 %v1036, 2147483648
          %v1059 = vmul.f32 %v1058, 1.442695
          %v1060 = vpow.pop %v1059
          %v1061 = vadd.f32 %v1060, 1.0
          %v1062 = vrcp.pop %v1061
          %v1063 = vmul.f32 %v1061, %v1062
          %v1064 = vsub.f32 1.0, %v1063
          %v1065 = vmul.f32 %v1062, %v1064
          %v1066 = vadd.f32 %v1062, %v1065
          %vm1067 = vweird.f32 %v1061
          %vm1068 = vweird.f32 %v1062
          %vm1069 = vmor %vm1067, %vm1068
          %v1070 = vsel %vm1069, %v1062, %v1066
          %v1071 = vand.u32 2147483647, %v1061
          %vm1072 = vcmp.eq.f32.partialorder %v1071, 8.507059e+37
          %v1073 = vand.u32 %v1061, 2147483648
          %v1074 = vor.u32 1.1754944e-38, %v1073
          %v1075 = vsel %vm1072, %v1074, %v1070
          %v1076 = vmul.f32 1.0, %v1075
          %v1077 = vtanh.pop %v1037
          %v1078 = vxor.u32 %v1038, 2147483648
          %v1079 = vmul.f32 %v1078, 1.442695
          %v1080 = vpow.pop %v1079
          %v1081 = vadd.f32 %v1080, 1.0
          %v1082 = vrcp.pop %v1081
          %v1083 = vmul.f32 %v1081, %v1082
          %v1084 = vsub.f32 1.0, %v1083
          %v1085 = vmul.f32 %v1082, %v1084
          %v1086 = vadd.f32 %v1082, %v1085
          %vm1087 = vweird.f32 %v1081
          %vm1088 = vweird.f32 %v1082
          %vm1089 = vmor %vm1087, %vm1088
          %v1090 = vsel %vm1089, %v1082, %v1086
          %v1091 = vand.u32 2147483647, %v1081
          %vm1092 = vcmp.eq.f32.partialorder %v1091, 8.507059e+37
          %v1093 = vand.u32 %v1081, 2147483648
          %v1094 = vor.u32 1.1754944e-38, %v1093
          %v1095 = vsel %vm1092, %v1094, %v1090
          %v1096 = vmul.f32 1.0, %v1095
          %v1097 = vld [vmem:[#allocation3] sm:$0xff]
          %v1098 = vmul.f32 %v1076, %v1097
          %v1099 = vmul.f32 %v1057, %v1077
          %v1100 = vadd.f32 %v1098, %v1099
          %v1101 = vtanh.pop %v1100
          %v1102 = vmul.f32 %v1096, %v1101
          %s1103 = sadd.s32 %s383, 1
          %v1104 = vstv %s1103
          %vm1105 = vcmp.gt.s32.totalorder %v387, %v1104
          %v1106 = vsel %vm1105, %v1102, %v786
          %1107 = vst [vmem:[#allocation2] sm:$0xff] %v1106
          %v1108 = vld [vmem:[#allocation3] sm:$0xff]
          %v1109 = vsel %vm1105, %v1100, %v1108
          %1110 = vst [vmem:[#allocation3] sm:$0xff] %v1109
          %v1111 = vsel %vm1105, %v1102, 0.0
          %v1113 = vrot.slane %v1111, 1
          %v1114 = vrot.slane %v1111, 2
          %v1115 = vrot.slane %v1111, 3
          %v1116 = vrot.slane %v1111, 4
          %v1117 = vrot.slane %v1111, 5
          %v1118 = vrot.slane %v1111, 6
          %v1119 = vrot.slane %v1111, 7
          %1127 = vst [vmem:[%s343 + $0x1] sm:$0x1] %v1111
          %1128 = vst [vmem:[%s343 + $0x9] sm:$0x1] %v1113
          %1129 = vst [vmem:[%s343 + $0x11] sm:$0x1] %v1114
          %1130 = vst [vmem:[%s343 + $0x19] sm:$0x1] %v1115
          %1131 = vst [vmem:[%s343 + $0x21] sm:$0x1] %v1116
          %1132 = vst [vmem:[%s343 + $0x29] sm:$0x1] %v1117
          %1133 = vst [vmem:[%s343 + $0x31] sm:$0x1] %v1118
          %1134 = vst [vmem:[%s343 + $0x39] sm:$0x1] %v1119
          %v1135 = vld [vmem:[%s316 + $0x2] sm:$0x1]
          %v1136 = vld [vmem:[%s316 + $0xa] sm:$0x1]
          %v1137 = vld [vmem:[%s316 + $0x12] sm:$0x1]
          %v1138 = vld [vmem:[%s316 + $0x1a] sm:$0x1]
          %v1139 = vld [vmem:[%s316 + $0x22] sm:$0x1]
          %v1140 = vld [vmem:[%s316 + $0x2a] sm:$0x1]
          %v1141 = vld [vmem:[%s316 + $0x32] sm:$0x1]
          %v1142 = vld [vmem:[%s316 + $0x3a] sm:$0x1]
          %v1143 = vld [vmem:[%s3] sm:$0xff]
          %v1144 = vld [vmem:[%s3 + $0x8] sm:$0xff]
          %v1145 = vld [vmem:[%s3 + $0x10] sm:$0xff]
          %v1146 = vld [vmem:[%s3 + $0x18] sm:$0xff]
          %v1147 = vld [vmem:[%s3 + $0x20] sm:$0xff]
          %v1148 = vld [vmem:[%s3 + $0x28] sm:$0xff]
          %v1149 = vld [vmem:[%s3 + $0x30] sm:$0xff]
          %v1150 = vld [vmem:[%s3 + $0x38] sm:$0xff]
          %v1151 = vld [vmem:[#allocation2] sm:$0xff]
          %v1152 = vld [vmem:[%s4] sm:$0xff]
          %v1153 = vld [vmem:[%s4 + $0x8] sm:$0xff]
          %v1154 = vld [vmem:[%s4 + $0x10] sm:$0xff]
          %v1155 = vld [vmem:[%s4 + $0x18] sm:$0xff]
          %v1156 = vld [vmem:[%s4 + $0x20] sm:$0xff]
          %v1157 = vld [vmem:[%s4 + $0x28] sm:$0xff]
          %v1158 = vld [vmem:[%s4 + $0x30] sm:$0xff]
          %v1159 = vld [vmem:[%s4 + $0x38] sm:$0xff]
          %v1160 = vld [vmem:[%s4 + $0x40] sm:$0xff]
          %v1161 = vld [vmem:[%s4 + $0x48] sm:$0xff]
          %v1162 = vld [vmem:[%s4 + $0x50] sm:$0xff]
          %v1163 = vld [vmem:[%s4 + $0x58] sm:$0xff]
          %v1164 = vld [vmem:[%s4 + $0x60] sm:$0xff]
          %v1165 = vld [vmem:[%s4 + $0x68] sm:$0xff]
          %v1166 = vld [vmem:[%s4 + $0x70] sm:$0xff]
          %v1167 = vld [vmem:[%s4 + $0x78] sm:$0xff]
          %v1168 = vld [vmem:[%s4 + $0x80] sm:$0xff]
          %v1169 = vld [vmem:[%s4 + $0x88] sm:$0xff]
          %v1170 = vld [vmem:[%s4 + $0x90] sm:$0xff]
          %v1171 = vld [vmem:[%s4 + $0x98] sm:$0xff]
          %v1172 = vld [vmem:[%s4 + $0xa0] sm:$0xff]
          %v1173 = vld [vmem:[%s4 + $0xa8] sm:$0xff]
          %v1174 = vld [vmem:[%s4 + $0xb0] sm:$0xff]
          %v1175 = vld [vmem:[%s4 + $0xb8] sm:$0xff]
          %v1176 = vld [vmem:[%s4 + $0xc0] sm:$0xff]
          %v1177 = vld [vmem:[%s4 + $0xc8] sm:$0xff]
          %v1178 = vld [vmem:[%s4 + $0xd0] sm:$0xff]
          %v1179 = vld [vmem:[%s4 + $0xd8] sm:$0xff]
          %v1180 = vld [vmem:[%s4 + $0xe0] sm:$0xff]
          %v1181 = vld [vmem:[%s4 + $0xe8] sm:$0xff]
          %v1182 = vld [vmem:[%s4 + $0xf0] sm:$0xff]
          %v1183 = vld [vmem:[%s4 + $0xf8] sm:$0xff]
          %v1184 = vld [vmem:[%s4 + $0x100] sm:$0xff]
          %v1185 = vld [vmem:[%s4 + $0x108] sm:$0xff]
          %v1186 = vld [vmem:[%s4 + $0x110] sm:$0xff]
          %v1187 = vld [vmem:[%s4 + $0x118] sm:$0xff]
          %v1188 = vld [vmem:[%s4 + $0x120] sm:$0xff]
          %v1189 = vld [vmem:[%s4 + $0x128] sm:$0xff]
          %v1190 = vld [vmem:[%s4 + $0x130] sm:$0xff]
          %v1191 = vld [vmem:[%s4 + $0x138] sm:$0xff]
          %v1192 = vld [vmem:[%s4 + $0x140] sm:$0xff]
          %v1193 = vld [vmem:[%s4 + $0x148] sm:$0xff]
          %v1194 = vld [vmem:[%s4 + $0x150] sm:$0xff]
          %v1195 = vld [vmem:[%s4 + $0x158] sm:$0xff]
          %v1196 = vld [vmem:[%s4 + $0x160] sm:$0xff]
          %v1197 = vld [vmem:[%s4 + $0x168] sm:$0xff]
          %v1198 = vld [vmem:[%s4 + $0x170] sm:$0xff]
          %v1199 = vld [vmem:[%s4 + $0x178] sm:$0xff]
          %v1200 = vld [vmem:[%s4 + $0x180] sm:$0xff]
          %v1201 = vld [vmem:[%s4 + $0x188] sm:$0xff]
          %v1202 = vld [vmem:[%s4 + $0x190] sm:$0xff]
          %v1203 = vld [vmem:[%s4 + $0x198] sm:$0xff]
          %v1204 = vld [vmem:[%s4 + $0x1a0] sm:$0xff]
          %v1205 = vld [vmem:[%s4 + $0x1a8] sm:$0xff]
          %v1206 = vld [vmem:[%s4 + $0x1b0] sm:$0xff]
          %v1207 = vld [vmem:[%s4 + $0x1b8] sm:$0xff]
          %v1208 = vld [vmem:[%s4 + $0x1c0] sm:$0xff]
          %v1209 = vld [vmem:[%s4 + $0x1c8] sm:$0xff]
          %v1210 = vld [vmem:[%s4 + $0x1d0] sm:$0xff]
          %v1211 = vld [vmem:[%s4 + $0x1d8] sm:$0xff]
          %v1212 = vld [vmem:[%s4 + $0x1e0] sm:$0xff]
          %v1213 = vld [vmem:[%s4 + $0x1e8] sm:$0xff]
          %v1214 = vld [vmem:[%s4 + $0x1f0] sm:$0xff]
          %v1215 = vld [vmem:[%s4 + $0x1f8] sm:$0xff]
          %1216 = vmatpush.msra.mxu0 %v1212
          %1217 = vmatpush.msra.mxu0 %v1208
          %1218 = vmatpush.msra.mxu0 %v1204
          %1219 = vmatpush.msra.mxu0 %v1200
          %1220 = vmatpush.msra.mxu0 %v1196
          %1221 = vmatpush.msra.mxu0 %v1192
          %1222 = vmatpush.msra.mxu0 %v1188
          %1223 = vmatpush.msra.mxu0 %v1184
          %1224 = vmatpush.msra.mxu0 %v1180
          %1225 = vmatpush.msra.mxu0 %v1176
          %1226 = vmatpush.msra.mxu0 %v1172
          %1227 = vmatpush.msra.mxu0 %v1168
          %1228 = vmatpush.msra.mxu0 %v1164
          %1229 = vmatpush.msra.mxu0 %v1160
          %1230 = vmatpush.msra.mxu0 %v1156
          %1231 = vmatpush.msra.mxu0 %v1152
          %1232 = vmatmul.f32.gmra.mxu0 %v1151
          %v1233 = vpop.f32.mrf.mxu0
          %v1234 = vadd.f32 0.0, %v1233
          %1235 = vdwg.mxu0
          %1236 = vmatpush.msra.mxu0 %v1213
          %1237 = vmatpush.msra.mxu0 %v1209
          %1238 = vmatpush.msra.mxu0 %v1205
          %1239 = vmatpush.msra.mxu0 %v1201
          %1240 = vmatpush.msra.mxu0 %v1197
          %1241 = vmatpush.msra.mxu0 %v1193
          %1242 = vmatpush.msra.mxu0 %v1189
          %1243 = vmatpush.msra.mxu0 %v1185
          %1244 = vmatpush.msra.mxu0 %v1181
          %1245 = vmatpush.msra.mxu0 %v1177
          %1246 = vmatpush.msra.mxu0 %v1173
          %1247 = vmatpush.msra.mxu0 %v1169
          %1248 = vmatpush.msra.mxu0 %v1165
          %1249 = vmatpush.msra.mxu0 %v1161
          %1250 = vmatpush.msra.mxu0 %v1157
          %1251 = vmatpush.msra.mxu0 %v1153
          %1252 = vmatmul.f32.gmra.mxu0 %v1151
          %v1253 = vpop.f32.mrf.mxu0
          %v1254 = vadd.f32 0.0, %v1253
          %1255 = vdwg.mxu0
          %1256 = vmatpush.msra.mxu0 %v1214
          %1257 = vmatpush.msra.mxu0 %v1210
          %1258 = vmatpush.msra.mxu0 %v1206
          %1259 = vmatpush.msra.mxu0 %v1202
          %1260 = vmatpush.msra.mxu0 %v1198
          %1261 = vmatpush.msra.mxu0 %v1194
          %1262 = vmatpush.msra.mxu0 %v1190
          %1263 = vmatpush.msra.mxu0 %v1186
          %1264 = vmatpush.msra.mxu0 %v1182
          %1265 = vmatpush.msra.mxu0 %v1178
          %1266 = vmatpush.msra.mxu0 %v1174
          %1267 = vmatpush.msra.mxu0 %v1170
          %1268 = vmatpush.msra.mxu0 %v1166
          %1269 = vmatpush.msra.mxu0 %v1162
          %1270 = vmatpush.msra.mxu0 %v1158
          %1271 = vmatpush.msra.mxu0 %v1154
          %1272 = vmatmul.f32.gmra.mxu0 %v1151
          %v1273 = vpop.f32.mrf.mxu0
          %v1274 = vadd.f32 0.0, %v1273
          %1275 = vdwg.mxu0
          %1276 = vmatpush.msra.mxu0 %v1215
          %1277 = vmatpush.msra.mxu0 %v1211
          %1278 = vmatpush.msra.mxu0 %v1207
          %1279 = vmatpush.msra.mxu0 %v1203
          %1280 = vmatpush.msra.mxu0 %v1199
          %1281 = vmatpush.msra.mxu0 %v1195
          %1282 = vmatpush.msra.mxu0 %v1191
          %1283 = vmatpush.msra.mxu0 %v1187
          %1284 = vmatpush.msra.mxu0 %v1183
          %1285 = vmatpush.msra.mxu0 %v1179
          %1286 = vmatpush.msra.mxu0 %v1175
          %1287 = vmatpush.msra.mxu0 %v1171
          %1288 = vmatpush.msra.mxu0 %v1167
          %1289 = vmatpush.msra.mxu0 %v1163
          %1290 = vmatpush.msra.mxu0 %v1159
          %1291 = vmatpush.msra.mxu0 %v1155
          %1292 = vmatmul.f32.gmra.mxu0 %v1151
          %v1293 = vpop.f32.mrf.mxu0
          %v1294 = vadd.f32 0.0, %v1293
          %1295 = vdwg.mxu0
          %v1304 = vrot.slane %v1136, 7
          %v1305 = vsel %vm568, %v1304, %v1135
          %v1306 = vrot.slane %v1137, 6
          %v1307 = vsel %vm571, %v1306, %v1305
          %v1308 = vrot.slane %v1138, 5
          %v1309 = vsel %vm574, %v1308, %v1307
          %v1310 = vrot.slane %v1139, 4
          %v1311 = vsel %vm577, %v1310, %v1309
          %v1312 = vrot.slane %v1140, 3
          %v1313 = vsel %vm580, %v1312, %v1311
          %v1314 = vrot.slane %v1141, 2
          %v1315 = vsel %vm583, %v1314, %v1313
          %v1316 = vrot.slane %v1142, 1
          %v1317 = vsel %vm586, %v1316, %v1315
          %v1318 = vsel %vm588, %v1317, 0
          %1320 = vmatpush.msra.mxu0 0.0
          %1321 = vmatpush.msra.mxu0 0.0
          %1322 = vmatpush.msra.mxu0 0.0
          %1323 = vmatpush.msra.mxu0 0.0
          %1324 = vmatpush.msra.mxu0 0.0
          %1325 = vmatpush.msra.mxu0 0.0
          %1326 = vmatpush.msra.mxu0 0.0
          %1327 = vmatpush.msra.mxu0 0.0
          %1328 = vmatpush.msra.mxu0 0.0
          %1329 = vmatpush.msra.mxu0 0.0
          %1330 = vmatpush.msra.mxu0 0.0
          %1331 = vmatpush.msra.mxu0 0.0
          %1332 = vmatpush.msra.mxu0 0.0
          %1333 = vmatpush.msra.mxu0 0.0
          %1334 = vmatpush.msra.mxu0 %v1147
          %1335 = vmatpush.msra.mxu0 %v1143
          %1336 = vmatmul.f32.gmra.mxu0 %v1318
          %v1337 = vpop.f32.mrf.mxu0
          %v1338 = vadd.f32 %v1234, %v1337
          %1339 = vdwg.mxu0
          %1340 = vmatpush.msra.mxu0 0.0
          %1341 = vmatpush.msra.mxu0 0.0
          %1342 = vmatpush.msra.mxu0 0.0
          %1343 = vmatpush.msra.mxu0 0.0
          %1344 = vmatpush.msra.mxu0 0.0
          %1345 = vmatpush.msra.mxu0 0.0
          %1346 = vmatpush.msra.mxu0 0.0
          %1347 = vmatpush.msra.mxu0 0.0
          %1348 = vmatpush.msra.mxu0 0.0
          %1349 = vmatpush.msra.mxu0 0.0
          %1350 = vmatpush.msra.mxu0 0.0
          %1351 = vmatpush.msra.mxu0 0.0
          %1352 = vmatpush.msra.mxu0 0.0
          %1353 = vmatpush.msra.mxu0 0.0
          %1354 = vmatpush.msra.mxu0 %v1148
          %1355 = vmatpush.msra.mxu0 %v1144
          %1356 = vmatmul.f32.gmra.mxu0 %v1318
          %v1357 = vpop.f32.mrf.mxu0
          %v1358 = vadd.f32 %v1254, %v1357
          %1359 = vdwg.mxu0
          %1360 = vmatpush.msra.mxu0 0.0
          %1361 = vmatpush.msra.mxu0 0.0
          %1362 = vmatpush.msra.mxu0 0.0
          %1363 = vmatpush.msra.mxu0 0.0
          %1364 = vmatpush.msra.mxu0 0.0
          %1365 = vmatpush.msra.mxu0 0.0
          %1366 = vmatpush.msra.mxu0 0.0
          %1367 = vmatpush.msra.mxu0 0.0
          %1368 = vmatpush.msra.mxu0 0.0
          %1369 = vmatpush.msra.mxu0 0.0
          %1370 = vmatpush.msra.mxu0 0.0
          %1371 = vmatpush.msra.mxu0 0.0
          %1372 = vmatpush.msra.mxu0 0.0
          %1373 = vmatpush.msra.mxu0 0.0
          %1374 = vmatpush.msra.mxu0 %v1149
          %1375 = vmatpush.msra.mxu0 %v1145
          %1376 = vmatmul.f32.gmra.mxu0 %v1318
          %v1377 = vpop.f32.mrf.mxu0
          %v1378 = vadd.f32 %v1274, %v1377
          %1379 = vdwg.mxu0
          %1380 = vmatpush.msra.mxu0 0.0
          %1381 = vmatpush.msra.mxu0 0.0
          %1382 = vmatpush.msra.mxu0 0.0
          %1383 = vmatpush.msra.mxu0 0.0
          %1384 = vmatpush.msra.mxu0 0.0
          %1385 = vmatpush.msra.mxu0 0.0
          %1386 = vmatpush.msra.mxu0 0.0
          %1387 = vmatpush.msra.mxu0 0.0
          %1388 = vmatpush.msra.mxu0 0.0
          %1389 = vmatpush.msra.mxu0 0.0
          %1390 = vmatpush.msra.mxu0 0.0
          %1391 = vmatpush.msra.mxu0 0.0
          %1392 = vmatpush.msra.mxu0 0.0
          %1393 = vmatpush.msra.mxu0 0.0
          %1394 = vmatpush.msra.mxu0 %v1150
          %1395 = vmatpush.msra.mxu0 %v1146
          %1396 = vmatmul.f32.gmra.mxu0 %v1318
          %v1397 = vpop.f32.mrf.mxu0
          %v1398 = vadd.f32 %v1294, %v1397
          %1399 = vdwg.mxu0
          %v1400 = vadd.f32 %v1338, %v390
          %v1401 = vadd.f32 %v1358, %v391
          %v1402 = vadd.f32 %v1378, %v392
          %v1403 = vadd.f32 %v1398, %v393
          %v1404 = vxor.u32 %v1400, 2147483648
          %v1405 = vmul.f32 %v1404, 1.442695
          %v1406 = vpow.pop %v1405
          %v1407 = vadd.f32 %v1406, 1.0
          %v1408 = vrcp.pop %v1407
          %v1409 = vmul.f32 %v1407, %v1408
          %v1410 = vsub.f32 1.0, %v1409
          %v1411 = vmul.f32 %v1408, %v1410
          %v1412 = vadd.f32 %v1408, %v1411
          %vm1413 = vweird.f32 %v1407
          %vm1414 = vweird.f32 %v1408
          %vm1415 = vmor %vm1413, %vm1414
          %v1416 = vsel %vm1415, %v1408, %v1412
          %v1417 = vand.u32 2147483647, %v1407
          %vm1418 = vcmp.eq.f32.partialorder %v1417, 8.507059e+37
          %v1419 = vand.u32 %v1407, 2147483648
          %v1420 = vor.u32 1.1754944e-38, %v1419
          %v1421 = vsel %vm1418, %v1420, %v1416
          %v1422 = vmul.f32 1.0, %v1421
          %v1423 = vxor.u32 %v1401, 2147483648
          %v1424 = vmul.f32 %v1423, 1.442695
          %v1425 = vpow.pop %v1424
          %v1426 = vadd.f32 %v1425, 1.0
          %v1427 = vrcp.pop %v1426
          %v1428 = vmul.f32 %v1426, %v1427
          %v1429 = vsub.f32 1.0, %v1428
          %v1430 = vmul.f32 %v1427, %v1429
          %v1431 = vadd.f32 %v1427, %v1430
          %vm1432 = vweird.f32 %v1426
          %vm1433 = vweird.f32 %v1427
          %vm1434 = vmor %vm1432, %vm1433
          %v1435 = vsel %vm1434, %v1427, %v1431
          %v1436 = vand.u32 2147483647, %v1426
          %vm1437 = vcmp.eq.f32.partialorder %v1436, 8.507059e+37
          %v1438 = vand.u32 %v1426, 2147483648
          %v1439 = vor.u32 1.1754944e-38, %v1438
          %v1440 = vsel %vm1437, %v1439, %v1435
          %v1441 = vmul.f32 1.0, %v1440
          %v1442 = vtanh.pop %v1402
          %v1443 = vxor.u32 %v1403, 2147483648
          %v1444 = vmul.f32 %v1443, 1.442695
          %v1445 = vpow.pop %v1444
          %v1446 = vadd.f32 %v1445, 1.0
          %v1447 = vrcp.pop %v1446
          %v1448 = vmul.f32 %v1446, %v1447
          %v1449 = vsub.f32 1.0, %v1448
          %v1450 = vmul.f32 %v1447, %v1449
          %v1451 = vadd.f32 %v1447, %v1450
          %vm1452 = vweird.f32 %v1446
          %vm1453 = vweird.f32 %v1447
          %vm1454 = vmor %vm1452, %vm1453
          %v1455 = vsel %vm1454, %v1447, %v1451
          %v1456 = vand.u32 2147483647, %v1446
          %vm1457 = vcmp.eq.f32.partialorder %v1456, 8.507059e+37
          %v1458 = vand.u32 %v1446, 2147483648
          %v1459 = vor.u32 1.1754944e-38, %v1458
          %v1460 = vsel %vm1457, %v1459, %v1455
          %v1461 = vmul.f32 1.0, %v1460
          %v1462 = vld [vmem:[#allocation3] sm:$0xff]
          %v1463 = vmul.f32 %v1441, %v1462
          %v1464 = vmul.f32 %v1422, %v1442
          %v1465 = vadd.f32 %v1463, %v1464
          %v1466 = vtanh.pop %v1465
          %v1467 = vmul.f32 %v1461, %v1466
          %s1468 = sadd.s32 %s383, 2
          %v1469 = vstv %s1468
          %vm1470 = vcmp.gt.s32.totalorder %v387, %v1469
          %v1471 = vsel %vm1470, %v1467, %v1151
          %1472 = vst [vmem:[#allocation2] sm:$0xff] %v1471
          %v1473 = vld [vmem:[#allocation3] sm:$0xff]
          %v1474 = vsel %vm1470, %v1465, %v1473
          %1475 = vst [vmem:[#allocation3] sm:$0xff] %v1474
          %v1476 = vsel %vm1470, %v1467, 0.0
          %v1478 = vrot.slane %v1476, 1
          %v1479 = vrot.slane %v1476, 2
          %v1480 = vrot.slane %v1476, 3
          %v1481 = vrot.slane %v1476, 4
          %v1482 = vrot.slane %v1476, 5
          %v1483 = vrot.slane %v1476, 6
          %v1484 = vrot.slane %v1476, 7
          %1492 = vst [vmem:[%s343 + $0x2] sm:$0x1] %v1476
          %1493 = vst [vmem:[%s343 + $0xa] sm:$0x1] %v1478
          %1494 = vst [vmem:[%s343 + $0x12] sm:$0x1] %v1479
          %1495 = vst [vmem:[%s343 + $0x1a] sm:$0x1] %v1480
          %1496 = vst [vmem:[%s343 + $0x22] sm:$0x1] %v1481
          %1497 = vst [vmem:[%s343 + $0x2a] sm:$0x1] %v1482
          %1498 = vst [vmem:[%s343 + $0x32] sm:$0x1] %v1483
          %1499 = vst [vmem:[%s343 + $0x3a] sm:$0x1] %v1484
          %v1500 = vld [vmem:[%s316 + $0x3] sm:$0x1]
          %v1501 = vld [vmem:[%s316 + $0xb] sm:$0x1]
          %v1502 = vld [vmem:[%s316 + $0x13] sm:$0x1]
          %v1503 = vld [vmem:[%s316 + $0x1b] sm:$0x1]
          %v1504 = vld [vmem:[%s316 + $0x23] sm:$0x1]
          %v1505 = vld [vmem:[%s316 + $0x2b] sm:$0x1]
          %v1506 = vld [vmem:[%s316 + $0x33] sm:$0x1]
          %v1507 = vld [vmem:[%s316 + $0x3b] sm:$0x1]
          %v1508 = vld [vmem:[%s3] sm:$0xff]
          %v1509 = vld [vmem:[%s3 + $0x8] sm:$0xff]
          %v1510 = vld [vmem:[%s3 + $0x10] sm:$0xff]
          %v1511 = vld [vmem:[%s3 + $0x18] sm:$0xff]
          %v1512 = vld [vmem:[%s3 + $0x20] sm:$0xff]
          %v1513 = vld [vmem:[%s3 + $0x28] sm:$0xff]
          %v1514 = vld [vmem:[%s3 + $0x30] sm:$0xff]
          %v1515 = vld [vmem:[%s3 + $0x38] sm:$0xff]
          %v1516 = vld [vmem:[#allocation2] sm:$0xff]
          %v1517 = vld [vmem:[%s4] sm:$0xff]
          %v1518 = vld [vmem:[%s4 + $0x8] sm:$0xff]
          %v1519 = vld [vmem:[%s4 + $0x10] sm:$0xff]
          %v1520 = vld [vmem:[%s4 + $0x18] sm:$0xff]
          %v1521 = vld [vmem:[%s4 + $0x20] sm:$0xff]
          %v1522 = vld [vmem:[%s4 + $0x28] sm:$0xff]
          %v1523 = vld [vmem:[%s4 + $0x30] sm:$0xff]
          %v1524 = vld [vmem:[%s4 + $0x38] sm:$0xff]
          %v1525 = vld [vmem:[%s4 + $0x40] sm:$0xff]
          %v1526 = vld [vmem:[%s4 + $0x48] sm:$0xff]
          %v1527 = vld [vmem:[%s4 + $0x50] sm:$0xff]
          %v1528 = vld [vmem:[%s4 + $0x58] sm:$0xff]
          %v1529 = vld [vmem:[%s4 + $0x60] sm:$0xff]
          %v1530 = vld [vmem:[%s4 + $0x68] sm:$0xff]
          %v1531 = vld [vmem:[%s4 + $0x70] sm:$0xff]
          %v1532 = vld [vmem:[%s4 + $0x78] sm:$0xff]
          %v1533 = vld [vmem:[%s4 + $0x80] sm:$0xff]
          %v1534 = vld [vmem:[%s4 + $0x88] sm:$0xff]
          %v1535 = vld [vmem:[%s4 + $0x90] sm:$0xff]
          %v1536 = vld [vmem:[%s4 + $0x98] sm:$0xff]
          %v1537 = vld [vmem:[%s4 + $0xa0] sm:$0xff]
          %v1538 = vld [vmem:[%s4 + $0xa8] sm:$0xff]
          %v1539 = vld [vmem:[%s4 + $0xb0] sm:$0xff]
          %v1540 = vld [vmem:[%s4 + $0xb8] sm:$0xff]
          %v1541 = vld [vmem:[%s4 + $0xc0] sm:$0xff]
          %v1542 = vld [vmem:[%s4 + $0xc8] sm:$0xff]
          %v1543 = vld [vmem:[%s4 + $0xd0] sm:$0xff]
          %v1544 = vld [vmem:[%s4 + $0xd8] sm:$0xff]
          %v1545 = vld [vmem:[%s4 + $0xe0] sm:$0xff]
          %v1546 = vld [vmem:[%s4 + $0xe8] sm:$0xff]
          %v1547 = vld [vmem:[%s4 + $0xf0] sm:$0xff]
          %v1548 = vld [vmem:[%s4 + $0xf8] sm:$0xff]
          %v1549 = vld [vmem:[%s4 + $0x100] sm:$0xff]
          %v1550 = vld [vmem:[%s4 + $0x108] sm:$0xff]
          %v1551 = vld [vmem:[%s4 + $0x110] sm:$0xff]
          %v1552 = vld [vmem:[%s4 + $0x118] sm:$0xff]
          %v1553 = vld [vmem:[%s4 + $0x120] sm:$0xff]
          %v1554 = vld [vmem:[%s4 + $0x128] sm:$0xff]
          %v1555 = vld [vmem:[%s4 + $0x130] sm:$0xff]
          %v1556 = vld [vmem:[%s4 + $0x138] sm:$0xff]
          %v1557 = vld [vmem:[%s4 + $0x140] sm:$0xff]
          %v1558 = vld [vmem:[%s4 + $0x148] sm:$0xff]
          %v1559 = vld [vmem:[%s4 + $0x150] sm:$0xff]
          %v1560 = vld [vmem:[%s4 + $0x158] sm:$0xff]
          %v1561 = vld [vmem:[%s4 + $0x160] sm:$0xff]
          %v1562 = vld [vmem:[%s4 + $0x168] sm:$0xff]
          %v1563 = vld [vmem:[%s4 + $0x170] sm:$0xff]
          %v1564 = vld [vmem:[%s4 + $0x178] sm:$0xff]
          %v1565 = vld [vmem:[%s4 + $0x180] sm:$0xff]
          %v1566 = vld [vmem:[%s4 + $0x188] sm:$0xff]
          %v1567 = vld [vmem:[%s4 + $0x190] sm:$0xff]
          %v1568 = vld [vmem:[%s4 + $0x198] sm:$0xff]
          %v1569 = vld [vmem:[%s4 + $0x1a0] sm:$0xff]
          %v1570 = vld [vmem:[%s4 + $0x1a8] sm:$0xff]
          %v1571 = vld [vmem:[%s4 + $0x1b0] sm:$0xff]
          %v1572 = vld [vmem:[%s4 + $0x1b8] sm:$0xff]
          %v1573 = vld [vmem:[%s4 + $0x1c0] sm:$0xff]
          %v1574 = vld [vmem:[%s4 + $0x1c8] sm:$0xff]
          %v1575 = vld [vmem:[%s4 + $0x1d0] sm:$0xff]
          %v1576 = vld [vmem:[%s4 + $0x1d8] sm:$0xff]
          %v1577 = vld [vmem:[%s4 + $0x1e0] sm:$0xff]
          %v1578 = vld [vmem:[%s4 + $0x1e8] sm:$0xff]
          %v1579 = vld [vmem:[%s4 + $0x1f0] sm:$0xff]
          %v1580 = vld [vmem:[%s4 + $0x1f8] sm:$0xff]
          %1581 = vmatpush.msra.mxu0 %v1577
          %1582 = vmatpush.msra.mxu0 %v1573
          %1583 = vmatpush.msra.mxu0 %v1569
          %1584 = vmatpush.msra.mxu0 %v1565
          %1585 = vmatpush.msra.mxu0 %v1561
          %1586 = vmatpush.msra.mxu0 %v1557
          %1587 = vmatpush.msra.mxu0 %v1553
          %1588 = vmatpush.msra.mxu0 %v1549
          %1589 = vmatpush.msra.mxu0 %v1545
          %1590 = vmatpush.msra.mxu0 %v1541
          %1591 = vmatpush.msra.mxu0 %v1537
          %1592 = vmatpush.msra.mxu0 %v1533
          %1593 = vmatpush.msra.mxu0 %v1529
          %1594 = vmatpush.msra.mxu0 %v1525
          %1595 = vmatpush.msra.mxu0 %v1521
          %1596 = vmatpush.msra.mxu0 %v1517
          %1597 = vmatmul.f32.gmra.mxu0 %v1516
          %v1598 = vpop.f32.mrf.mxu0
          %v1599 = vadd.f32 0.0, %v1598
          %1600 = vdwg.mxu0
          %1601 = vmatpush.msra.mxu0 %v1578
          %1602 = vmatpush.msra.mxu0 %v1574
          %1603 = vmatpush.msra.mxu0 %v1570
          %1604 = vmatpush.msra.mxu0 %v1566
          %1605 = vmatpush.msra.mxu0 %v1562
          %1606 = vmatpush.msra.mxu0 %v1558
          %1607 = vmatpush.msra.mxu0 %v1554
          %1608 = vmatpush.msra.mxu0 %v1550
          %1609 = vmatpush.msra.mxu0 %v1546
          %1610 = vmatpush.msra.mxu0 %v1542
          %1611 = vmatpush.msra.mxu0 %v1538
          %1612 = vmatpush.msra.mxu0 %v1534
          %1613 = vmatpush.msra.mxu0 %v1530
          %1614 = vmatpush.msra.mxu0 %v1526
          %1615 = vmatpush.msra.mxu0 %v1522
          %1616 = vmatpush.msra.mxu0 %v1518
          %1617 = vmatmul.f32.gmra.mxu0 %v1516
          %v1618 = vpop.f32.mrf.mxu0
          %v1619 = vadd.f32 0.0, %v1618
          %1620 = vdwg.mxu0
          %1621 = vmatpush.msra.mxu0 %v1579
          %1622 = vmatpush.msra.mxu0 %v1575
          %1623 = vmatpush.msra.mxu0 %v1571
          %1624 = vmatpush.msra.mxu0 %v1567
          %1625 = vmatpush.msra.mxu0 %v1563
          %1626 = vmatpush.msra.mxu0 %v1559
          %1627 = vmatpush.msra.mxu0 %v1555
          %1628 = vmatpush.msra.mxu0 %v1551
          %1629 = vmatpush.msra.mxu0 %v1547
          %1630 = vmatpush.msra.mxu0 %v1543
          %1631 = vmatpush.msra.mxu0 %v1539
          %1632 = vmatpush.msra.mxu0 %v1535
          %1633 = vmatpush.msra.mxu0 %v1531
          %1634 = vmatpush.msra.mxu0 %v1527
          %1635 = vmatpush.msra.mxu0 %v1523
          %1636 = vmatpush.msra.mxu0 %v1519
          %1637 = vmatmul.f32.gmra.mxu0 %v1516
          %v1638 = vpop.f32.mrf.mxu0
          %v1639 = vadd.f32 0.0, %v1638
          %1640 = vdwg.mxu0
          %1641 = vmatpush.msra.mxu0 %v1580
          %1642 = vmatpush.msra.mxu0 %v1576
          %1643 = vmatpush.msra.mxu0 %v1572
          %1644 = vmatpush.msra.mxu0 %v1568
          %1645 = vmatpush.msra.mxu0 %v1564
          %1646 = vmatpush.msra.mxu0 %v1560
          %1647 = vmatpush.msra.mxu0 %v1556
          %1648 = vmatpush.msra.mxu0 %v1552
          %1649 = vmatpush.msra.mxu0 %v1548
          %1650 = vmatpush.msra.mxu0 %v1544
          %1651 = vmatpush.msra.mxu0 %v1540
          %1652 = vmatpush.msra.mxu0 %v1536
          %1653 = vmatpush.msra.mxu0 %v1532
          %1654 = vmatpush.msra.mxu0 %v1528
          %1655 = vmatpush.msra.mxu0 %v1524
          %1656 = vmatpush.msra.mxu0 %v1520
          %1657 = vmatmul.f32.gmra.mxu0 %v1516
          %v1658 = vpop.f32.mrf.mxu0
          %v1659 = vadd.f32 0.0, %v1658
          %1660 = vdwg.mxu0
          %v1669 = vrot.slane %v1501, 7
          %v1670 = vsel %vm568, %v1669, %v1500
          %v1671 = vrot.slane %v1502, 6
          %v1672 = vsel %vm571, %v1671, %v1670
          %v1673 = vrot.slane %v1503, 5
          %v1674 = vsel %vm574, %v1673, %v1672
          %v1675 = vrot.slane %v1504, 4
          %v1676 = vsel %vm577, %v1675, %v1674
          %v1677 = vrot.slane %v1505, 3
          %v1678 = vsel %vm580, %v1677, %v1676
          %v1679 = vrot.slane %v1506, 2
          %v1680 = vsel %vm583, %v1679, %v1678
          %v1681 = vrot.slane %v1507, 1
          %v1682 = vsel %vm586, %v1681, %v1680
          %v1683 = vsel %vm588, %v1682, 0
          %1685 = vmatpush.msra.mxu0 0.0
          %1686 = vmatpush.msra.mxu0 0.0
          %1687 = vmatpush.msra.mxu0 0.0
          %1688 = vmatpush.msra.mxu0 0.0
          %1689 = vmatpush.msra.mxu0 0.0
          %1690 = vmatpush.msra.mxu0 0.0
          %1691 = vmatpush.msra.mxu0 0.0
          %1692 = vmatpush.msra.mxu0 0.0
          %1693 = vmatpush.msra.mxu0 0.0
          %1694 = vmatpush.msra.mxu0 0.0
          %1695 = vmatpush.msra.mxu0 0.0
          %1696 = vmatpush.msra.mxu0 0.0
          %1697 = vmatpush.msra.mxu0 0.0
          %1698 = vmatpush.msra.mxu0 0.0
          %1699 = vmatpush.msra.mxu0 %v1512
          %1700 = vmatpush.msra.mxu0 %v1508
          %1701 = vmatmul.f32.gmra.mxu0 %v1683
          %v1702 = vpop.f32.mrf.mxu0
          %v1703 = vadd.f32 %v1599, %v1702
          %1704 = vdwg.mxu0
          %1705 = vmatpush.msra.mxu0 0.0
          %1706 = vmatpush.msra.mxu0 0.0
          %1707 = vmatpush.msra.mxu0 0.0
          %1708 = vmatpush.msra.mxu0 0.0
          %1709 = vmatpush.msra.mxu0 0.0
          %1710 = vmatpush.msra.mxu0 0.0
          %1711 = vmatpush.msra.mxu0 0.0
          %1712 = vmatpush.msra.mxu0 0.0
          %1713 = vmatpush.msra.mxu0 0.0
          %1714 = vmatpush.msra.mxu0 0.0
          %1715 = vmatpush.msra.mxu0 0.0
          %1716 = vmatpush.msra.mxu0 0.0
          %1717 = vmatpush.msra.mxu0 0.0
          %1718 = vmatpush.msra.mxu0 0.0
          %1719 = vmatpush.msra.mxu0 %v1513
          %1720 = vmatpush.msra.mxu0 %v1509
          %1721 = vmatmul.f32.gmra.mxu0 %v1683
          %v1722 = vpop.f32.mrf.mxu0
          %v1723 = vadd.f32 %v1619, %v1722
          %1724 = vdwg.mxu0
          %1725 = vmatpush.msra.mxu0 0.0
          %1726 = vmatpush.msra.mxu0 0.0
          %1727 = vmatpush.msra.mxu0 0.0
          %1728 = vmatpush.msra.mxu0 0.0
          %1729 = vmatpush.msra.mxu0 0.0
          %1730 = vmatpush.msra.mxu0 0.0
          %1731 = vmatpush.msra.mxu0 0.0
          %1732 = vmatpush.msra.mxu0 0.0
          %1733 = vmatpush.msra.mxu0 0.0
          %1734 = vmatpush.msra.mxu0 0.0
          %1735 = vmatpush.msra.mxu0 0.0
          %1736 = vmatpush.msra.mxu0 0.0
          %1737 = vmatpush.msra.mxu0 0.0
          %1738 = vmatpush.msra.mxu0 0.0
          %1739 = vmatpush.msra.mxu0 %v1514
          %1740 = vmatpush.msra.mxu0 %v1510
          %1741 = vmatmul.f32.gmra.mxu0 %v1683
          %v1742 = vpop.f32.mrf.mxu0
          %v1743 = vadd.f32 %v1639, %v1742
          %1744 = vdwg.mxu0
          %1745 = vmatpush.msra.mxu0 0.0
          %1746 = vmatpush.msra.mxu0 0.0
          %1747 = vmatpush.msra.mxu0 0.0
          %1748 = vmatpush.msra.mxu0 0.0
          %1749 = vmatpush.msra.mxu0 0.0
          %1750 = vmatpush.msra.mxu0 0.0
          %1751 = vmatpush.msra.mxu0 0.0
          %1752 = vmatpush.msra.mxu0 0.0
          %1753 = vmatpush.msra.mxu0 0.0
          %1754 = vmatpush.msra.mxu0 0.0
          %1755 = vmatpush.msra.mxu0 0.0
          %1756 = vmatpush.msra.mxu0 0.0
          %1757 = vmatpush.msra.mxu0 0.0
          %1758 = vmatpush.msra.mxu0 0.0
          %1759 = vmatpush.msra.mxu0 %v1515
          %1760 = vmatpush.msra.mxu0 %v1511
          %1761 = vmatmul.f32.gmra.mxu0 %v1683
          %v1762 = vpop.f32.mrf.mxu0
          %v1763 = vadd.f32 %v1659, %v1762
          %1764 = vdwg.mxu0
          %v1765 = vadd.f32 %v1703, %v390
          %v1766 = vadd.f32 %v1723, %v391
          %v1767 = vadd.f32 %v1743, %v392
          %v1768 = vadd.f32 %v1763, %v393
          %v1769 = vxor.u32 %v1765, 2147483648
          %v1770 = vmul.f32 %v1769, 1.442695
          %v1771 = vpow.pop %v1770
          %v1772 = vadd.f32 %v1771, 1.0
          %v1773 = vrcp.pop %v1772
          %v1774 = vmul.f32 %v1772, %v1773
          %v1775 = vsub.f32 1.0, %v1774
          %v1776 = vmul.f32 %v1773, %v1775
          %v1777 = vadd.f32 %v1773, %v1776
          %vm1778 = vweird.f32 %v1772
          %vm1779 = vweird.f32 %v1773
          %vm1780 = vmor %vm1778, %vm1779
          %v1781 = vsel %vm1780, %v1773, %v1777
          %v1782 = vand.u32 2147483647, %v1772
          %vm1783 = vcmp.eq.f32.partialorder %v1782, 8.507059e+37
          %v1784 = vand.u32 %v1772, 2147483648
          %v1785 = vor.u32 1.1754944e-38, %v1784
          %v1786 = vsel %vm1783, %v1785, %v1781
          %v1787 = vmul.f32 1.0, %v1786
          %v1788 = vxor.u32 %v1766, 2147483648
          %v1789 = vmul.f32 %v1788, 1.442695
          %v1790 = vpow.pop %v1789
          %v1791 = vadd.f32 %v1790, 1.0
          %v1792 = vrcp.pop %v1791
          %v1793 = vmul.f32 %v1791, %v1792
          %v1794 = vsub.f32 1.0, %v1793
          %v1795 = vmul.f32 %v1792, %v1794
          %v1796 = vadd.f32 %v1792, %v1795
          %vm1797 = vweird.f32 %v1791
          %vm1798 = vweird.f32 %v1792
          %vm1799 = vmor %vm1797, %vm1798
          %v1800 = vsel %vm1799, %v1792, %v1796
          %v1801 = vand.u32 2147483647, %v1791
          %vm1802 = vcmp.eq.f32.partialorder %v1801, 8.507059e+37
          %v1803 = vand.u32 %v1791, 2147483648
          %v1804 = vor.u32 1.1754944e-38, %v1803
          %v1805 = vsel %vm1802, %v1804, %v1800
          %v1806 = vmul.f32 1.0, %v1805
          %v1807 = vtanh.pop %v1767
          %v1808 = vxor.u32 %v1768, 2147483648
          %v1809 = vmul.f32 %v1808, 1.442695
          %v1810 = vpow.pop %v1809
          %v1811 = vadd.f32 %v1810, 1.0
          %v1812 = vrcp.pop %v1811
          %v1813 = vmul.f32 %v1811, %v1812
          %v1814 = vsub.f32 1.0, %v1813
          %v1815 = vmul.f32 %v1812, %v1814
          %v1816 = vadd.f32 %v1812, %v1815
          %vm1817 = vweird.f32 %v1811
          %vm1818 = vweird.f32 %v1812
          %vm1819 = vmor %vm1817, %vm1818
          %v1820 = vsel %vm1819, %v1812, %v1816
          %v1821 = vand.u32 2147483647, %v1811
          %vm1822 = vcmp.eq.f32.partialorder %v1821, 8.507059e+37
          %v1823 = vand.u32 %v1811, 2147483648
          %v1824 = vor.u32 1.1754944e-38, %v1823
          %v1825 = vsel %vm1822, %v1824, %v1820
          %v1826 = vmul.f32 1.0, %v1825
          %v1827 = vld [vmem:[#allocation3] sm:$0xff]
          %v1828 = vmul.f32 %v1806, %v1827
          %v1829 = vmul.f32 %v1787, %v1807
          %v1830 = vadd.f32 %v1828, %v1829
          %v1831 = vtanh.pop %v1830
          %v1832 = vmul.f32 %v1826, %v1831
          %s1833 = sadd.s32 %s383, 3
          %v1834 = vstv %s1833
          %vm1835 = vcmp.gt.s32.totalorder %v387, %v1834
          %v1836 = vsel %vm1835, %v1832, %v1516
          %1837 = vst [vmem:[#allocation2] sm:$0xff] %v1836
          %v1838 = vld [vmem:[#allocation3] sm:$0xff]
          %v1839 = vsel %vm1835, %v1830, %v1838
          %1840 = vst [vmem:[#allocation3] sm:$0xff] %v1839
          %v1841 = vsel %vm1835, %v1832, 0.0
          %v1843 = vrot.slane %v1841, 1
          %v1844 = vrot.slane %v1841, 2
          %v1845 = vrot.slane %v1841, 3
          %v1846 = vrot.slane %v1841, 4
          %v1847 = vrot.slane %v1841, 5
          %v1848 = vrot.slane %v1841, 6
          %v1849 = vrot.slane %v1841, 7
          %1857 = vst [vmem:[%s343 + $0x3] sm:$0x1] %v1841
          %1858 = vst [vmem:[%s343 + $0xb] sm:$0x1] %v1843
          %1859 = vst [vmem:[%s343 + $0x13] sm:$0x1] %v1844
          %1860 = vst [vmem:[%s343 + $0x1b] sm:$0x1] %v1845
          %1861 = vst [vmem:[%s343 + $0x23] sm:$0x1] %v1846
          %1862 = vst [vmem:[%s343 + $0x2b] sm:$0x1] %v1847
          %1863 = vst [vmem:[%s343 + $0x33] sm:$0x1] %v1848
          %1864 = vst [vmem:[%s343 + $0x3b] sm:$0x1] %v1849
          %v1865 = vld [vmem:[%s316 + $0x4] sm:$0x1]
          %v1866 = vld [vmem:[%s316 + $0xc] sm:$0x1]
          %v1867 = vld [vmem:[%s316 + $0x14] sm:$0x1]
          %v1868 = vld [vmem:[%s316 + $0x1c] sm:$0x1]
          %v1869 = vld [vmem:[%s316 + $0x24] sm:$0x1]
          %v1870 = vld [vmem:[%s316 + $0x2c] sm:$0x1]
          %v1871 = vld [vmem:[%s316 + $0x34] sm:$0x1]
          %v1872 = vld [vmem:[%s316 + $0x3c] sm:$0x1]
          %v1873 = vld [vmem:[%s3] sm:$0xff]
          %v1874 = vld [vmem:[%s3 + $0x8] sm:$0xff]
          %v1875 = vld [vmem:[%s3 + $0x10] sm:$0xff]
          %v1876 = vld [vmem:[%s3 + $0x18] sm:$0xff]
          %v1877 = vld [vmem:[%s3 + $0x20] sm:$0xff]
          %v1878 = vld [vmem:[%s3 + $0x28] sm:$0xff]
          %v1879 = vld [vmem:[%s3 + $0x30] sm:$0xff]
          %v1880 = vld [vmem:[%s3 + $0x38] sm:$0xff]
          %v1881 = vld [vmem:[#allocation2] sm:$0xff]
          %v1882 = vld [vmem:[%s4] sm:$0xff]
          %v1883 = vld [vmem:[%s4 + $0x8] sm:$0xff]
          %v1884 = vld [vmem:[%s4 + $0x10] sm:$0xff]
          %v1885 = vld [vmem:[%s4 + $0x18] sm:$0xff]
          %v1886 = vld [vmem:[%s4 + $0x20] sm:$0xff]
          %v1887 = vld [vmem:[%s4 + $0x28] sm:$0xff]
          %v1888 = vld [vmem:[%s4 + $0x30] sm:$0xff]
          %v1889 = vld [vmem:[%s4 + $0x38] sm:$0xff]
          %v1890 = vld [vmem:[%s4 + $0x40] sm:$0xff]
          %v1891 = vld [vmem:[%s4 + $0x48] sm:$0xff]
          %v1892 = vld [vmem:[%s4 + $0x50] sm:$0xff]
          %v1893 = vld [vmem:[%s4 + $0x58] sm:$0xff]
          %v1894 = vld [vmem:[%s4 + $0x60] sm:$0xff]
          %v1895 = vld [vmem:[%s4 + $0x68] sm:$0xff]
          %v1896 = vld [vmem:[%s4 + $0x70] sm:$0xff]
          %v1897 = vld [vmem:[%s4 + $0x78] sm:$0xff]
          %v1898 = vld [vmem:[%s4 + $0x80] sm:$0xff]
          %v1899 = vld [vmem:[%s4 + $0x88] sm:$0xff]
          %v1900 = vld [vmem:[%s4 + $0x90] sm:$0xff]
          %v1901 = vld [vmem:[%s4 + $0x98] sm:$0xff]
          %v1902 = vld [vmem:[%s4 + $0xa0] sm:$0xff]
          %v1903 = vld [vmem:[%s4 + $0xa8] sm:$0xff]
          %v1904 = vld [vmem:[%s4 + $0xb0] sm:$0xff]
          %v1905 = vld [vmem:[%s4 + $0xb8] sm:$0xff]
          %v1906 = vld [vmem:[%s4 + $0xc0] sm:$0xff]
          %v1907 = vld [vmem:[%s4 + $0xc8] sm:$0xff]
          %v1908 = vld [vmem:[%s4 + $0xd0] sm:$0xff]
          %v1909 = vld [vmem:[%s4 + $0xd8] sm:$0xff]
          %v1910 = vld [vmem:[%s4 + $0xe0] sm:$0xff]
          %v1911 = vld [vmem:[%s4 + $0xe8] sm:$0xff]
          %v1912 = vld [vmem:[%s4 + $0xf0] sm:$0xff]
          %v1913 = vld [vmem:[%s4 + $0xf8] sm:$0xff]
          %v1914 = vld [vmem:[%s4 + $0x100] sm:$0xff]
          %v1915 = vld [vmem:[%s4 + $0x108] sm:$0xff]
          %v1916 = vld [vmem:[%s4 + $0x110] sm:$0xff]
          %v1917 = vld [vmem:[%s4 + $0x118] sm:$0xff]
          %v1918 = vld [vmem:[%s4 + $0x120] sm:$0xff]
          %v1919 = vld [vmem:[%s4 + $0x128] sm:$0xff]
          %v1920 = vld [vmem:[%s4 + $0x130] sm:$0xff]
          %v1921 = vld [vmem:[%s4 + $0x138] sm:$0xff]
          %v1922 = vld [vmem:[%s4 + $0x140] sm:$0xff]
          %v1923 = vld [vmem:[%s4 + $0x148] sm:$0xff]
          %v1924 = vld [vmem:[%s4 + $0x150] sm:$0xff]
          %v1925 = vld [vmem:[%s4 + $0x158] sm:$0xff]
          %v1926 = vld [vmem:[%s4 + $0x160] sm:$0xff]
          %v1927 = vld [vmem:[%s4 + $0x168] sm:$0xff]
          %v1928 = vld [vmem:[%s4 + $0x170] sm:$0xff]
          %v1929 = vld [vmem:[%s4 + $0x178] sm:$0xff]
          %v1930 = vld [vmem:[%s4 + $0x180] sm:$0xff]
          %v1931 = vld [vmem:[%s4 + $0x188] sm:$0xff]
          %v1932 = vld [vmem:[%s4 + $0x190] sm:$0xff]
          %v1933 = vld [vmem:[%s4 + $0x198] sm:$0xff]
          %v1934 = vld [vmem:[%s4 + $0x1a0] sm:$0xff]
          %v1935 = vld [vmem:[%s4 + $0x1a8] sm:$0xff]
          %v1936 = vld [vmem:[%s4 + $0x1b0] sm:$0xff]
          %v1937 = vld [vmem:[%s4 + $0x1b8] sm:$0xff]
          %v1938 = vld [vmem:[%s4 + $0x1c0] sm:$0xff]
          %v1939 = vld [vmem:[%s4 + $0x1c8] sm:$0xff]
          %v1940 = vld [vmem:[%s4 + $0x1d0] sm:$0xff]
          %v1941 = vld [vmem:[%s4 + $0x1d8] sm:$0xff]
          %v1942 = vld [vmem:[%s4 + $0x1e0] sm:$0xff]
          %v1943 = vld [vmem:[%s4 + $0x1e8] sm:$0xff]
          %v1944 = vld [vmem:[%s4 + $0x1f0] sm:$0xff]
          %v1945 = vld [vmem:[%s4 + $0x1f8] sm:$0xff]
          %1946 = vmatpush.msra.mxu0 %v1942
          %1947 = vmatpush.msra.mxu0 %v1938
          %1948 = vmatpush.msra.mxu0 %v1934
          %1949 = vmatpush.msra.mxu0 %v1930
          %1950 = vmatpush.msra.mxu0 %v1926
          %1951 = vmatpush.msra.mxu0 %v1922
          %1952 = vmatpush.msra.mxu0 %v1918
          %1953 = vmatpush.msra.mxu0 %v1914
          %1954 = vmatpush.msra.mxu0 %v1910
          %1955 = vmatpush.msra.mxu0 %v1906
          %1956 = vmatpush.msra.mxu0 %v1902
          %1957 = vmatpush.msra.mxu0 %v1898
          %1958 = vmatpush.msra.mxu0 %v1894
          %1959 = vmatpush.msra.mxu0 %v1890
          %1960 = vmatpush.msra.mxu0 %v1886
          %1961 = vmatpush.msra.mxu0 %v1882
          %1962 = vmatmul.f32.gmra.mxu0 %v1881
          %v1963 = vpop.f32.mrf.mxu0
          %v1964 = vadd.f32 0.0, %v1963
          %1965 = vdwg.mxu0
          %1966 = vmatpush.msra.mxu0 %v1943
          %1967 = vmatpush.msra.mxu0 %v1939
          %1968 = vmatpush.msra.mxu0 %v1935
          %1969 = vmatpush.msra.mxu0 %v1931
          %1970 = vmatpush.msra.mxu0 %v1927
          %1971 = vmatpush.msra.mxu0 %v1923
          %1972 = vmatpush.msra.mxu0 %v1919
          %1973 = vmatpush.msra.mxu0 %v1915
          %1974 = vmatpush.msra.mxu0 %v1911
          %1975 = vmatpush.msra.mxu0 %v1907
          %1976 = vmatpush.msra.mxu0 %v1903
          %1977 = vmatpush.msra.mxu0 %v1899
          %1978 = vmatpush.msra.mxu0 %v1895
          %1979 = vmatpush.msra.mxu0 %v1891
          %1980 = vmatpush.msra.mxu0 %v1887
          %1981 = vmatpush.msra.mxu0 %v1883
          %1982 = vmatmul.f32.gmra.mxu0 %v1881
          %v1983 = vpop.f32.mrf.mxu0
          %v1984 = vadd.f32 0.0, %v1983
          %1985 = vdwg.mxu0
          %1986 = vmatpush.msra.mxu0 %v1944
          %1987 = vmatpush.msra.mxu0 %v1940
          %1988 = vmatpush.msra.mxu0 %v1936
          %1989 = vmatpush.msra.mxu0 %v1932
          %1990 = vmatpush.msra.mxu0 %v1928
          %1991 = vmatpush.msra.mxu0 %v1924
          %1992 = vmatpush.msra.mxu0 %v1920
          %1993 = vmatpush.msra.mxu0 %v1916
          %1994 = vmatpush.msra.mxu0 %v1912
          %1995 = vmatpush.msra.mxu0 %v1908
          %1996 = vmatpush.msra.mxu0 %v1904
          %1997 = vmatpush.msra.mxu0 %v1900
          %1998 = vmatpush.msra.mxu0 %v1896
          %1999 = vmatpush.msra.mxu0 %v1892
          %2000 = vmatpush.msra.mxu0 %v1888
          %2001 = vmatpush.msra.mxu0 %v1884
          %2002 = vmatmul.f32.gmra.mxu0 %v1881
          %v2003 = vpop.f32.mrf.mxu0
          %v2004 = vadd.f32 0.0, %v2003
          %2005 = vdwg.mxu0
          %2006 = vmatpush.msra.mxu0 %v1945
          %2007 = vmatpush.msra.mxu0 %v1941
          %2008 = vmatpush.msra.mxu0 %v1937
          %2009 = vmatpush.msra.mxu0 %v1933
          %2010 = vmatpush.msra.mxu0 %v1929
          %2011 = vmatpush.msra.mxu0 %v1925
          %2012 = vmatpush.msra.mxu0 %v1921
          %2013 = vmatpush.msra.mxu0 %v1917
          %2014 = vmatpush.msra.mxu0 %v1913
          %2015 = vmatpush.msra.mxu0 %v1909
          %2016 = vmatpush.msra.mxu0 %v1905
          %2017 = vmatpush.msra.mxu0 %v1901
          %2018 = vmatpush.msra.mxu0 %v1897
          %2019 = vmatpush.msra.mxu0 %v1893
          %2020 = vmatpush.msra.mxu0 %v1889
          %2021 = vmatpush.msra.mxu0 %v1885
          %2022 = vmatmul.f32.gmra.mxu0 %v1881
          %v2023 = vpop.f32.mrf.mxu0
          %v2024 = vadd.f32 0.0, %v2023
          %2025 = vdwg.mxu0
          %v2034 = vrot.slane %v1866, 7
          %v2035 = vsel %vm568, %v2034, %v1865
          %v2036 = vrot.slane %v1867, 6
          %v2037 = vsel %vm571, %v2036, %v2035
          %v2038 = vrot.slane %v1868, 5
          %v2039 = vsel %vm574, %v2038, %v2037
          %v2040 = vrot.slane %v1869, 4
          %v2041 = vsel %vm577, %v2040, %v2039
          %v2042 = vrot.slane %v1870, 3
          %v2043 = vsel %vm580, %v2042, %v2041
          %v2044 = vrot.slane %v1871, 2
          %v2045 = vsel %vm583, %v2044, %v2043
          %v2046 = vrot.slane %v1872, 1
          %v2047 = vsel %vm586, %v2046, %v2045
          %v2048 = vsel %vm588, %v2047, 0
          %2050 = vmatpush.msra.mxu0 0.0
          %2051 = vmatpush.msra.mxu0 0.0
          %2052 = vmatpush.msra.mxu0 0.0
          %2053 = vmatpush.msra.mxu0 0.0
          %2054 = vmatpush.msra.mxu0 0.0
          %2055 = vmatpush.msra.mxu0 0.0
          %2056 = vmatpush.msra.mxu0 0.0
          %2057 = vmatpush.msra.mxu0 0.0
          %2058 = vmatpush.msra.mxu0 0.0
          %2059 = vmatpush.msra.mxu0 0.0
          %2060 = vmatpush.msra.mxu0 0.0
          %2061 = vmatpush.msra.mxu0 0.0
          %2062 = vmatpush.msra.mxu0 0.0
          %2063 = vmatpush.msra.mxu0 0.0
          %2064 = vmatpush.msra.mxu0 %v1877
          %2065 = vmatpush.msra.mxu0 %v1873
          %2066 = vmatmul.f32.gmra.mxu0 %v2048
          %v2067 = vpop.f32.mrf.mxu0
          %v2068 = vadd.f32 %v1964, %v2067
          %2069 = vdwg.mxu0
          %2070 = vmatpush.msra.mxu0 0.0
          %2071 = vmatpush.msra.mxu0 0.0
          %2072 = vmatpush.msra.mxu0 0.0
          %2073 = vmatpush.msra.mxu0 0.0
          %2074 = vmatpush.msra.mxu0 0.0
          %2075 = vmatpush.msra.mxu0 0.0
          %2076 = vmatpush.msra.mxu0 0.0
          %2077 = vmatpush.msra.mxu0 0.0
          %2078 = vmatpush.msra.mxu0 0.0
          %2079 = vmatpush.msra.mxu0 0.0
          %2080 = vmatpush.msra.mxu0 0.0
          %2081 = vmatpush.msra.mxu0 0.0
          %2082 = vmatpush.msra.mxu0 0.0
          %2083 = vmatpush.msra.mxu0 0.0
          %2084 = vmatpush.msra.mxu0 %v1878
          %2085 = vmatpush.msra.mxu0 %v1874
          %2086 = vmatmul.f32.gmra.mxu0 %v2048
          %v2087 = vpop.f32.mrf.mxu0
          %v2088 = vadd.f32 %v1984, %v2087
          %2089 = vdwg.mxu0
          %2090 = vmatpush.msra.mxu0 0.0
          %2091 = vmatpush.msra.mxu0 0.0
          %2092 = vmatpush.msra.mxu0 0.0
          %2093 = vmatpush.msra.mxu0 0.0
          %2094 = vmatpush.msra.mxu0 0.0
          %2095 = vmatpush.msra.mxu0 0.0
          %2096 = vmatpush.msra.mxu0 0.0
          %2097 = vmatpush.msra.mxu0 0.0
          %2098 = vmatpush.msra.mxu0 0.0
          %2099 = vmatpush.msra.mxu0 0.0
          %2100 = vmatpush.msra.mxu0 0.0
          %2101 = vmatpush.msra.mxu0 0.0
          %2102 = vmatpush.msra.mxu0 0.0
          %2103 = vmatpush.msra.mxu0 0.0
          %2104 = vmatpush.msra.mxu0 %v1879
          %2105 = vmatpush.msra.mxu0 %v1875
          %2106 = vmatmul.f32.gmra.mxu0 %v2048
          %v2107 = vpop.f32.mrf.mxu0
          %v2108 = vadd.f32 %v2004, %v2107
          %2109 = vdwg.mxu0
          %2110 = vmatpush.msra.mxu0 0.0
          %2111 = vmatpush.msra.mxu0 0.0
          %2112 = vmatpush.msra.mxu0 0.0
          %2113 = vmatpush.msra.mxu0 0.0
          %2114 = vmatpush.msra.mxu0 0.0
          %2115 = vmatpush.msra.mxu0 0.0
          %2116 = vmatpush.msra.mxu0 0.0
          %2117 = vmatpush.msra.mxu0 0.0
          %2118 = vmatpush.msra.mxu0 0.0
          %2119 = vmatpush.msra.mxu0 0.0
          %2120 = vmatpush.msra.mxu0 0.0
          %2121 = vmatpush.msra.mxu0 0.0
          %2122 = vmatpush.msra.mxu0 0.0
          %2123 = vmatpush.msra.mxu0 0.0
          %2124 = vmatpush.msra.mxu0 %v1880
          %2125 = vmatpush.msra.mxu0 %v1876
          %2126 = vmatmul.f32.gmra.mxu0 %v2048
          %v2127 = vpop.f32.mrf.mxu0
          %v2128 = vadd.f32 %v2024, %v2127
          %2129 = vdwg.mxu0
          %v2130 = vadd.f32 %v2068, %v390
          %v2131 = vadd.f32 %v2088, %v391
          %v2132 = vadd.f32 %v2108, %v392
          %v2133 = vadd.f32 %v2128, %v393
          %v2134 = vxor.u32 %v2130, 2147483648
          %v2135 = vmul.f32 %v2134, 1.442695
          %v2136 = vpow.pop %v2135
          %v2137 = vadd.f32 %v2136, 1.0
          %v2138 = vrcp.pop %v2137
          %v2139 = vmul.f32 %v2137, %v2138
          %v2140 = vsub.f32 1.0, %v2139
          %v2141 = vmul.f32 %v2138, %v2140
          %v2142 = vadd.f32 %v2138, %v2141
          %vm2143 = vweird.f32 %v2137
          %vm2144 = vweird.f32 %v2138
          %vm2145 = vmor %vm2143, %vm2144
          %v2146 = vsel %vm2145, %v2138, %v2142
          %v2147 = vand.u32 2147483647, %v2137
          %vm2148 = vcmp.eq.f32.partialorder %v2147, 8.507059e+37
          %v2149 = vand.u32 %v2137, 2147483648
          %v2150 = vor.u32 1.1754944e-38, %v2149
          %v2151 = vsel %vm2148, %v2150, %v2146
          %v2152 = vmul.f32 1.0, %v2151
          %v2153 = vxor.u32 %v2131, 2147483648
          %v2154 = vmul.f32 %v2153, 1.442695
          %v2155 = vpow.pop %v2154
          %v2156 = vadd.f32 %v2155, 1.0
          %v2157 = vrcp.pop %v2156
          %v2158 = vmul.f32 %v2156, %v2157
          %v2159 = vsub.f32 1.0, %v2158
          %v2160 = vmul.f32 %v2157, %v2159
          %v2161 = vadd.f32 %v2157, %v2160
          %vm2162 = vweird.f32 %v2156
          %vm2163 = vweird.f32 %v2157
          %vm2164 = vmor %vm2162, %vm2163
          %v2165 = vsel %vm2164, %v2157, %v2161
          %v2166 = vand.u32 2147483647, %v2156
          %vm2167 = vcmp.eq.f32.partialorder %v2166, 8.507059e+37
          %v2168 = vand.u32 %v2156, 2147483648
          %v2169 = vor.u32 1.1754944e-38, %v2168
          %v2170 = vsel %vm2167, %v2169, %v2165
          %v2171 = vmul.f32 1.0, %v2170
          %v2172 = vtanh.pop %v2132
          %v2173 = vxor.u32 %v2133, 2147483648
          %v2174 = vmul.f32 %v2173, 1.442695
          %v2175 = vpow.pop %v2174
          %v2176 = vadd.f32 %v2175, 1.0
          %v2177 = vrcp.pop %v2176
          %v2178 = vmul.f32 %v2176, %v2177
          %v2179 = vsub.f32 1.0, %v2178
          %v2180 = vmul.f32 %v2177, %v2179
          %v2181 = vadd.f32 %v2177, %v2180
          %vm2182 = vweird.f32 %v2176
          %vm2183 = vweird.f32 %v2177
          %vm2184 = vmor %vm2182, %vm2183
          %v2185 = vsel %vm2184, %v2177, %v2181
          %v2186 = vand.u32 2147483647, %v2176
          %vm2187 = vcmp.eq.f32.partialorder %v2186, 8.507059e+37
          %v2188 = vand.u32 %v2176, 2147483648
          %v2189 = vor.u32 1.1754944e-38, %v2188
          %v2190 = vsel %vm2187, %v2189, %v2185
          %v2191 = vmul.f32 1.0, %v2190
          %v2192 = vld [vmem:[#allocation3] sm:$0xff]
          %v2193 = vmul.f32 %v2171, %v2192
          %v2194 = vmul.f32 %v2152, %v2172
          %v2195 = vadd.f32 %v2193, %v2194
          %v2196 = vtanh.pop %v2195
          %v2197 = vmul.f32 %v2191, %v2196
          %s2198 = sadd.s32 %s383, 4
          %v2199 = vstv %s2198
          %vm2200 = vcmp.gt.s32.totalorder %v387, %v2199
          %v2201 = vsel %vm2200, %v2197, %v1881
          %2202 = vst [vmem:[#allocation2] sm:$0xff] %v2201
          %v2203 = vld [vmem:[#allocation3] sm:$0xff]
          %v2204 = vsel %vm2200, %v2195, %v2203
          %2205 = vst [vmem:[#allocation3] sm:$0xff] %v2204
          %v2206 = vsel %vm2200, %v2197, 0.0
          %v2208 = vrot.slane %v2206, 1
          %v2209 = vrot.slane %v2206, 2
          %v2210 = vrot.slane %v2206, 3
          %v2211 = vrot.slane %v2206, 4
          %v2212 = vrot.slane %v2206, 5
          %v2213 = vrot.slane %v2206, 6
          %v2214 = vrot.slane %v2206, 7
          %2222 = vst [vmem:[%s343 + $0x4] sm:$0x1] %v2206
          %2223 = vst [vmem:[%s343 + $0xc] sm:$0x1] %v2208
          %2224 = vst [vmem:[%s343 + $0x14] sm:$0x1] %v2209
          %2225 = vst [vmem:[%s343 + $0x1c] sm:$0x1] %v2210
          %2226 = vst [vmem:[%s343 + $0x24] sm:$0x1] %v2211
          %2227 = vst [vmem:[%s343 + $0x2c] sm:$0x1] %v2212
          %2228 = vst [vmem:[%s343 + $0x34] sm:$0x1] %v2213
          %2229 = vst [vmem:[%s343 + $0x3c] sm:$0x1] %v2214
          %v2230 = vld [vmem:[%s316 + $0x5] sm:$0x1]
          %v2231 = vld [vmem:[%s316 + $0xd] sm:$0x1]
          %v2232 = vld [vmem:[%s316 + $0x15] sm:$0x1]
          %v2233 = vld [vmem:[%s316 + $0x1d] sm:$0x1]
          %v2234 = vld [vmem:[%s316 + $0x25] sm:$0x1]
          %v2235 = vld [vmem:[%s316 + $0x2d] sm:$0x1]
          %v2236 = vld [vmem:[%s316 + $0x35] sm:$0x1]
          %v2237 = vld [vmem:[%s316 + $0x3d] sm:$0x1]
          %v2238 = vld [vmem:[%s3] sm:$0xff]
          %v2239 = vld [vmem:[%s3 + $0x8] sm:$0xff]
          %v2240 = vld [vmem:[%s3 + $0x10] sm:$0xff]
          %v2241 = vld [vmem:[%s3 + $0x18] sm:$0xff]
          %v2242 = vld [vmem:[%s3 + $0x20] sm:$0xff]
          %v2243 = vld [vmem:[%s3 + $0x28] sm:$0xff]
          %v2244 = vld [vmem:[%s3 + $0x30] sm:$0xff]
          %v2245 = vld [vmem:[%s3 + $0x38] sm:$0xff]
          %v2246 = vld [vmem:[#allocation2] sm:$0xff]
          %v2247 = vld [vmem:[%s4] sm:$0xff]
          %v2248 = vld [vmem:[%s4 + $0x8] sm:$0xff]
          %v2249 = vld [vmem:[%s4 + $0x10] sm:$0xff]
          %v2250 = vld [vmem:[%s4 + $0x18] sm:$0xff]
          %v2251 = vld [vmem:[%s4 + $0x20] sm:$0xff]
          %v2252 = vld [vmem:[%s4 + $0x28] sm:$0xff]
          %v2253 = vld [vmem:[%s4 + $0x30] sm:$0xff]
          %v2254 = vld [vmem:[%s4 + $0x38] sm:$0xff]
          %v2255 = vld [vmem:[%s4 + $0x40] sm:$0xff]
          %v2256 = vld [vmem:[%s4 + $0x48] sm:$0xff]
          %v2257 = vld [vmem:[%s4 + $0x50] sm:$0xff]
          %v2258 = vld [vmem:[%s4 + $0x58] sm:$0xff]
          %v2259 = vld [vmem:[%s4 + $0x60] sm:$0xff]
          %v2260 = vld [vmem:[%s4 + $0x68] sm:$0xff]
          %v2261 = vld [vmem:[%s4 + $0x70] sm:$0xff]
          %v2262 = vld [vmem:[%s4 + $0x78] sm:$0xff]
          %v2263 = vld [vmem:[%s4 + $0x80] sm:$0xff]
          %v2264 = vld [vmem:[%s4 + $0x88] sm:$0xff]
          %v2265 = vld [vmem:[%s4 + $0x90] sm:$0xff]
          %v2266 = vld [vmem:[%s4 + $0x98] sm:$0xff]
          %v2267 = vld [vmem:[%s4 + $0xa0] sm:$0xff]
          %v2268 = vld [vmem:[%s4 + $0xa8] sm:$0xff]
          %v2269 = vld [vmem:[%s4 + $0xb0] sm:$0xff]
          %v2270 = vld [vmem:[%s4 + $0xb8] sm:$0xff]
          %v2271 = vld [vmem:[%s4 + $0xc0] sm:$0xff]
          %v2272 = vld [vmem:[%s4 + $0xc8] sm:$0xff]
          %v2273 = vld [vmem:[%s4 + $0xd0] sm:$0xff]
          %v2274 = vld [vmem:[%s4 + $0xd8] sm:$0xff]
          %v2275 = vld [vmem:[%s4 + $0xe0] sm:$0xff]
          %v2276 = vld [vmem:[%s4 + $0xe8] sm:$0xff]
          %v2277 = vld [vmem:[%s4 + $0xf0] sm:$0xff]
          %v2278 = vld [vmem:[%s4 + $0xf8] sm:$0xff]
          %v2279 = vld [vmem:[%s4 + $0x100] sm:$0xff]
          %v2280 = vld [vmem:[%s4 + $0x108] sm:$0xff]
          %v2281 = vld [vmem:[%s4 + $0x110] sm:$0xff]
          %v2282 = vld [vmem:[%s4 + $0x118] sm:$0xff]
          %v2283 = vld [vmem:[%s4 + $0x120] sm:$0xff]
          %v2284 = vld [vmem:[%s4 + $0x128] sm:$0xff]
          %v2285 = vld [vmem:[%s4 + $0x130] sm:$0xff]
          %v2286 = vld [vmem:[%s4 + $0x138] sm:$0xff]
          %v2287 = vld [vmem:[%s4 + $0x140] sm:$0xff]
          %v2288 = vld [vmem:[%s4 + $0x148] sm:$0xff]
          %v2289 = vld [vmem:[%s4 + $0x150] sm:$0xff]
          %v2290 = vld [vmem:[%s4 + $0x158] sm:$0xff]
          %v2291 = vld [vmem:[%s4 + $0x160] sm:$0xff]
          %v2292 = vld [vmem:[%s4 + $0x168] sm:$0xff]
          %v2293 = vld [vmem:[%s4 + $0x170] sm:$0xff]
          %v2294 = vld [vmem:[%s4 + $0x178] sm:$0xff]
          %v2295 = vld [vmem:[%s4 + $0x180] sm:$0xff]
          %v2296 = vld [vmem:[%s4 + $0x188] sm:$0xff]
          %v2297 = vld [vmem:[%s4 + $0x190] sm:$0xff]
          %v2298 = vld [vmem:[%s4 + $0x198] sm:$0xff]
          %v2299 = vld [vmem:[%s4 + $0x1a0] sm:$0xff]
          %v2300 = vld [vmem:[%s4 + $0x1a8] sm:$0xff]
          %v2301 = vld [vmem:[%s4 + $0x1b0] sm:$0xff]
          %v2302 = vld [vmem:[%s4 + $0x1b8] sm:$0xff]
          %v2303 = vld [vmem:[%s4 + $0x1c0] sm:$0xff]
          %v2304 = vld [vmem:[%s4 + $0x1c8] sm:$0xff]
          %v2305 = vld [vmem:[%s4 + $0x1d0] sm:$0xff]
          %v2306 = vld [vmem:[%s4 + $0x1d8] sm:$0xff]
          %v2307 = vld [vmem:[%s4 + $0x1e0] sm:$0xff]
          %v2308 = vld [vmem:[%s4 + $0x1e8] sm:$0xff]
          %v2309 = vld [vmem:[%s4 + $0x1f0] sm:$0xff]
          %v2310 = vld [vmem:[%s4 + $0x1f8] sm:$0xff]
          %2311 = vmatpush.msra.mxu0 %v2307
          %2312 = vmatpush.msra.mxu0 %v2303
          %2313 = vmatpush.msra.mxu0 %v2299
          %2314 = vmatpush.msra.mxu0 %v2295
          %2315 = vmatpush.msra.mxu0 %v2291
          %2316 = vmatpush.msra.mxu0 %v2287
          %2317 = vmatpush.msra.mxu0 %v2283
          %2318 = vmatpush.msra.mxu0 %v2279
          %2319 = vmatpush.msra.mxu0 %v2275
          %2320 = vmatpush.msra.mxu0 %v2271
          %2321 = vmatpush.msra.mxu0 %v2267
          %2322 = vmatpush.msra.mxu0 %v2263
          %2323 = vmatpush.msra.mxu0 %v2259
          %2324 = vmatpush.msra.mxu0 %v2255
          %2325 = vmatpush.msra.mxu0 %v2251
          %2326 = vmatpush.msra.mxu0 %v2247
          %2327 = vmatmul.f32.gmra.mxu0 %v2246
          %v2328 = vpop.f32.mrf.mxu0
          %v2329 = vadd.f32 0.0, %v2328
          %2330 = vdwg.mxu0
          %2331 = vmatpush.msra.mxu0 %v2308
          %2332 = vmatpush.msra.mxu0 %v2304
          %2333 = vmatpush.msra.mxu0 %v2300
          %2334 = vmatpush.msra.mxu0 %v2296
          %2335 = vmatpush.msra.mxu0 %v2292
          %2336 = vmatpush.msra.mxu0 %v2288
          %2337 = vmatpush.msra.mxu0 %v2284
          %2338 = vmatpush.msra.mxu0 %v2280
          %2339 = vmatpush.msra.mxu0 %v2276
          %2340 = vmatpush.msra.mxu0 %v2272
          %2341 = vmatpush.msra.mxu0 %v2268
          %2342 = vmatpush.msra.mxu0 %v2264
          %2343 = vmatpush.msra.mxu0 %v2260
          %2344 = vmatpush.msra.mxu0 %v2256
          %2345 = vmatpush.msra.mxu0 %v2252
          %2346 = vmatpush.msra.mxu0 %v2248
          %2347 = vmatmul.f32.gmra.mxu0 %v2246
          %v2348 = vpop.f32.mrf.mxu0
          %v2349 = vadd.f32 0.0, %v2348
          %2350 = vdwg.mxu0
          %2351 = vmatpush.msra.mxu0 %v2309
          %2352 = vmatpush.msra.mxu0 %v2305
          %2353 = vmatpush.msra.mxu0 %v2301
          %2354 = vmatpush.msra.mxu0 %v2297
          %2355 = vmatpush.msra.mxu0 %v2293
          %2356 = vmatpush.msra.mxu0 %v2289
          %2357 = vmatpush.msra.mxu0 %v2285
          %2358 = vmatpush.msra.mxu0 %v2281
          %2359 = vmatpush.msra.mxu0 %v2277
          %2360 = vmatpush.msra.mxu0 %v2273
          %2361 = vmatpush.msra.mxu0 %v2269
          %2362 = vmatpush.msra.mxu0 %v2265
          %2363 = vmatpush.msra.mxu0 %v2261
          %2364 = vmatpush.msra.mxu0 %v2257
          %2365 = vmatpush.msra.mxu0 %v2253
          %2366 = vmatpush.msra.mxu0 %v2249
          %2367 = vmatmul.f32.gmra.mxu0 %v2246
          %v2368 = vpop.f32.mrf.mxu0
          %v2369 = vadd.f32 0.0, %v2368
          %2370 = vdwg.mxu0
          %2371 = vmatpush.msra.mxu0 %v2310
          %2372 = vmatpush.msra.mxu0 %v2306
          %2373 = vmatpush.msra.mxu0 %v2302
          %2374 = vmatpush.msra.mxu0 %v2298
          %2375 = vmatpush.msra.mxu0 %v2294
          %2376 = vmatpush.msra.mxu0 %v2290
          %2377 = vmatpush.msra.mxu0 %v2286
          %2378 = vmatpush.msra.mxu0 %v2282
          %2379 = vmatpush.msra.mxu0 %v2278
          %2380 = vmatpush.msra.mxu0 %v2274
          %2381 = vmatpush.msra.mxu0 %v2270
          %2382 = vmatpush.msra.mxu0 %v2266
          %2383 = vmatpush.msra.mxu0 %v2262
          %2384 = vmatpush.msra.mxu0 %v2258
          %2385 = vmatpush.msra.mxu0 %v2254
          %2386 = vmatpush.msra.mxu0 %v2250
          %2387 = vmatmul.f32.gmra.mxu0 %v2246
          %v2388 = vpop.f32.mrf.mxu0
          %v2389 = vadd.f32 0.0, %v2388
          %2390 = vdwg.mxu0
          %v2399 = vrot.slane %v2231, 7
          %v2400 = vsel %vm568, %v2399, %v2230
          %v2401 = vrot.slane %v2232, 6
          %v2402 = vsel %vm571, %v2401, %v2400
          %v2403 = vrot.slane %v2233, 5
          %v2404 = vsel %vm574, %v2403, %v2402
          %v2405 = vrot.slane %v2234, 4
          %v2406 = vsel %vm577, %v2405, %v2404
          %v2407 = vrot.slane %v2235, 3
          %v2408 = vsel %vm580, %v2407, %v2406
          %v2409 = vrot.slane %v2236, 2
          %v2410 = vsel %vm583, %v2409, %v2408
          %v2411 = vrot.slane %v2237, 1
          %v2412 = vsel %vm586, %v2411, %v2410
          %v2413 = vsel %vm588, %v2412, 0
          %2415 = vmatpush.msra.mxu0 0.0
          %2416 = vmatpush.msra.mxu0 0.0
          %2417 = vmatpush.msra.mxu0 0.0
          %2418 = vmatpush.msra.mxu0 0.0
          %2419 = vmatpush.msra.mxu0 0.0
          %2420 = vmatpush.msra.mxu0 0.0
          %2421 = vmatpush.msra.mxu0 0.0
          %2422 = vmatpush.msra.mxu0 0.0
          %2423 = vmatpush.msra.mxu0 0.0
          %2424 = vmatpush.msra.mxu0 0.0
          %2425 = vmatpush.msra.mxu0 0.0
          %2426 = vmatpush.msra.mxu0 0.0
          %2427 = vmatpush.msra.mxu0 0.0
          %2428 = vmatpush.msra.mxu0 0.0
          %2429 = vmatpush.msra.mxu0 %v2242
          %2430 = vmatpush.msra.mxu0 %v2238
          %2431 = vmatmul.f32.gmra.mxu0 %v2413
          %v2432 = vpop.f32.mrf.mxu0
          %v2433 = vadd.f32 %v2329, %v2432
          %2434 = vdwg.mxu0
          %2435 = vmatpush.msra.mxu0 0.0
          %2436 = vmatpush.msra.mxu0 0.0
          %2437 = vmatpush.msra.mxu0 0.0
          %2438 = vmatpush.msra.mxu0 0.0
          %2439 = vmatpush.msra.mxu0 0.0
          %2440 = vmatpush.msra.mxu0 0.0
          %2441 = vmatpush.msra.mxu0 0.0
          %2442 = vmatpush.msra.mxu0 0.0
          %2443 = vmatpush.msra.mxu0 0.0
          %2444 = vmatpush.msra.mxu0 0.0
          %2445 = vmatpush.msra.mxu0 0.0
          %2446 = vmatpush.msra.mxu0 0.0
          %2447 = vmatpush.msra.mxu0 0.0
          %2448 = vmatpush.msra.mxu0 0.0
          %2449 = vmatpush.msra.mxu0 %v2243
          %2450 = vmatpush.msra.mxu0 %v2239
          %2451 = vmatmul.f32.gmra.mxu0 %v2413
          %v2452 = vpop.f32.mrf.mxu0
          %v2453 = vadd.f32 %v2349, %v2452
          %2454 = vdwg.mxu0
          %2455 = vmatpush.msra.mxu0 0.0
          %2456 = vmatpush.msra.mxu0 0.0
          %2457 = vmatpush.msra.mxu0 0.0
          %2458 = vmatpush.msra.mxu0 0.0
          %2459 = vmatpush.msra.mxu0 0.0
          %2460 = vmatpush.msra.mxu0 0.0
          %2461 = vmatpush.msra.mxu0 0.0
          %2462 = vmatpush.msra.mxu0 0.0
          %2463 = vmatpush.msra.mxu0 0.0
          %2464 = vmatpush.msra.mxu0 0.0
          %2465 = vmatpush.msra.mxu0 0.0
          %2466 = vmatpush.msra.mxu0 0.0
          %2467 = vmatpush.msra.mxu0 0.0
          %2468 = vmatpush.msra.mxu0 0.0
          %2469 = vmatpush.msra.mxu0 %v2244
          %2470 = vmatpush.msra.mxu0 %v2240
          %2471 = vmatmul.f32.gmra.mxu0 %v2413
          %v2472 = vpop.f32.mrf.mxu0
          %v2473 = vadd.f32 %v2369, %v2472
          %2474 = vdwg.mxu0
          %2475 = vmatpush.msra.mxu0 0.0
          %2476 = vmatpush.msra.mxu0 0.0
          %2477 = vmatpush.msra.mxu0 0.0
          %2478 = vmatpush.msra.mxu0 0.0
          %2479 = vmatpush.msra.mxu0 0.0
          %2480 = vmatpush.msra.mxu0 0.0
          %2481 = vmatpush.msra.mxu0 0.0
          %2482 = vmatpush.msra.mxu0 0.0
          %2483 = vmatpush.msra.mxu0 0.0
          %2484 = vmatpush.msra.mxu0 0.0
          %2485 = vmatpush.msra.mxu0 0.0
          %2486 = vmatpush.msra.mxu0 0.0
          %2487 = vmatpush.msra.mxu0 0.0
          %2488 = vmatpush.msra.mxu0 0.0
          %2489 = vmatpush.msra.mxu0 %v2245
          %2490 = vmatpush.msra.mxu0 %v2241
          %2491 = vmatmul.f32.gmra.mxu0 %v2413
          %v2492 = vpop.f32.mrf.mxu0
          %v2493 = vadd.f32 %v2389, %v2492
          %2494 = vdwg.mxu0
          %v2495 = vadd.f32 %v2433, %v390
          %v2496 = vadd.f32 %v2453, %v391
          %v2497 = vadd.f32 %v2473, %v392
          %v2498 = vadd.f32 %v2493, %v393
          %v2499 = vxor.u32 %v2495, 2147483648
          %v2500 = vmul.f32 %v2499, 1.442695
          %v2501 = vpow.pop %v2500
          %v2502 = vadd.f32 %v2501, 1.0
          %v2503 = vrcp.pop %v2502
          %v2504 = vmul.f32 %v2502, %v2503
          %v2505 = vsub.f32 1.0, %v2504
          %v2506 = vmul.f32 %v2503, %v2505
          %v2507 = vadd.f32 %v2503, %v2506
          %vm2508 = vweird.f32 %v2502
          %vm2509 = vweird.f32 %v2503
          %vm2510 = vmor %vm2508, %vm2509
          %v2511 = vsel %vm2510, %v2503, %v2507
          %v2512 = vand.u32 2147483647, %v2502
          %vm2513 = vcmp.eq.f32.partialorder %v2512, 8.507059e+37
          %v2514 = vand.u32 %v2502, 2147483648
          %v2515 = vor.u32 1.1754944e-38, %v2514
          %v2516 = vsel %vm2513, %v2515, %v2511
          %v2517 = vmul.f32 1.0, %v2516
          %v2518 = vxor.u32 %v2496, 2147483648
          %v2519 = vmul.f32 %v2518, 1.442695
          %v2520 = vpow.pop %v2519
          %v2521 = vadd.f32 %v2520, 1.0
          %v2522 = vrcp.pop %v2521
          %v2523 = vmul.f32 %v2521, %v2522
          %v2524 = vsub.f32 1.0, %v2523
          %v2525 = vmul.f32 %v2522, %v2524
          %v2526 = vadd.f32 %v2522, %v2525
          %vm2527 = vweird.f32 %v2521
          %vm2528 = vweird.f32 %v2522
          %vm2529 = vmor %vm2527, %vm2528
          %v2530 = vsel %vm2529, %v2522, %v2526
          %v2531 = vand.u32 2147483647, %v2521
          %vm2532 = vcmp.eq.f32.partialorder %v2531, 8.507059e+37
          %v2533 = vand.u32 %v2521, 2147483648
          %v2534 = vor.u32 1.1754944e-38, %v2533
          %v2535 = vsel %vm2532, %v2534, %v2530
          %v2536 = vmul.f32 1.0, %v2535
          %v2537 = vtanh.pop %v2497
          %v2538 = vxor.u32 %v2498, 2147483648
          %v2539 = vmul.f32 %v2538, 1.442695
          %v2540 = vpow.pop %v2539
          %v2541 = vadd.f32 %v2540, 1.0
          %v2542 = vrcp.pop %v2541
          %v2543 = vmul.f32 %v2541, %v2542
          %v2544 = vsub.f32 1.0, %v2543
          %v2545 = vmul.f32 %v2542, %v2544
          %v2546 = vadd.f32 %v2542, %v2545
          %vm2547 = vweird.f32 %v2541
          %vm2548 = vweird.f32 %v2542
          %vm2549 = vmor %vm2547, %vm2548
          %v2550 = vsel %vm2549, %v2542, %v2546
          %v2551 = vand.u32 2147483647, %v2541
          %vm2552 = vcmp.eq.f32.partialorder %v2551, 8.507059e+37
          %v2553 = vand.u32 %v2541, 2147483648
          %v2554 = vor.u32 1.1754944e-38, %v2553
          %v2555 = vsel %vm2552, %v2554, %v2550
          %v2556 = vmul.f32 1.0, %v2555
          %v2557 = vld [vmem:[#allocation3] sm:$0xff]
          %v2558 = vmul.f32 %v2536, %v2557
          %v2559 = vmul.f32 %v2517, %v2537
          %v2560 = vadd.f32 %v2558, %v2559
          %v2561 = vtanh.pop %v2560
          %v2562 = vmul.f32 %v2556, %v2561
          %s2563 = sadd.s32 %s383, 5
          %v2564 = vstv %s2563
          %vm2565 = vcmp.gt.s32.totalorder %v387, %v2564
          %v2566 = vsel %vm2565, %v2562, %v2246
          %2567 = vst [vmem:[#allocation2] sm:$0xff] %v2566
          %v2568 = vld [vmem:[#allocation3] sm:$0xff]
          %v2569 = vsel %vm2565, %v2560, %v2568
          %2570 = vst [vmem:[#allocation3] sm:$0xff] %v2569
          %v2571 = vsel %vm2565, %v2562, 0.0
          %v2573 = vrot.slane %v2571, 1
          %v2574 = vrot.slane %v2571, 2
          %v2575 = vrot.slane %v2571, 3
          %v2576 = vrot.slane %v2571, 4
          %v2577 = vrot.slane %v2571, 5
          %v2578 = vrot.slane %v2571, 6
          %v2579 = vrot.slane %v2571, 7
          %2587 = vst [vmem:[%s343 + $0x5] sm:$0x1] %v2571
          %2588 = vst [vmem:[%s343 + $0xd] sm:$0x1] %v2573
          %2589 = vst [vmem:[%s343 + $0x15] sm:$0x1] %v2574
          %2590 = vst [vmem:[%s343 + $0x1d] sm:$0x1] %v2575
          %2591 = vst [vmem:[%s343 + $0x25] sm:$0x1] %v2576
          %2592 = vst [vmem:[%s343 + $0x2d] sm:$0x1] %v2577
          %2593 = vst [vmem:[%s343 + $0x35] sm:$0x1] %v2578
          %2594 = vst [vmem:[%s343 + $0x3d] sm:$0x1] %v2579
          %v2595 = vld [vmem:[%s316 + $0x6] sm:$0x1]
          %v2596 = vld [vmem:[%s316 + $0xe] sm:$0x1]
          %v2597 = vld [vmem:[%s316 + $0x16] sm:$0x1]
          %v2598 = vld [vmem:[%s316 + $0x1e] sm:$0x1]
          %v2599 = vld [vmem:[%s316 + $0x26] sm:$0x1]
          %v2600 = vld [vmem:[%s316 + $0x2e] sm:$0x1]
          %v2601 = vld [vmem:[%s316 + $0x36] sm:$0x1]
          %v2602 = vld [vmem:[%s316 + $0x3e] sm:$0x1]
          %v2603 = vld [vmem:[%s3] sm:$0xff]
          %v2604 = vld [vmem:[%s3 + $0x8] sm:$0xff]
          %v2605 = vld [vmem:[%s3 + $0x10] sm:$0xff]
          %v2606 = vld [vmem:[%s3 + $0x18] sm:$0xff]
          %v2607 = vld [vmem:[%s3 + $0x20] sm:$0xff]
          %v2608 = vld [vmem:[%s3 + $0x28] sm:$0xff]
          %v2609 = vld [vmem:[%s3 + $0x30] sm:$0xff]
          %v2610 = vld [vmem:[%s3 + $0x38] sm:$0xff]
          %v2611 = vld [vmem:[#allocation2] sm:$0xff]
          %v2612 = vld [vmem:[%s4] sm:$0xff]
          %v2613 = vld [vmem:[%s4 + $0x8] sm:$0xff]
          %v2614 = vld [vmem:[%s4 + $0x10] sm:$0xff]
          %v2615 = vld [vmem:[%s4 + $0x18] sm:$0xff]
          %v2616 = vld [vmem:[%s4 + $0x20] sm:$0xff]
          %v2617 = vld [vmem:[%s4 + $0x28] sm:$0xff]
          %v2618 = vld [vmem:[%s4 + $0x30] sm:$0xff]
          %v2619 = vld [vmem:[%s4 + $0x38] sm:$0xff]
          %v2620 = vld [vmem:[%s4 + $0x40] sm:$0xff]
          %v2621 = vld [vmem:[%s4 + $0x48] sm:$0xff]
          %v2622 = vld [vmem:[%s4 + $0x50] sm:$0xff]
          %v2623 = vld [vmem:[%s4 + $0x58] sm:$0xff]
          %v2624 = vld [vmem:[%s4 + $0x60] sm:$0xff]
          %v2625 = vld [vmem:[%s4 + $0x68] sm:$0xff]
          %v2626 = vld [vmem:[%s4 + $0x70] sm:$0xff]
          %v2627 = vld [vmem:[%s4 + $0x78] sm:$0xff]
          %v2628 = vld [vmem:[%s4 + $0x80] sm:$0xff]
          %v2629 = vld [vmem:[%s4 + $0x88] sm:$0xff]
          %v2630 = vld [vmem:[%s4 + $0x90] sm:$0xff]
          %v2631 = vld [vmem:[%s4 + $0x98] sm:$0xff]
          %v2632 = vld [vmem:[%s4 + $0xa0] sm:$0xff]
          %v2633 = vld [vmem:[%s4 + $0xa8] sm:$0xff]
          %v2634 = vld [vmem:[%s4 + $0xb0] sm:$0xff]
          %v2635 = vld [vmem:[%s4 + $0xb8] sm:$0xff]
          %v2636 = vld [vmem:[%s4 + $0xc0] sm:$0xff]
          %v2637 = vld [vmem:[%s4 + $0xc8] sm:$0xff]
          %v2638 = vld [vmem:[%s4 + $0xd0] sm:$0xff]
          %v2639 = vld [vmem:[%s4 + $0xd8] sm:$0xff]
          %v2640 = vld [vmem:[%s4 + $0xe0] sm:$0xff]
          %v2641 = vld [vmem:[%s4 + $0xe8] sm:$0xff]
          %v2642 = vld [vmem:[%s4 + $0xf0] sm:$0xff]
          %v2643 = vld [vmem:[%s4 + $0xf8] sm:$0xff]
          %v2644 = vld [vmem:[%s4 + $0x100] sm:$0xff]
          %v2645 = vld [vmem:[%s4 + $0x108] sm:$0xff]
          %v2646 = vld [vmem:[%s4 + $0x110] sm:$0xff]
          %v2647 = vld [vmem:[%s4 + $0x118] sm:$0xff]
          %v2648 = vld [vmem:[%s4 + $0x120] sm:$0xff]
          %v2649 = vld [vmem:[%s4 + $0x128] sm:$0xff]
          %v2650 = vld [vmem:[%s4 + $0x130] sm:$0xff]
          %v2651 = vld [vmem:[%s4 + $0x138] sm:$0xff]
          %v2652 = vld [vmem:[%s4 + $0x140] sm:$0xff]
          %v2653 = vld [vmem:[%s4 + $0x148] sm:$0xff]
          %v2654 = vld [vmem:[%s4 + $0x150] sm:$0xff]
          %v2655 = vld [vmem:[%s4 + $0x158] sm:$0xff]
          %v2656 = vld [vmem:[%s4 + $0x160] sm:$0xff]
          %v2657 = vld [vmem:[%s4 + $0x168] sm:$0xff]
          %v2658 = vld [vmem:[%s4 + $0x170] sm:$0xff]
          %v2659 = vld [vmem:[%s4 + $0x178] sm:$0xff]
          %v2660 = vld [vmem:[%s4 + $0x180] sm:$0xff]
          %v2661 = vld [vmem:[%s4 + $0x188] sm:$0xff]
          %v2662 = vld [vmem:[%s4 + $0x190] sm:$0xff]
          %v2663 = vld [vmem:[%s4 + $0x198] sm:$0xff]
          %v2664 = vld [vmem:[%s4 + $0x1a0] sm:$0xff]
          %v2665 = vld [vmem:[%s4 + $0x1a8] sm:$0xff]
          %v2666 = vld [vmem:[%s4 + $0x1b0] sm:$0xff]
          %v2667 = vld [vmem:[%s4 + $0x1b8] sm:$0xff]
          %v2668 = vld [vmem:[%s4 + $0x1c0] sm:$0xff]
          %v2669 = vld [vmem:[%s4 + $0x1c8] sm:$0xff]
          %v2670 = vld [vmem:[%s4 + $0x1d0] sm:$0xff]
          %v2671 = vld [vmem:[%s4 + $0x1d8] sm:$0xff]
          %v2672 = vld [vmem:[%s4 + $0x1e0] sm:$0xff]
          %v2673 = vld [vmem:[%s4 + $0x1e8] sm:$0xff]
          %v2674 = vld [vmem:[%s4 + $0x1f0] sm:$0xff]
          %v2675 = vld [vmem:[%s4 + $0x1f8] sm:$0xff]
          %2676 = vmatpush.msra.mxu0 %v2672
          %2677 = vmatpush.msra.mxu0 %v2668
          %2678 = vmatpush.msra.mxu0 %v2664
          %2679 = vmatpush.msra.mxu0 %v2660
          %2680 = vmatpush.msra.mxu0 %v2656
          %2681 = vmatpush.msra.mxu0 %v2652
          %2682 = vmatpush.msra.mxu0 %v2648
          %2683 = vmatpush.msra.mxu0 %v2644
          %2684 = vmatpush.msra.mxu0 %v2640
          %2685 = vmatpush.msra.mxu0 %v2636
          %2686 = vmatpush.msra.mxu0 %v2632
          %2687 = vmatpush.msra.mxu0 %v2628
          %2688 = vmatpush.msra.mxu0 %v2624
          %2689 = vmatpush.msra.mxu0 %v2620
          %2690 = vmatpush.msra.mxu0 %v2616
          %2691 = vmatpush.msra.mxu0 %v2612
          %2692 = vmatmul.f32.gmra.mxu0 %v2611
          %v2693 = vpop.f32.mrf.mxu0
          %v2694 = vadd.f32 0.0, %v2693
          %2695 = vdwg.mxu0
          %2696 = vmatpush.msra.mxu0 %v2673
          %2697 = vmatpush.msra.mxu0 %v2669
          %2698 = vmatpush.msra.mxu0 %v2665
          %2699 = vmatpush.msra.mxu0 %v2661
          %2700 = vmatpush.msra.mxu0 %v2657
          %2701 = vmatpush.msra.mxu0 %v2653
          %2702 = vmatpush.msra.mxu0 %v2649
          %2703 = vmatpush.msra.mxu0 %v2645
          %2704 = vmatpush.msra.mxu0 %v2641
          %2705 = vmatpush.msra.mxu0 %v2637
          %2706 = vmatpush.msra.mxu0 %v2633
          %2707 = vmatpush.msra.mxu0 %v2629
          %2708 = vmatpush.msra.mxu0 %v2625
          %2709 = vmatpush.msra.mxu0 %v2621
          %2710 = vmatpush.msra.mxu0 %v2617
          %2711 = vmatpush.msra.mxu0 %v2613
          %2712 = vmatmul.f32.gmra.mxu0 %v2611
          %v2713 = vpop.f32.mrf.mxu0
          %v2714 = vadd.f32 0.0, %v2713
          %2715 = vdwg.mxu0
          %2716 = vmatpush.msra.mxu0 %v2674
          %2717 = vmatpush.msra.mxu0 %v2670
          %2718 = vmatpush.msra.mxu0 %v2666
          %2719 = vmatpush.msra.mxu0 %v2662
          %2720 = vmatpush.msra.mxu0 %v2658
          %2721 = vmatpush.msra.mxu0 %v2654
          %2722 = vmatpush.msra.mxu0 %v2650
          %2723 = vmatpush.msra.mxu0 %v2646
          %2724 = vmatpush.msra.mxu0 %v2642
          %2725 = vmatpush.msra.mxu0 %v2638
          %2726 = vmatpush.msra.mxu0 %v2634
          %2727 = vmatpush.msra.mxu0 %v2630
          %2728 = vmatpush.msra.mxu0 %v2626
          %2729 = vmatpush.msra.mxu0 %v2622
          %2730 = vmatpush.msra.mxu0 %v2618
          %2731 = vmatpush.msra.mxu0 %v2614
          %2732 = vmatmul.f32.gmra.mxu0 %v2611
          %v2733 = vpop.f32.mrf.mxu0
          %v2734 = vadd.f32 0.0, %v2733
          %2735 = vdwg.mxu0
          %2736 = vmatpush.msra.mxu0 %v2675
          %2737 = vmatpush.msra.mxu0 %v2671
          %2738 = vmatpush.msra.mxu0 %v2667
          %2739 = vmatpush.msra.mxu0 %v2663
          %2740 = vmatpush.msra.mxu0 %v2659
          %2741 = vmatpush.msra.mxu0 %v2655
          %2742 = vmatpush.msra.mxu0 %v2651
          %2743 = vmatpush.msra.mxu0 %v2647
          %2744 = vmatpush.msra.mxu0 %v2643
          %2745 = vmatpush.msra.mxu0 %v2639
          %2746 = vmatpush.msra.mxu0 %v2635
          %2747 = vmatpush.msra.mxu0 %v2631
          %2748 = vmatpush.msra.mxu0 %v2627
          %2749 = vmatpush.msra.mxu0 %v2623
          %2750 = vmatpush.msra.mxu0 %v2619
          %2751 = vmatpush.msra.mxu0 %v2615
          %2752 = vmatmul.f32.gmra.mxu0 %v2611
          %v2753 = vpop.f32.mrf.mxu0
          %v2754 = vadd.f32 0.0, %v2753
          %2755 = vdwg.mxu0
          %v2764 = vrot.slane %v2596, 7
          %v2765 = vsel %vm568, %v2764, %v2595
          %v2766 = vrot.slane %v2597, 6
          %v2767 = vsel %vm571, %v2766, %v2765
          %v2768 = vrot.slane %v2598, 5
          %v2769 = vsel %vm574, %v2768, %v2767
          %v2770 = vrot.slane %v2599, 4
          %v2771 = vsel %vm577, %v2770, %v2769
          %v2772 = vrot.slane %v2600, 3
          %v2773 = vsel %vm580, %v2772, %v2771
          %v2774 = vrot.slane %v2601, 2
          %v2775 = vsel %vm583, %v2774, %v2773
          %v2776 = vrot.slane %v2602, 1
          %v2777 = vsel %vm586, %v2776, %v2775
          %v2778 = vsel %vm588, %v2777, 0
          %2780 = vmatpush.msra.mxu0 0.0
          %2781 = vmatpush.msra.mxu0 0.0
          %2782 = vmatpush.msra.mxu0 0.0
          %2783 = vmatpush.msra.mxu0 0.0
          %2784 = vmatpush.msra.mxu0 0.0
          %2785 = vmatpush.msra.mxu0 0.0
          %2786 = vmatpush.msra.mxu0 0.0
          %2787 = vmatpush.msra.mxu0 0.0
          %2788 = vmatpush.msra.mxu0 0.0
          %2789 = vmatpush.msra.mxu0 0.0
          %2790 = vmatpush.msra.mxu0 0.0
          %2791 = vmatpush.msra.mxu0 0.0
          %2792 = vmatpush.msra.mxu0 0.0
          %2793 = vmatpush.msra.mxu0 0.0
          %2794 = vmatpush.msra.mxu0 %v2607
          %2795 = vmatpush.msra.mxu0 %v2603
          %2796 = vmatmul.f32.gmra.mxu0 %v2778
          %v2797 = vpop.f32.mrf.mxu0
          %v2798 = vadd.f32 %v2694, %v2797
          %2799 = vdwg.mxu0
          %2800 = vmatpush.msra.mxu0 0.0
          %2801 = vmatpush.msra.mxu0 0.0
          %2802 = vmatpush.msra.mxu0 0.0
          %2803 = vmatpush.msra.mxu0 0.0
          %2804 = vmatpush.msra.mxu0 0.0
          %2805 = vmatpush.msra.mxu0 0.0
          %2806 = vmatpush.msra.mxu0 0.0
          %2807 = vmatpush.msra.mxu0 0.0
          %2808 = vmatpush.msra.mxu0 0.0
          %2809 = vmatpush.msra.mxu0 0.0
          %2810 = vmatpush.msra.mxu0 0.0
          %2811 = vmatpush.msra.mxu0 0.0
          %2812 = vmatpush.msra.mxu0 0.0
          %2813 = vmatpush.msra.mxu0 0.0
          %2814 = vmatpush.msra.mxu0 %v2608
          %2815 = vmatpush.msra.mxu0 %v2604
          %2816 = vmatmul.f32.gmra.mxu0 %v2778
          %v2817 = vpop.f32.mrf.mxu0
          %v2818 = vadd.f32 %v2714, %v2817
          %2819 = vdwg.mxu0
          %2820 = vmatpush.msra.mxu0 0.0
          %2821 = vmatpush.msra.mxu0 0.0
          %2822 = vmatpush.msra.mxu0 0.0
          %2823 = vmatpush.msra.mxu0 0.0
          %2824 = vmatpush.msra.mxu0 0.0
          %2825 = vmatpush.msra.mxu0 0.0
          %2826 = vmatpush.msra.mxu0 0.0
          %2827 = vmatpush.msra.mxu0 0.0
          %2828 = vmatpush.msra.mxu0 0.0
          %2829 = vmatpush.msra.mxu0 0.0
          %2830 = vmatpush.msra.mxu0 0.0
          %2831 = vmatpush.msra.mxu0 0.0
          %2832 = vmatpush.msra.mxu0 0.0
          %2833 = vmatpush.msra.mxu0 0.0
          %2834 = vmatpush.msra.mxu0 %v2609
          %2835 = vmatpush.msra.mxu0 %v2605
          %2836 = vmatmul.f32.gmra.mxu0 %v2778
          %v2837 = vpop.f32.mrf.mxu0
          %v2838 = vadd.f32 %v2734, %v2837
          %2839 = vdwg.mxu0
          %2840 = vmatpush.msra.mxu0 0.0
          %2841 = vmatpush.msra.mxu0 0.0
          %2842 = vmatpush.msra.mxu0 0.0
          %2843 = vmatpush.msra.mxu0 0.0
          %2844 = vmatpush.msra.mxu0 0.0
          %2845 = vmatpush.msra.mxu0 0.0
          %2846 = vmatpush.msra.mxu0 0.0
          %2847 = vmatpush.msra.mxu0 0.0
          %2848 = vmatpush.msra.mxu0 0.0
          %2849 = vmatpush.msra.mxu0 0.0
          %2850 = vmatpush.msra.mxu0 0.0
          %2851 = vmatpush.msra.mxu0 0.0
          %2852 = vmatpush.msra.mxu0 0.0
          %2853 = vmatpush.msra.mxu0 0.0
          %2854 = vmatpush.msra.mxu0 %v2610
          %2855 = vmatpush.msra.mxu0 %v2606
          %2856 = vmatmul.f32.gmra.mxu0 %v2778
          %v2857 = vpop.f32.mrf.mxu0
          %v2858 = vadd.f32 %v2754, %v2857
          %2859 = vdwg.mxu0
          %v2860 = vadd.f32 %v2798, %v390
          %v2861 = vadd.f32 %v2818, %v391
          %v2862 = vadd.f32 %v2838, %v392
          %v2863 = vadd.f32 %v2858, %v393
          %v2864 = vxor.u32 %v2860, 2147483648
          %v2865 = vmul.f32 %v2864, 1.442695
          %v2866 = vpow.pop %v2865
          %v2867 = vadd.f32 %v2866, 1.0
          %v2868 = vrcp.pop %v2867
          %v2869 = vmul.f32 %v2867, %v2868
          %v2870 = vsub.f32 1.0, %v2869
          %v2871 = vmul.f32 %v2868, %v2870
          %v2872 = vadd.f32 %v2868, %v2871
          %vm2873 = vweird.f32 %v2867
          %vm2874 = vweird.f32 %v2868
          %vm2875 = vmor %vm2873, %vm2874
          %v2876 = vsel %vm2875, %v2868, %v2872
          %v2877 = vand.u32 2147483647, %v2867
          %vm2878 = vcmp.eq.f32.partialorder %v2877, 8.507059e+37
          %v2879 = vand.u32 %v2867, 2147483648
          %v2880 = vor.u32 1.1754944e-38, %v2879
          %v2881 = vsel %vm2878, %v2880, %v2876
          %v2882 = vmul.f32 1.0, %v2881
          %v2883 = vxor.u32 %v2861, 2147483648
          %v2884 = vmul.f32 %v2883, 1.442695
          %v2885 = vpow.pop %v2884
          %v2886 = vadd.f32 %v2885, 1.0
          %v2887 = vrcp.pop %v2886
          %v2888 = vmul.f32 %v2886, %v2887
          %v2889 = vsub.f32 1.0, %v2888
          %v2890 = vmul.f32 %v2887, %v2889
          %v2891 = vadd.f32 %v2887, %v2890
          %vm2892 = vweird.f32 %v2886
          %vm2893 = vweird.f32 %v2887
          %vm2894 = vmor %vm2892, %vm2893
          %v2895 = vsel %vm2894, %v2887, %v2891
          %v2896 = vand.u32 2147483647, %v2886
          %vm2897 = vcmp.eq.f32.partialorder %v2896, 8.507059e+37
          %v2898 = vand.u32 %v2886, 2147483648
          %v2899 = vor.u32 1.1754944e-38, %v2898
          %v2900 = vsel %vm2897, %v2899, %v2895
          %v2901 = vmul.f32 1.0, %v2900
          %v2902 = vtanh.pop %v2862
          %v2903 = vxor.u32 %v2863, 2147483648
          %v2904 = vmul.f32 %v2903, 1.442695
          %v2905 = vpow.pop %v2904
          %v2906 = vadd.f32 %v2905, 1.0
          %v2907 = vrcp.pop %v2906
          %v2908 = vmul.f32 %v2906, %v2907
          %v2909 = vsub.f32 1.0, %v2908
          %v2910 = vmul.f32 %v2907, %v2909
          %v2911 = vadd.f32 %v2907, %v2910
          %vm2912 = vweird.f32 %v2906
          %vm2913 = vweird.f32 %v2907
          %vm2914 = vmor %vm2912, %vm2913
          %v2915 = vsel %vm2914, %v2907, %v2911
          %v2916 = vand.u32 2147483647, %v2906
          %vm2917 = vcmp.eq.f32.partialorder %v2916, 8.507059e+37
          %v2918 = vand.u32 %v2906, 2147483648
          %v2919 = vor.u32 1.1754944e-38, %v2918
          %v2920 = vsel %vm2917, %v2919, %v2915
          %v2921 = vmul.f32 1.0, %v2920
          %v2922 = vld [vmem:[#allocation3] sm:$0xff]
          %v2923 = vmul.f32 %v2901, %v2922
          %v2924 = vmul.f32 %v2882, %v2902
          %v2925 = vadd.f32 %v2923, %v2924
          %v2926 = vtanh.pop %v2925
          %v2927 = vmul.f32 %v2921, %v2926
          %s2928 = sadd.s32 %s383, 6
          %v2929 = vstv %s2928
          %vm2930 = vcmp.gt.s32.totalorder %v387, %v2929
          %v2931 = vsel %vm2930, %v2927, %v2611
          %2932 = vst [vmem:[#allocation2] sm:$0xff] %v2931
          %v2933 = vld [vmem:[#allocation3] sm:$0xff]
          %v2934 = vsel %vm2930, %v2925, %v2933
          %2935 = vst [vmem:[#allocation3] sm:$0xff] %v2934
          %v2936 = vsel %vm2930, %v2927, 0.0
          %v2938 = vrot.slane %v2936, 1
          %v2939 = vrot.slane %v2936, 2
          %v2940 = vrot.slane %v2936, 3
          %v2941 = vrot.slane %v2936, 4
          %v2942 = vrot.slane %v2936, 5
          %v2943 = vrot.slane %v2936, 6
          %v2944 = vrot.slane %v2936, 7
          %2952 = vst [vmem:[%s343 + $0x6] sm:$0x1] %v2936
          %2953 = vst [vmem:[%s343 + $0xe] sm:$0x1] %v2938
          %2954 = vst [vmem:[%s343 + $0x16] sm:$0x1] %v2939
          %2955 = vst [vmem:[%s343 + $0x1e] sm:$0x1] %v2940
          %2956 = vst [vmem:[%s343 + $0x26] sm:$0x1] %v2941
          %2957 = vst [vmem:[%s343 + $0x2e] sm:$0x1] %v2942
          %2958 = vst [vmem:[%s343 + $0x36] sm:$0x1] %v2943
          %2959 = vst [vmem:[%s343 + $0x3e] sm:$0x1] %v2944
          %v2960 = vld [vmem:[%s316 + $0x7] sm:$0x1]
          %v2961 = vld [vmem:[%s316 + $0xf] sm:$0x1]
          %v2962 = vld [vmem:[%s316 + $0x17] sm:$0x1]
          %v2963 = vld [vmem:[%s316 + $0x1f] sm:$0x1]
          %v2964 = vld [vmem:[%s316 + $0x27] sm:$0x1]
          %v2965 = vld [vmem:[%s316 + $0x2f] sm:$0x1]
          %v2966 = vld [vmem:[%s316 + $0x37] sm:$0x1]
          %v2967 = vld [vmem:[%s316 + $0x3f] sm:$0x1]
          %v2968 = vld [vmem:[%s3] sm:$0xff]
          %v2969 = vld [vmem:[%s3 + $0x8] sm:$0xff]
          %v2970 = vld [vmem:[%s3 + $0x10] sm:$0xff]
          %v2971 = vld [vmem:[%s3 + $0x18] sm:$0xff]
          %v2972 = vld [vmem:[%s3 + $0x20] sm:$0xff]
          %v2973 = vld [vmem:[%s3 + $0x28] sm:$0xff]
          %v2974 = vld [vmem:[%s3 + $0x30] sm:$0xff]
          %v2975 = vld [vmem:[%s3 + $0x38] sm:$0xff]
          %v2976 = vld [vmem:[#allocation2] sm:$0xff]
          %v2977 = vld [vmem:[%s4] sm:$0xff]
          %v2978 = vld [vmem:[%s4 + $0x8] sm:$0xff]
          %v2979 = vld [vmem:[%s4 + $0x10] sm:$0xff]
          %v2980 = vld [vmem:[%s4 + $0x18] sm:$0xff]
          %v2981 = vld [vmem:[%s4 + $0x20] sm:$0xff]
          %v2982 = vld [vmem:[%s4 + $0x28] sm:$0xff]
          %v2983 = vld [vmem:[%s4 + $0x30] sm:$0xff]
          %v2984 = vld [vmem:[%s4 + $0x38] sm:$0xff]
          %v2985 = vld [vmem:[%s4 + $0x40] sm:$0xff]
          %v2986 = vld [vmem:[%s4 + $0x48] sm:$0xff]
          %v2987 = vld [vmem:[%s4 + $0x50] sm:$0xff]
          %v2988 = vld [vmem:[%s4 + $0x58] sm:$0xff]
          %v2989 = vld [vmem:[%s4 + $0x60] sm:$0xff]
          %v2990 = vld [vmem:[%s4 + $0x68] sm:$0xff]
          %v2991 = vld [vmem:[%s4 + $0x70] sm:$0xff]
          %v2992 = vld [vmem:[%s4 + $0x78] sm:$0xff]
          %v2993 = vld [vmem:[%s4 + $0x80] sm:$0xff]
          %v2994 = vld [vmem:[%s4 + $0x88] sm:$0xff]
          %v2995 = vld [vmem:[%s4 + $0x90] sm:$0xff]
          %v2996 = vld [vmem:[%s4 + $0x98] sm:$0xff]
          %v2997 = vld [vmem:[%s4 + $0xa0] sm:$0xff]
          %v2998 = vld [vmem:[%s4 + $0xa8] sm:$0xff]
          %v2999 = vld [vmem:[%s4 + $0xb0] sm:$0xff]
          %v3000 = vld [vmem:[%s4 + $0xb8] sm:$0xff]
          %v3001 = vld [vmem:[%s4 + $0xc0] sm:$0xff]
          %v3002 = vld [vmem:[%s4 + $0xc8] sm:$0xff]
          %v3003 = vld [vmem:[%s4 + $0xd0] sm:$0xff]
          %v3004 = vld [vmem:[%s4 + $0xd8] sm:$0xff]
          %v3005 = vld [vmem:[%s4 + $0xe0] sm:$0xff]
          %v3006 = vld [vmem:[%s4 + $0xe8] sm:$0xff]
          %v3007 = vld [vmem:[%s4 + $0xf0] sm:$0xff]
          %v3008 = vld [vmem:[%s4 + $0xf8] sm:$0xff]
          %v3009 = vld [vmem:[%s4 + $0x100] sm:$0xff]
          %v3010 = vld [vmem:[%s4 + $0x108] sm:$0xff]
          %v3011 = vld [vmem:[%s4 + $0x110] sm:$0xff]
          %v3012 = vld [vmem:[%s4 + $0x118] sm:$0xff]
          %v3013 = vld [vmem:[%s4 + $0x120] sm:$0xff]
          %v3014 = vld [vmem:[%s4 + $0x128] sm:$0xff]
          %v3015 = vld [vmem:[%s4 + $0x130] sm:$0xff]
          %v3016 = vld [vmem:[%s4 + $0x138] sm:$0xff]
          %v3017 = vld [vmem:[%s4 + $0x140] sm:$0xff]
          %v3018 = vld [vmem:[%s4 + $0x148] sm:$0xff]
          %v3019 = vld [vmem:[%s4 + $0x150] sm:$0xff]
          %v3020 = vld [vmem:[%s4 + $0x158] sm:$0xff]
          %v3021 = vld [vmem:[%s4 + $0x160] sm:$0xff]
          %v3022 = vld [vmem:[%s4 + $0x168] sm:$0xff]
          %v3023 = vld [vmem:[%s4 + $0x170] sm:$0xff]
          %v3024 = vld [vmem:[%s4 + $0x178] sm:$0xff]
          %v3025 = vld [vmem:[%s4 + $0x180] sm:$0xff]
          %v3026 = vld [vmem:[%s4 + $0x188] sm:$0xff]
          %v3027 = vld [vmem:[%s4 + $0x190] sm:$0xff]
          %v3028 = vld [vmem:[%s4 + $0x198] sm:$0xff]
          %v3029 = vld [vmem:[%s4 + $0x1a0] sm:$0xff]
          %v3030 = vld [vmem:[%s4 + $0x1a8] sm:$0xff]
          %v3031 = vld [vmem:[%s4 + $0x1b0] sm:$0xff]
          %v3032 = vld [vmem:[%s4 + $0x1b8] sm:$0xff]
          %v3033 = vld [vmem:[%s4 + $0x1c0] sm:$0xff]
          %v3034 = vld [vmem:[%s4 + $0x1c8] sm:$0xff]
          %v3035 = vld [vmem:[%s4 + $0x1d0] sm:$0xff]
          %v3036 = vld [vmem:[%s4 + $0x1d8] sm:$0xff]
          %v3037 = vld [vmem:[%s4 + $0x1e0] sm:$0xff]
          %v3038 = vld [vmem:[%s4 + $0x1e8] sm:$0xff]
          %v3039 = vld [vmem:[%s4 + $0x1f0] sm:$0xff]
          %v3040 = vld [vmem:[%s4 + $0x1f8] sm:$0xff]
          %3041 = vmatpush.msra.mxu0 %v3037
          %3042 = vmatpush.msra.mxu0 %v3033
          %3043 = vmatpush.msra.mxu0 %v3029
          %3044 = vmatpush.msra.mxu0 %v3025
          %3045 = vmatpush.msra.mxu0 %v3021
          %3046 = vmatpush.msra.mxu0 %v3017
          %3047 = vmatpush.msra.mxu0 %v3013
          %3048 = vmatpush.msra.mxu0 %v3009
          %3049 = vmatpush.msra.mxu0 %v3005
          %3050 = vmatpush.msra.mxu0 %v3001
          %3051 = vmatpush.msra.mxu0 %v2997
          %3052 = vmatpush.msra.mxu0 %v2993
          %3053 = vmatpush.msra.mxu0 %v2989
          %3054 = vmatpush.msra.mxu0 %v2985
          %3055 = vmatpush.msra.mxu0 %v2981
          %3056 = vmatpush.msra.mxu0 %v2977
          %3057 = vmatmul.f32.gmra.mxu0 %v2976
          %v3058 = vpop.f32.mrf.mxu0
          %v3059 = vadd.f32 0.0, %v3058
          %3060 = vdwg.mxu0
          %3061 = vmatpush.msra.mxu0 %v3038
          %3062 = vmatpush.msra.mxu0 %v3034
          %3063 = vmatpush.msra.mxu0 %v3030
          %3064 = vmatpush.msra.mxu0 %v3026
          %3065 = vmatpush.msra.mxu0 %v3022
          %3066 = vmatpush.msra.mxu0 %v3018
          %3067 = vmatpush.msra.mxu0 %v3014
          %3068 = vmatpush.msra.mxu0 %v3010
          %3069 = vmatpush.msra.mxu0 %v3006
          %3070 = vmatpush.msra.mxu0 %v3002
          %3071 = vmatpush.msra.mxu0 %v2998
          %3072 = vmatpush.msra.mxu0 %v2994
          %3073 = vmatpush.msra.mxu0 %v2990
          %3074 = vmatpush.msra.mxu0 %v2986
          %3075 = vmatpush.msra.mxu0 %v2982
          %3076 = vmatpush.msra.mxu0 %v2978
          %3077 = vmatmul.f32.gmra.mxu0 %v2976
          %v3078 = vpop.f32.mrf.mxu0
          %v3079 = vadd.f32 0.0, %v3078
          %3080 = vdwg.mxu0
          %3081 = vmatpush.msra.mxu0 %v3039
          %3082 = vmatpush.msra.mxu0 %v3035
          %3083 = vmatpush.msra.mxu0 %v3031
          %3084 = vmatpush.msra.mxu0 %v3027
          %3085 = vmatpush.msra.mxu0 %v3023
          %3086 = vmatpush.msra.mxu0 %v3019
          %3087 = vmatpush.msra.mxu0 %v3015
          %3088 = vmatpush.msra.mxu0 %v3011
          %3089 = vmatpush.msra.mxu0 %v3007
          %3090 = vmatpush.msra.mxu0 %v3003
          %3091 = vmatpush.msra.mxu0 %v2999
          %3092 = vmatpush.msra.mxu0 %v2995
          %3093 = vmatpush.msra.mxu0 %v2991
          %3094 = vmatpush.msra.mxu0 %v2987
          %3095 = vmatpush.msra.mxu0 %v2983
          %3096 = vmatpush.msra.mxu0 %v2979
          %3097 = vmatmul.f32.gmra.mxu0 %v2976
          %v3098 = vpop.f32.mrf.mxu0
          %v3099 = vadd.f32 0.0, %v3098
          %3100 = vdwg.mxu0
          %3101 = vmatpush.msra.mxu0 %v3040
          %3102 = vmatpush.msra.mxu0 %v3036
          %3103 = vmatpush.msra.mxu0 %v3032
          %3104 = vmatpush.msra.mxu0 %v3028
          %3105 = vmatpush.msra.mxu0 %v3024
          %3106 = vmatpush.msra.mxu0 %v3020
          %3107 = vmatpush.msra.mxu0 %v3016
          %3108 = vmatpush.msra.mxu0 %v3012
          %3109 = vmatpush.msra.mxu0 %v3008
          %3110 = vmatpush.msra.mxu0 %v3004
          %3111 = vmatpush.msra.mxu0 %v3000
          %3112 = vmatpush.msra.mxu0 %v2996
          %3113 = vmatpush.msra.mxu0 %v2992
          %3114 = vmatpush.msra.mxu0 %v2988
          %3115 = vmatpush.msra.mxu0 %v2984
          %3116 = vmatpush.msra.mxu0 %v2980
          %3117 = vmatmul.f32.gmra.mxu0 %v2976
          %v3118 = vpop.f32.mrf.mxu0
          %v3119 = vadd.f32 0.0, %v3118
          %3120 = vdwg.mxu0
          %v3129 = vrot.slane %v2961, 7
          %v3130 = vsel %vm568, %v3129, %v2960
          %v3131 = vrot.slane %v2962, 6
          %v3132 = vsel %vm571, %v3131, %v3130
          %v3133 = vrot.slane %v2963, 5
          %v3134 = vsel %vm574, %v3133, %v3132
          %v3135 = vrot.slane %v2964, 4
          %v3136 = vsel %vm577, %v3135, %v3134
          %v3137 = vrot.slane %v2965, 3
          %v3138 = vsel %vm580, %v3137, %v3136
          %v3139 = vrot.slane %v2966, 2
          %v3140 = vsel %vm583, %v3139, %v3138
          %v3141 = vrot.slane %v2967, 1
          %v3142 = vsel %vm586, %v3141, %v3140
          %v3143 = vsel %vm588, %v3142, 0
          %3145 = vmatpush.msra.mxu0 0.0
          %3146 = vmatpush.msra.mxu0 0.0
          %3147 = vmatpush.msra.mxu0 0.0
          %3148 = vmatpush.msra.mxu0 0.0
          %3149 = vmatpush.msra.mxu0 0.0
          %3150 = vmatpush.msra.mxu0 0.0
          %3151 = vmatpush.msra.mxu0 0.0
          %3152 = vmatpush.msra.mxu0 0.0
          %3153 = vmatpush.msra.mxu0 0.0
          %3154 = vmatpush.msra.mxu0 0.0
          %3155 = vmatpush.msra.mxu0 0.0
          %3156 = vmatpush.msra.mxu0 0.0
          %3157 = vmatpush.msra.mxu0 0.0
          %3158 = vmatpush.msra.mxu0 0.0
          %3159 = vmatpush.msra.mxu0 %v2972
          %3160 = vmatpush.msra.mxu0 %v2968
          %3161 = vmatmul.f32.gmra.mxu0 %v3143
          %v3162 = vpop.f32.mrf.mxu0
          %v3163 = vadd.f32 %v3059, %v3162
          %3164 = vdwg.mxu0
          %3165 = vmatpush.msra.mxu0 0.0
          %3166 = vmatpush.msra.mxu0 0.0
          %3167 = vmatpush.msra.mxu0 0.0
          %3168 = vmatpush.msra.mxu0 0.0
          %3169 = vmatpush.msra.mxu0 0.0
          %3170 = vmatpush.msra.mxu0 0.0
          %3171 = vmatpush.msra.mxu0 0.0
          %3172 = vmatpush.msra.mxu0 0.0
          %3173 = vmatpush.msra.mxu0 0.0
          %3174 = vmatpush.msra.mxu0 0.0
          %3175 = vmatpush.msra.mxu0 0.0
          %3176 = vmatpush.msra.mxu0 0.0
          %3177 = vmatpush.msra.mxu0 0.0
          %3178 = vmatpush.msra.mxu0 0.0
          %3179 = vmatpush.msra.mxu0 %v2973
          %3180 = vmatpush.msra.mxu0 %v2969
          %3181 = vmatmul.f32.gmra.mxu0 %v3143
          %v3182 = vpop.f32.mrf.mxu0
          %v3183 = vadd.f32 %v3079, %v3182
          %3184 = vdwg.mxu0
          %3185 = vmatpush.msra.mxu0 0.0
          %3186 = vmatpush.msra.mxu0 0.0
          %3187 = vmatpush.msra.mxu0 0.0
          %3188 = vmatpush.msra.mxu0 0.0
          %3189 = vmatpush.msra.mxu0 0.0
          %3190 = vmatpush.msra.mxu0 0.0
          %3191 = vmatpush.msra.mxu0 0.0
          %3192 = vmatpush.msra.mxu0 0.0
          %3193 = vmatpush.msra.mxu0 0.0
          %3194 = vmatpush.msra.mxu0 0.0
          %3195 = vmatpush.msra.mxu0 0.0
          %3196 = vmatpush.msra.mxu0 0.0
          %3197 = vmatpush.msra.mxu0 0.0
          %3198 = vmatpush.msra.mxu0 0.0
          %3199 = vmatpush.msra.mxu0 %v2974
          %3200 = vmatpush.msra.mxu0 %v2970
          %3201 = vmatmul.f32.gmra.mxu0 %v3143
          %v3202 = vpop.f32.mrf.mxu0
          %v3203 = vadd.f32 %v3099, %v3202
          %3204 = vdwg.mxu0
          %3205 = vmatpush.msra.mxu0 0.0
          %3206 = vmatpush.msra.mxu0 0.0
          %3207 = vmatpush.msra.mxu0 0.0
          %3208 = vmatpush.msra.mxu0 0.0
          %3209 = vmatpush.msra.mxu0 0.0
          %3210 = vmatpush.msra.mxu0 0.0
          %3211 = vmatpush.msra.mxu0 0.0
          %3212 = vmatpush.msra.mxu0 0.0
          %3213 = vmatpush.msra.mxu0 0.0
          %3214 = vmatpush.msra.mxu0 0.0
          %3215 = vmatpush.msra.mxu0 0.0
          %3216 = vmatpush.msra.mxu0 0.0
          %3217 = vmatpush.msra.mxu0 0.0
          %3218 = vmatpush.msra.mxu0 0.0
          %3219 = vmatpush.msra.mxu0 %v2975
          %3220 = vmatpush.msra.mxu0 %v2971
          %3221 = vmatmul.f32.gmra.mxu0 %v3143
          %v3222 = vpop.f32.mrf.mxu0
          %v3223 = vadd.f32 %v3119, %v3222
          %3224 = vdwg.mxu0
          %v3225 = vadd.f32 %v3163, %v390
          %v3226 = vadd.f32 %v3183, %v391
          %v3227 = vadd.f32 %v3203, %v392
          %v3228 = vadd.f32 %v3223, %v393
          %v3229 = vxor.u32 %v3225, 2147483648
          %v3230 = vmul.f32 %v3229, 1.442695
          %v3231 = vpow.pop %v3230
          %v3232 = vadd.f32 %v3231, 1.0
          %v3233 = vrcp.pop %v3232
          %v3234 = vmul.f32 %v3232, %v3233
          %v3235 = vsub.f32 1.0, %v3234
          %v3236 = vmul.f32 %v3233, %v3235
          %v3237 = vadd.f32 %v3233, %v3236
          %vm3238 = vweird.f32 %v3232
          %vm3239 = vweird.f32 %v3233
          %vm3240 = vmor %vm3238, %vm3239
          %v3241 = vsel %vm3240, %v3233, %v3237
          %v3242 = vand.u32 2147483647, %v3232
          %vm3243 = vcmp.eq.f32.partialorder %v3242, 8.507059e+37
          %v3244 = vand.u32 %v3232, 2147483648
          %v3245 = vor.u32 1.1754944e-38, %v3244
          %v3246 = vsel %vm3243, %v3245, %v3241
          %v3247 = vmul.f32 1.0, %v3246
          %v3248 = vxor.u32 %v3226, 2147483648
          %v3249 = vmul.f32 %v3248, 1.442695
          %v3250 = vpow.pop %v3249
          %v3251 = vadd.f32 %v3250, 1.0
          %v3252 = vrcp.pop %v3251
          %v3253 = vmul.f32 %v3251, %v3252
          %v3254 = vsub.f32 1.0, %v3253
          %v3255 = vmul.f32 %v3252, %v3254
          %v3256 = vadd.f32 %v3252, %v3255
          %vm3257 = vweird.f32 %v3251
          %vm3258 = vweird.f32 %v3252
          %vm3259 = vmor %vm3257, %vm3258
          %v3260 = vsel %vm3259, %v3252, %v3256
          %v3261 = vand.u32 2147483647, %v3251
          %vm3262 = vcmp.eq.f32.partialorder %v3261, 8.507059e+37
          %v3263 = vand.u32 %v3251, 2147483648
          %v3264 = vor.u32 1.1754944e-38, %v3263
          %v3265 = vsel %vm3262, %v3264, %v3260
          %v3266 = vmul.f32 1.0, %v3265
          %v3267 = vtanh.pop %v3227
          %v3268 = vxor.u32 %v3228, 2147483648
          %v3269 = vmul.f32 %v3268, 1.442695
          %v3270 = vpow.pop %v3269
          %v3271 = vadd.f32 %v3270, 1.0
          %v3272 = vrcp.pop %v3271
          %v3273 = vmul.f32 %v3271, %v3272
          %v3274 = vsub.f32 1.0, %v3273
          %v3275 = vmul.f32 %v3272, %v3274
          %v3276 = vadd.f32 %v3272, %v3275
          %vm3277 = vweird.f32 %v3271
          %vm3278 = vweird.f32 %v3272
          %vm3279 = vmor %vm3277, %vm3278
          %v3280 = vsel %vm3279, %v3272, %v3276
          %v3281 = vand.u32 2147483647, %v3271
          %vm3282 = vcmp.eq.f32.partialorder %v3281, 8.507059e+37
          %v3283 = vand.u32 %v3271, 2147483648
          %v3284 = vor.u32 1.1754944e-38, %v3283
          %v3285 = vsel %vm3282, %v3284, %v3280
          %v3286 = vmul.f32 1.0, %v3285
          %v3287 = vld [vmem:[#allocation3] sm:$0xff]
          %v3288 = vmul.f32 %v3266, %v3287
          %v3289 = vmul.f32 %v3247, %v3267
          %v3290 = vadd.f32 %v3288, %v3289
          %v3291 = vtanh.pop %v3290
          %v3292 = vmul.f32 %v3286, %v3291
          %s3293 = sadd.s32 %s383, 7
          %v3294 = vstv %s3293
          %vm3295 = vcmp.gt.s32.totalorder %v387, %v3294
          %v3296 = vsel %vm3295, %v3292, %v2976
          %3297 = vst [vmem:[#allocation2] sm:$0xff] %v3296
          %v3298 = vld [vmem:[#allocation3] sm:$0xff]
          %v3299 = vsel %vm3295, %v3290, %v3298
          %3300 = vst [vmem:[#allocation3] sm:$0xff] %v3299
          %v3301 = vsel %vm3295, %v3292, 0.0
          %v3303 = vrot.slane %v3301, 1
          %v3304 = vrot.slane %v3301, 2
          %v3305 = vrot.slane %v3301, 3
          %v3306 = vrot.slane %v3301, 4
          %v3307 = vrot.slane %v3301, 5
          %v3308 = vrot.slane %v3301, 6
          %v3309 = vrot.slane %v3301, 7
          %3317 = vst [vmem:[%s343 + $0x7] sm:$0x1] %v3301
          %3318 = vst [vmem:[%s343 + $0xf] sm:$0x1] %v3303
          %3319 = vst [vmem:[%s343 + $0x17] sm:$0x1] %v3304
          %3320 = vst [vmem:[%s343 + $0x1f] sm:$0x1] %v3305
          %3321 = vst [vmem:[%s343 + $0x27] sm:$0x1] %v3306
          %3322 = vst [vmem:[%s343 + $0x2f] sm:$0x1] %v3307
          %3323 = vst [vmem:[%s343 + $0x37] sm:$0x1] %v3308
          %3324 = vst [vmem:[%s343 + $0x3f] sm:$0x1] %v3309
        $region90: #{lstm_layer_forward.1} parent=73 // pred_fallthru
          _
        %p3325 = scmp.eq.s32.totalorder %s25, 1
        // Predicated region
        $region91: #{lstm_layer_forward.1} parent=73 // pred_check
          %p3326 = pneg %p3325
        $region92: #{lstm_layer_forward.1} parent=73 // pred_check_branch
          %3328 = sbr.rel (%p3326) target = $region94
        $region93: #{lstm_layer_forward.1} parent=73 // pred_region
          %v3329 = vld [vmem:[#allocation2] sm:$0xff]
          %3330 = vst [vmem:[%s359] sm:$0xff] %v3329
        $region94: #{lstm_layer_forward.1} parent=73 // pred_fallthru
          _
        %s3331 = sand.u32 %s159, 1
        %s3332 = sand.u32 %s159, 1
        %s3333 = smul.addr %s3332, 64
        %s3334 = scalar_lea.vmem [#allocation7], %s3333
        %p3335 = scmp.lt.s32.totalorder %s24, 0
        %s3336 = scalar_select %p3335, %s24, 0
        %s3337 = smul.addr %s3336, 8
        %s3338 = scalar_lea.vmem %s7, %s3337
        // Predicated region
        $region95: #{lstm_layer_forward.1} parent=73 // pred_check
          %p3339 = pneg %p169
        $region96: #{lstm_layer_forward.1} parent=73 // pred_check_branch
          %3341 = sbr.rel (%p3339) target = $region98
        $region97: #{lstm_layer_forward.1} parent=73 // pred_region
          %s3342 = smul.u32 8, %s24
          %s3343 = smul.addr %s3342, 2
          %s3344 = sadd.s32 %s25, %s3343
          %s3345 = smul.addr %s3344, 8
          %s3346 = scalar_lea.vmem %s6, %s3345
          // Predicated region
          $region99: #{lstm_layer_forward.1} parent=97 // pred_check
            _
          $region100: #{lstm_layer_forward.1} parent=97 // pred_check_branch
            %3348 = sbr.rel (0) target = $region102
          $region101: #{lstm_layer_forward.1} parent=97 // pred_region
            // Predicated region
            $region103: #{lstm_layer_forward.1} parent=101 // pred_check
              _
            $region104: #{lstm_layer_forward.1} parent=101 // pred_check_branch
              %3350 = sbr.rel (0) target = $region106
            $region105: #{lstm_layer_forward.1} parent=101 // pred_region
              // Predicated region
              $region118: #{lstm_layer_forward.1} parent=105 // pred_check
                _
              $region119: #{lstm_layer_forward.1} parent=105 // pred_check_branch
                %3380 = sbr.rel (0) target = $region121
              $region120: #{lstm_layer_forward.1} parent=105 // pred_region
                loop: start=0, step=1, limit=1
                $region122: #{lstm_layer_forward.1} parent=120 // loop_pre_header
                  _
                $region123: #{lstm_layer_forward.1} parent=120 // loop_header
                  %s3382 = sphi 0, %s3386
                  %p3383 = scmp.ge.s32.totalorder %s3382, 1
                  %s3387 = sphi %s3334, %s3334
                  %s3388 = sphi %s3346, %s3346
                $region124: #{lstm_layer_forward.1} parent=120 // loop_header_branch
                  %3385 = sbr.rel (%p3383) target = $region128
                $region125: #{lstm_layer_forward.1} parent=120 // loop_body
                  %v3389 = vld [vmem:[%s3387] sm:$0xff]
                  %3390 = vst [vmem:[%s3388] sm:$0xff] %v3389
                  %v3391 = vld [vmem:[%s3387 + $0x8] sm:$0xff]
                  %3392 = vst [vmem:[%s3388 + $0x10] sm:$0xff] %v3391
                  %v3393 = vld [vmem:[%s3387 + $0x10] sm:$0xff]
                  %3394 = vst [vmem:[%s3388 + $0x20] sm:$0xff] %v3393
                  %v3395 = vld [vmem:[%s3387 + $0x18] sm:$0xff]
                  %3396 = vst [vmem:[%s3388 + $0x30] sm:$0xff] %v3395
                  %v3397 = vld [vmem:[%s3387 + $0x20] sm:$0xff]
                  %3398 = vst [vmem:[%s3388 + $0x40] sm:$0xff] %v3397
                  %v3399 = vld [vmem:[%s3387 + $0x28] sm:$0xff]
                  %3400 = vst [vmem:[%s3388 + $0x50] sm:$0xff] %v3399
                  %v3401 = vld [vmem:[%s3387 + $0x30] sm:$0xff]
                  %3402 = vst [vmem:[%s3388 + $0x60] sm:$0xff] %v3401
                  %v3403 = vld [vmem:[%s3387 + $0x38] sm:$0xff]
                  %3404 = vst [vmem:[%s3388 + $0x70] sm:$0xff] %v3403
                $region126: #{lstm_layer_forward.1} parent=120 // loop_footer
                  %s3386 = sadd.s32 1, %s3382
                $region127: #{lstm_layer_forward.1} parent=120 // loop_footer_branch
                  %3381 = sbr.rel target = $region123
                $region128: #{lstm_layer_forward.1} parent=120 // loop_exit
                  _
              $region121: #{lstm_layer_forward.1} parent=105 // pred_fallthru
                _
              // Predicated region
              $region129: #{lstm_layer_forward.1} parent=105 // pred_check
                _
              $region130: #{lstm_layer_forward.1} parent=105 // pred_check_branch
                %3406 = sbr.rel target = $region132
              $region131: #{lstm_layer_forward.1} parent=105 // pred_region
                _
              $region132: #{lstm_layer_forward.1} parent=105 // pred_fallthru
                _
            $region106: #{lstm_layer_forward.1} parent=101 // pred_fallthru
              _
            // Predicated region
            $region107: #{lstm_layer_forward.1} parent=101 // pred_check
              _
            $region108: #{lstm_layer_forward.1} parent=101 // pred_check_branch
              %3352 = sbr.rel target = $region110
            $region109: #{lstm_layer_forward.1} parent=101 // pred_region
              %s3354 = ssub.s32 256, 1
              loop: start=0, step=1, limit=1
              $region111: #{lstm_layer_forward.1} parent=109 // loop_pre_header
                _
              $region112: #{lstm_layer_forward.1} parent=109 // loop_header
                %s3356 = sphi 0, %s3360
                %p3357 = scmp.ge.s32.totalorder %s3356, 1
                %s3361 = sphi %s3334, %s3334
                %s3362 = sphi %s3346, %s3346
              $region113: #{lstm_layer_forward.1} parent=109 // loop_header_branch
                %3359 = sbr.rel (%p3357) target = $region117
              $region114: #{lstm_layer_forward.1} parent=109 // loop_body
                %v3363 = vld [vmem:[%s3361] sm:%s3354]
                %3364 = vst [vmem:[%s3362] sm:%s3354] %v3363
                %v3365 = vld [vmem:[%s3361 + $0x8] sm:%s3354]
                %3366 = vst [vmem:[%s3362 + $0x10] sm:%s3354] %v3365
                %v3367 = vld [vmem:[%s3361 + $0x10] sm:%s3354]
                %3368 = vst [vmem:[%s3362 + $0x20] sm:%s3354] %v3367
                %v3369 = vld [vmem:[%s3361 + $0x18] sm:%s3354]
                %3370 = vst [vmem:[%s3362 + $0x30] sm:%s3354] %v3369
                %v3371 = vld [vmem:[%s3361 + $0x20] sm:%s3354]
                %3372 = vst [vmem:[%s3362 + $0x40] sm:%s3354] %v3371
                %v3373 = vld [vmem:[%s3361 + $0x28] sm:%s3354]
                %3374 = vst [vmem:[%s3362 + $0x50] sm:%s3354] %v3373
                %v3375 = vld [vmem:[%s3361 + $0x30] sm:%s3354]
                %3376 = vst [vmem:[%s3362 + $0x60] sm:%s3354] %v3375
                %v3377 = vld [vmem:[%s3361 + $0x38] sm:%s3354]
                %3378 = vst [vmem:[%s3362 + $0x70] sm:%s3354] %v3377
              $region115: #{lstm_layer_forward.1} parent=109 // loop_footer
                %s3360 = sadd.s32 1, %s3356
              $region116: #{lstm_layer_forward.1} parent=109 // loop_footer_branch
                %3355 = sbr.rel target = $region112
              $region117: #{lstm_layer_forward.1} parent=109 // loop_exit
                _
            $region110: #{lstm_layer_forward.1} parent=101 // pred_fallthru
              _
          $region102: #{lstm_layer_forward.1} parent=97 // pred_fallthru
            _
          %3407 = vnop
        $region98: #{lstm_layer_forward.1} parent=73 // pred_fallthru
          _
        // Predicated region
        $region133: #{lstm_layer_forward.1} parent=73 // pred_check
          %p3408 = pneg %p195
        $region134: #{lstm_layer_forward.1} parent=73 // pred_check_branch
          %3410 = sbr.rel (%p3408) target = $region136
        $region135: #{lstm_layer_forward.1} parent=73 // pred_region
          _
        $region136: #{lstm_layer_forward.1} parent=73 // pred_fallthru
          _
        // Predicated region
        $region137: #{lstm_layer_forward.1} parent=73 // pred_check
          %p3411 = pneg %p195
        $region138: #{lstm_layer_forward.1} parent=73 // pred_check_branch
          %3413 = sbr.rel (%p3411) target = $region140
        $region139: #{lstm_layer_forward.1} parent=73 // pred_region
          %p3414 = scmp.lt.s32.totalorder %s24, 0
          %s3415 = scalar_select %p3414, %s24, 0
          %s3416 = smul.addr %s3415, 8
          %s3417 = scalar_lea.vmem %s7, %s3416
        $region140: #{lstm_layer_forward.1} parent=73 // pred_fallthru
          _
      $region74: #{lstm_layer_forward.1} parent=5 // pred_fallthru
        _
      %p3418 = scmp.le.s32.totalorder 2, %s15
      // Predicated region
      $region141: #{lstm_layer_forward.1} parent=5 // pred_check
        %p3419 = pneg %p3418
      $region142: #{lstm_layer_forward.1} parent=5 // pred_check_branch
        %3421 = sbr.rel (%p3419) target = $region144
      $region143: #{lstm_layer_forward.1} parent=5 // pred_region
        %s3422 = ssub.s32 %s15, 2
        // Predicated region
        $region145: #{lstm_layer_forward.1} parent=143 // pred_check
          %p3423 = pneg %p175
        $region146: #{lstm_layer_forward.1} parent=143 // pred_check_branch
          %3425 = sbr.rel (%p3423) target = $region148
        $region147: #{lstm_layer_forward.1} parent=143 // pred_region
          %s3426 = sand.u32 %s160, 1
          %s3427 = sand.u32 %s160, 1
          %s3428 = smul.addr %s3427, 64
          %s3429 = scalar_lea.vmem [#allocation7], %s3428
        $region148: #{lstm_layer_forward.1} parent=143 // pred_fallthru
          _
      $region144: #{lstm_layer_forward.1} parent=5 // pred_fallthru
        _
    $region6: #{lstm_layer_forward.1} parent=1 // loop_footer
      %s19 = sadd.s32 1, %s15
    $region7: #{lstm_layer_forward.1} parent=1 // loop_footer_branch
      %14 = sbr.rel target = $region3
    $region8: #{lstm_layer_forward.1} parent=1 // loop_exit
      _

</llo_original>
